<compile_context>
chip_gen: v6e
topology: v6e:2x2x1
jax: 0.10.0
libtpu: 0.0.40
codegen_flags: <defaults>
</compile_context>

<pallas_src>
import functools

import jax
import jax.numpy as jnp
from jax.experimental import pallas as pl
from jax.experimental.pallas import tpu as pltpu

_EPS = 1e-5
_SLOPE = 0.2
_LANES = 128          # TPU lane width / channel padding target


def _round_up(v, m):
    return (v + m - 1) // m * m


def _down_conv_kernel(x_ref, w1_ref, g1_ref, bt1_ref, w2_ref, g2_ref, bt2_ref,
                      o_ref, pad_ref, *, do_pool, cin1, cin2):
    N, H, W, CP = x_ref.shape
    _, Hp2, Wp2, _ = pad_ref.shape
    Hh, Wh = Hp2 - 2, Wp2 - 2
    M = N * Hh * Wh
    f32 = jnp.float32
    bf16 = jnp.bfloat16

    # ---- zero only the 1-px halo frame --------------------------------------------
    # The interior (including the channel-padding lanes) is fully overwritten below by
    # the pooled-input store (x is wrapper-padded to CP) and later by the conv1 output.
    zrow = jnp.zeros((N, 1, Wp2, CP), f32)
    zcol = jnp.zeros((N, Hp2, 1, CP), f32)
    pad_ref[:, 0:1, :, :] = zrow
    pad_ref[:, Hp2 - 1:Hp2, :, :] = zrow
    pad_ref[:, :, 0:1, :] = zcol
    pad_ref[:, :, Wp2 - 1:Wp2, :] = zcol

    # ---- MaxPool2d(2) (or Identity), in-kernel, from one lane-dense DMA of x -------
    xv = x_ref[...]                                             # (N, H, W, CP) f32
    if do_pool:
        xv = jnp.max(xv.reshape(N * Hh, 2, W, CP), axis=1)      # pool row pairs (VPU)
        xv = jnp.max(xv.reshape(M, 2, CP), axis=1)              # pool col pairs
    pad_ref[:, 1:Hh + 1, 1:Wh + 1, :] = xv.reshape(N, Hh, Wh, CP)   # unmasked full-lane vst

    def conv3x3(w_ref, cin):
        # Packed im2col: (M, 9*cin) patch (columns = tap-major, channel-minor), zero
        # padded to the lane-dense width Kp, then ONE bf16 MXU matmul with f32 acc.
        kp = w_ref.shape[0]
        pieces = []
        for k in range(9):
            dy, dx = divmod(k, 3)
            slab = pad_ref[:, dy:dy + Hh, dx:dx + Wh, :].reshape(M, CP)
            pieces.append(slab[:, :cin])                        # keep real channels only
        if kp > 9 * cin:
            pieces.append(jnp.zeros((M, kp - 9 * cin), f32))    # lane-dense K padding
        patch = jnp.concatenate(pieces, axis=-1).astype(bf16)   # (M, Kp) bf16
        return jnp.dot(patch, w_ref[...], preferred_element_type=f32)   # (M, CP) f32

    def bn_lrelu(y, g_ref, bt_ref):
        # Training-mode BatchNorm2d: batch mean / biased variance over (N, H, W) in a
        # single fused pass (sum & sum-of-squares) while y is VMEM resident.  The conv
        # bias is omitted: it cancels exactly under the batch-mean subtraction
        # (training-mode semantics only; eval-mode running stats would need it back).
        inv_m = 1.0 / M
        mean = jnp.sum(y, axis=0, keepdims=True) * inv_m
        var = jnp.sum(y * y, axis=0, keepdims=True) * inv_m - mean * mean
        var = jnp.maximum(var, 0.0)                             # cancellation guard
        scale = g_ref[...] * jax.lax.rsqrt(var + _EPS)
        shift = bt_ref[...] - mean * scale
        y = y * scale + shift
        return jnp.where(y > 0, y, _SLOPE * y)                  # LeakyReLU(0.2)

    # block 1: conv3x3 -> BN -> LeakyReLU
    y = bn_lrelu(conv3x3(w1_ref, cin1), g1_ref, bt1_ref)
    # feed block 2: overwrite the scratch interior (halo stays zero)
    pad_ref[:, 1:Hh + 1, 1:Wh + 1, :] = y.reshape(N, Hh, Wh, CP)
    # block 2: conv3x3 -> BN -> LeakyReLU
    y = bn_lrelu(conv3x3(w2_ref, cin2), g2_ref, bt2_ref)

    # lane-dense (CP = 128) output store; the wrapper slices off the channel padding.
    o_ref[...] = y.reshape(N, Hh, Wh, CP)


def _pack_weight(w, kp, cp):
    """(9, ci, co) conv weight -> (kp, cp) bf16 im2col weight, rows packed (tap, ci)."""
    k9, ci, co = w.shape
    wk = w.astype(jnp.float32).reshape(k9 * ci, co)
    out = jnp.zeros((kp, cp), jnp.float32).at[:k9 * ci, :co].set(wk)
    return out.astype(jnp.bfloat16)


def _pad_vec(v, cp):
    """(1, co) per-channel BN parameter -> (1, cp) f32, zero-padded."""
    co = v.shape[-1]
    return jnp.zeros((1, cp), jnp.float32).at[:, :co].set(v.astype(jnp.float32))


def down_conv(x_nchw, params, maxpool=True):
    """Pallas implementation of DownConv.forward.  x_nchw: (N, ni, H, W) float32."""
    w1, b1, g1, bt1, w2, b2, g2, bt2 = params
    del b1, b2  # conv biases cancel exactly under training-mode BatchNorm

    x = jnp.transpose(x_nchw, (0, 2, 3, 1)).astype(jnp.float32)       # -> NHWC
    N, H, W, ni = x.shape
    no = w1.shape[-1]
    CP = _round_up(max(ni, no), _LANES)                               # lane-dense channels

    if maxpool and (H % 2 or W % 2):        # PyTorch MaxPool2d(2) floors odd sizes
        H, W = 2 * (H // 2), 2 * (W // 2)
        x = x[:, :H, :W, :]

    # Lane-dense input: pad channels to the 128-lane width so the x DMA, the pooled
    # interior store and the tap reads are all dense / unmasked.
    if ni < CP:
        x = jnp.pad(x, ((0, 0), (0, 0), (0, 0), (0, CP - ni)))

    Hh, Wh = (H // 2, W // 2) if maxpool else (H, W)
    M = N * Hh * Wh

    Kp1 = _round_up(9 * ni, _LANES)
    Kp2 = _round_up(9 * no, _LANES)
    w1p, w2p = _pack_weight(w1, Kp1, CP), _pack_weight(w2, Kp2, CP)
    g1p, bt1p = _pad_vec(g1, CP), _pad_vec(bt1, CP)
    g2p, bt2p = _pad_vec(g2, CP), _pad_vec(bt2, CP)

    # VMEM budget: everything is resident in this single invocation (global BN stats
    # are needed twice mid-kernel).  Cap at 48 MiB so the kernel stays inside v7x's
    # 64 MiB VMEM; floor at 32 MiB (v5e's scoped default is only 16 MiB).
    est = 4 * (x.size + N * (Hh + 2) * (Wh + 2) * CP + N * Hh * Wh * CP) \
        + 2 * (w1p.size + w2p.size) + 4 * M * CP * 4 + 2 * M * max(Kp1, Kp2)
    vmem_bytes = int(min(48 * 1024 * 1024, max(32 * 1024 * 1024, 2 * est)))

    vmem = pl.BlockSpec(memory_space=pltpu.MemorySpace.VMEM)
    out_p = pl.pallas_call(
        functools.partial(_down_conv_kernel, do_pool=maxpool, cin1=ni, cin2=no),
        out_shape=jax.ShapeDtypeStruct((N, Hh, Wh, CP), jnp.float32),
        in_specs=[vmem] * 7,
        out_specs=vmem,
        scratch_shapes=[pltpu.VMEM((N, Hh + 2, Wh + 2, CP), jnp.float32)],  # padded acts
        compiler_params=pltpu.CompilerParams(vmem_limit_bytes=vmem_bytes),
    )(x, w1p, g1p, bt1p, w2p, g2p, bt2p)

    # NOTE: if DownConv blocks are chained, keep this padded-NHWC form between blocks
    # and slice/transpose once at the very end (avoids a padded HBM round trip per block).
    out = out_p[..., :no]                                             # drop channel padding
    return jnp.transpose(out, (0, 3, 1, 2))                           # -> NCHW


def init_params(key, ni, no):
    """Deterministic parameter init.  Conv weights kept in HWIO, folded to (9, I, O)."""
    ks = jax.random.split(key, 8)
    w1 = (0.1 * jax.random.normal(ks[0], (3, 3, ni, no), jnp.float32)).reshape(9, ni, no)
    b1 = 0.1 * jax.random.normal(ks[1], (1, no), jnp.float32)
    g1 = 1.0 + 0.1 * jax.random.normal(ks[2], (1, no), jnp.float32)
    bt1 = 0.1 * jax.random.normal(ks[3], (1, no), jnp.float32)
    w2 = (0.1 * jax.random.normal(ks[4], (3, 3, no, no), jnp.float32)).reshape(9, no, no)
    b2 = 0.1 * jax.random.normal(ks[5], (1, no), jnp.float32)
    g2 = 1.0 + 0.1 * jax.random.normal(ks[6], (1, no), jnp.float32)
    bt2 = 0.1 * jax.random.normal(ks[7], (1, no), jnp.float32)
    return (w1, b1, g1, bt1, w2, b2, g2, bt2)


def reference(x_nchw, params, maxpool=True):
    """Pure-JAX reference matching the PyTorch forward semantics (with conv biases)."""
    w1, b1, g1, bt1, w2, b2, g2, bt2 = params
    x = jnp.transpose(x_nchw, (0, 2, 3, 1)).astype(jnp.float32)
    if maxpool:
        x = jax.lax.reduce_window(x, -jnp.inf, jax.lax.max,
                                  (1, 2, 2, 1), (1, 2, 2, 1), 'VALID')

    def block(x, w, b, g, bt):
        c_in, c_out = w.shape[1], w.shape[2]
        y = jax.lax.conv_general_dilated(
            x, w.reshape(3, 3, c_in, c_out), (1, 1), 'SAME',
            dimension_numbers=('NHWC', 'HWIO', 'NHWC'))
        y = y + b.reshape(1, 1, 1, c_out)
        mean = jnp.mean(y, axis=(0, 1, 2), keepdims=True)
        var = jnp.mean((y - mean) ** 2, axis=(0, 1, 2), keepdims=True)
        y = (y - mean) / jnp.sqrt(var + _EPS) * g.reshape(1, 1, 1, c_out) \
            + bt.reshape(1, 1, 1, c_out)
        return jnp.where(y > 0, y, _SLOPE * y)

    y = block(x, w1, b1, g1, bt1)
    y = block(y, w2, b2, g2, bt2)
    return jnp.transpose(y, (0, 3, 1, 2))


if __name__ == "__main__":
    key = jax.random.PRNGKey(0)
    kx, kparam = jax.random.split(key)

    ni, no = 4, 8
    x = jax.random.normal(kx, (2, ni, 16, 16), jnp.float32)   # NCHW, like PyTorch
    params = init_params(kparam, ni, no)

    # tolerance sized for bf16 MXU operands with f32 accumulation (f32 path matched 2e-2)
    TOL = 5e-2

    # MaxPool2d(2) branch
    out = jax.block_until_ready(down_conv(x, params, maxpool=True))
    ref = reference(x, params, maxpool=True)
    assert out.shape == (2, no, 8, 8), out.shape
    assert jnp.allclose(out, ref, atol=TOL, rtol=TOL), \
        float(jnp.max(jnp.abs(out - ref)))

    # Identity branch (maxpool=False)
    out_id = jax.block_until_ready(down_conv(x, params, maxpool=False))
    ref_id = reference(x, params, maxpool=False)
    assert out_id.shape == (2, no, 16, 16), out_id.shape
    assert jnp.allclose(out_id, ref_id, atol=TOL, rtol=TOL), \
        float(jnp.max(jnp.abs(out_id - ref_id)))

    print("KERNEL_OK")
</pallas_src>

<mosaic_0001>
module attributes {stable_mosaic.version = 11 : i64} {
  func.func @_down_conv_kernel(%arg0: memref<2x16x16x128xf32, #tpu.memory_space<vmem>>, %arg1: memref<128x128xbf16, #tpu.memory_space<vmem>>, %arg2: memref<1x128xf32, #tpu.memory_space<vmem>>, %arg3: memref<1x128xf32, #tpu.memory_space<vmem>>, %arg4: memref<128x128xbf16, #tpu.memory_space<vmem>>, %arg5: memref<1x128xf32, #tpu.memory_space<vmem>>, %arg6: memref<1x128xf32, #tpu.memory_space<vmem>>, %arg7: memref<2x8x8x128xf32, #tpu.memory_space<vmem>>, %arg8: memref<2x10x10x128xf32, #tpu.memory_space<vmem>>) attributes {dimension_semantics = [], scalar_prefetch = 0 : i64, scratch_operands = 1 : i64, tpu.core_type = #tpu.core_type<tc>} {
    %cst = arith.constant 0.000000e+00 : f32
    %0 = vector.broadcast %cst : f32 to vector<2x1x10x128xf32>
    %cst_0 = arith.constant 0.000000e+00 : f32
    %1 = vector.broadcast %cst_0 : f32 to vector<2x10x1x128xf32>
    %c0 = arith.constant 0 : index
    %c0_1 = arith.constant 0 : index
    %c0_2 = arith.constant 0 : index
    %c0_3 = arith.constant 0 : index
    %2 = vector.load %arg8[%c0, %c0_1, %c0_2, %c0_3] : memref<2x10x10x128xf32, #tpu.memory_space<vmem>>, vector<2x1x10x128xf32>
    tpu.vector_store %arg8[%c0, %c0_1, %c0_2, %c0_3], %0 {strides = array<i32>} : memref<2x10x10x128xf32, #tpu.memory_space<vmem>>, vector<2x1x10x128xf32>,
    %c0_4 = arith.constant 0 : index
    %c9 = arith.constant 9 : index
    %c0_5 = arith.constant 0 : index
    %c0_6 = arith.constant 0 : index
    %3 = vector.load %arg8[%c0_4, %c9, %c0_5, %c0_6] : memref<2x10x10x128xf32, #tpu.memory_space<vmem>>, vector<2x1x10x128xf32>
    tpu.vector_store %arg8[%c0_4, %c9, %c0_5, %c0_6], %0 {strides = array<i32>} : memref<2x10x10x128xf32, #tpu.memory_space<vmem>>, vector<2x1x10x128xf32>,
    %c0_7 = arith.constant 0 : index
    %c0_8 = arith.constant 0 : index
    %c0_9 = arith.constant 0 : index
    %c0_10 = arith.constant 0 : index
    %4 = vector.load %arg8[%c0_7, %c0_8, %c0_9, %c0_10] : memref<2x10x10x128xf32, #tpu.memory_space<vmem>>, vector<2x10x1x128xf32>
    tpu.vector_store %arg8[%c0_7, %c0_8, %c0_9, %c0_10], %1 {strides = array<i32>} : memref<2x10x10x128xf32, #tpu.memory_space<vmem>>, vector<2x10x1x128xf32>,
    %c0_11 = arith.constant 0 : index
    %c0_12 = arith.constant 0 : index
    %c9_13 = arith.constant 9 : index
    %c0_14 = arith.constant 0 : index
    %5 = vector.load %arg8[%c0_11, %c0_12, %c9_13, %c0_14] : memref<2x10x10x128xf32, #tpu.memory_space<vmem>>, vector<2x10x1x128xf32>
    tpu.vector_store %arg8[%c0_11, %c0_12, %c9_13, %c0_14], %1 {strides = array<i32>} : memref<2x10x10x128xf32, #tpu.memory_space<vmem>>, vector<2x10x1x128xf32>,
    %c0_15 = arith.constant 0 : index
    %c0_16 = arith.constant 0 : index
    %c0_17 = arith.constant 0 : index
    %c0_18 = arith.constant 0 : index
    %6 = vector.load %arg0[%c0_15, %c0_16, %c0_17, %c0_18] : memref<2x16x16x128xf32, #tpu.memory_space<vmem>>, vector<2x16x16x128xf32>
    %7 = vector.shape_cast %6 : vector<2x16x16x128xf32> to vector<16x2x16x128xf32>
    %cst_19 = arith.constant dense<0xFF800000> : vector<16x16x128xf32>
    %8 = vector.multi_reduction <maximumf>, %7, %cst_19 [1] : vector<16x2x16x128xf32> to vector<16x16x128xf32>
    %9 = vector.shape_cast %8 : vector<16x16x128xf32> to vector<128x2x128xf32>
    %cst_20 = arith.constant dense<0xFF800000> : vector<128x128xf32>
    %10 = vector.multi_reduction <maximumf>, %9, %cst_20 [1] : vector<128x2x128xf32> to vector<128x128xf32>
    %11 = vector.shape_cast %10 : vector<128x128xf32> to vector<2x8x8x128xf32>
    %c0_21 = arith.constant 0 : index
    %c1 = arith.constant 1 : index
    %c1_22 = arith.constant 1 : index
    %c0_23 = arith.constant 0 : index
    %12 = vector.load %arg8[%c0_21, %c1, %c1_22, %c0_23] : memref<2x10x10x128xf32, #tpu.memory_space<vmem>>, vector<2x8x8x128xf32>
    tpu.vector_store %arg8[%c0_21, %c1, %c1_22, %c0_23], %11 {strides = array<i32>} : memref<2x10x10x128xf32, #tpu.memory_space<vmem>>, vector<2x8x8x128xf32>,
    %c0_24 = arith.constant 0 : index
    %c0_25 = arith.constant 0 : index
    %c0_26 = arith.constant 0 : index
    %c0_27 = arith.constant 0 : index
    %13 = vector.load %arg8[%c0_24, %c0_25, %c0_26, %c0_27] : memref<2x10x10x128xf32, #tpu.memory_space<vmem>>, vector<2x8x8x128xf32>
    %14 = vector.shape_cast %13 : vector<2x8x8x128xf32> to vector<128x128xf32>
    %15 = vector.extract_strided_slice %14 {offsets = [0, 0], sizes = [128, 4], strides = [1, 1]} : vector<128x128xf32> to vector<128x4xf32>
    %c0_28 = arith.constant 0 : index
    %c0_29 = arith.constant 0 : index
    %c1_30 = arith.constant 1 : index
    %c0_31 = arith.constant 0 : index
    %16 = vector.load %arg8[%c0_28, %c0_29, %c1_30, %c0_31] : memref<2x10x10x128xf32, #tpu.memory_space<vmem>>, vector<2x8x8x128xf32>
    %17 = vector.shape_cast %16 : vector<2x8x8x128xf32> to vector<128x128xf32>
    %18 = vector.extract_strided_slice %17 {offsets = [0, 0], sizes = [128, 4], strides = [1, 1]} : vector<128x128xf32> to vector<128x4xf32>
    %c0_32 = arith.constant 0 : index
    %c0_33 = arith.constant 0 : index
    %c2 = arith.constant 2 : index
    %c0_34 = arith.constant 0 : index
    %19 = vector.load %arg8[%c0_32, %c0_33, %c2, %c0_34] : memref<2x10x10x128xf32, #tpu.memory_space<vmem>>, vector<2x8x8x128xf32>
    %20 = vector.shape_cast %19 : vector<2x8x8x128xf32> to vector<128x128xf32>
    %21 = vector.extract_strided_slice %20 {offsets = [0, 0], sizes = [128, 4], strides = [1, 1]} : vector<128x128xf32> to vector<128x4xf32>
    %c0_35 = arith.constant 0 : index
    %c1_36 = arith.constant 1 : index
    %c0_37 = arith.constant 0 : index
    %c0_38 = arith.constant 0 : index
    %22 = vector.load %arg8[%c0_35, %c1_36, %c0_37, %c0_38] : memref<2x10x10x128xf32, #tpu.memory_space<vmem>>, vector<2x8x8x128xf32>
    %23 = vector.shape_cast %22 : vector<2x8x8x128xf32> to vector<128x128xf32>
    %24 = vector.extract_strided_slice %23 {offsets = [0, 0], sizes = [128, 4], strides = [1, 1]} : vector<128x128xf32> to vector<128x4xf32>
    %c0_39 = arith.constant 0 : index
    %c1_40 = arith.constant 1 : index
    %c1_41 = arith.constant 1 : index
    %c0_42 = arith.constant 0 : index
    %25 = vector.load %arg8[%c0_39, %c1_40, %c1_41, %c0_42] : memref<2x10x10x128xf32, #tpu.memory_space<vmem>>, vector<2x8x8x128xf32>
    %26 = vector.shape_cast %25 : vector<2x8x8x128xf32> to vector<128x128xf32>
    %27 = vector.extract_strided_slice %26 {offsets = [0, 0], sizes = [128, 4], strides = [1, 1]} : vector<128x128xf32> to vector<128x4xf32>
    %c0_43 = arith.constant 0 : index
    %c1_44 = arith.constant 1 : index
    %c2_45 = arith.constant 2 : index
    %c0_46 = arith.constant 0 : index
    %28 = vector.load %arg8[%c0_43, %c1_44, %c2_45, %c0_46] : memref<2x10x10x128xf32, #tpu.memory_space<vmem>>, vector<2x8x8x128xf32>
    %29 = vector.shape_cast %28 : vector<2x8x8x128xf32> to vector<128x128xf32>
    %30 = vector.extract_strided_slice %29 {offsets = [0, 0], sizes = [128, 4], strides = [1, 1]} : vector<128x128xf32> to vector<128x4xf32>
    %c0_47 = arith.constant 0 : index
    %c2_48 = arith.constant 2 : index
    %c0_49 = arith.constant 0 : index
    %c0_50 = arith.constant 0 : index
    %31 = vector.load %arg8[%c0_47, %c2_48, %c0_49, %c0_50] : memref<2x10x10x128xf32, #tpu.memory_space<vmem>>, vector<2x8x8x128xf32>
    %32 = vector.shape_cast %31 : vector<2x8x8x128xf32> to vector<128x128xf32>
    %33 = vector.extract_strided_slice %32 {offsets = [0, 0], sizes = [128, 4], strides = [1, 1]} : vector<128x128xf32> to vector<128x4xf32>
    %c0_51 = arith.constant 0 : index
    %c2_52 = arith.constant 2 : index
    %c1_53 = arith.constant 1 : index
    %c0_54 = arith.constant 0 : index
    %34 = vector.load %arg8[%c0_51, %c2_52, %c1_53, %c0_54] : memref<2x10x10x128xf32, #tpu.memory_space<vmem>>, vector<2x8x8x128xf32>
    %35 = vector.shape_cast %34 : vector<2x8x8x128xf32> to vector<128x128xf32>
    %36 = vector.extract_strided_slice %35 {offsets = [0, 0], sizes = [128, 4], strides = [1, 1]} : vector<128x128xf32> to vector<128x4xf32>
    %c0_55 = arith.constant 0 : index
    %c2_56 = arith.constant 2 : index
    %c2_57 = arith.constant 2 : index
    %c0_58 = arith.constant 0 : index
    %37 = vector.load %arg8[%c0_55, %c2_56, %c2_57, %c0_58] : memref<2x10x10x128xf32, #tpu.memory_space<vmem>>, vector<2x8x8x128xf32>
    %38 = vector.shape_cast %37 : vector<2x8x8x128xf32> to vector<128x128xf32>
    %39 = vector.extract_strided_slice %38 {offsets = [0, 0], sizes = [128, 4], strides = [1, 1]} : vector<128x128xf32> to vector<128x4xf32>
    %cst_59 = arith.constant 0.000000e+00 : f32
    %40 = vector.broadcast %cst_59 : f32 to vector<128x92xf32>
    %41 = tpu.concatenate %15, %18, %21, %24, %27, %30, %33, %36, %39, %40 in 1 : vector<128x4xf32>, vector<128x4xf32>, vector<128x4xf32>, vector<128x4xf32>, vector<128x4xf32>, vector<128x4xf32>, vector<128x4xf32>, vector<128x4xf32>, vector<128x4xf32>, vector<128x92xf32> -> vector<128x128xf32>
    %42 = arith.truncf %41 : vector<128x128xf32> to vector<128x128xbf16>
    %c0_60 = arith.constant 0 : index
    %c0_61 = arith.constant 0 : index
    %43 = vector.load %arg1[%c0_60, %c0_61] : memref<128x128xbf16, #tpu.memory_space<vmem>>, vector<128x128xbf16>
    %cst_62 = arith.constant dense<0.000000e+00> : vector<128x128xf32>
    %44 = tpu.matmul %42, %43, %cst_62 {dimension_numbers = #tpu.dot_dimension_numbers<[1], [0], [0], [1], [0, 0, 1, 1], [], []>} : vector<128x128xbf16>, vector<128x128xbf16>, vector<128x128xf32> -> vector<128x128xf32>
    %cst_63 = arith.constant dense<0.000000e+00> : vector<128xf32>
    %45 = vector.multi_reduction <add>, %44, %cst_63 [0] : vector<128x128xf32> to vector<128xf32>
    %46 = vector.shape_cast %45 : vector<128xf32> to vector<1x128xf32>
    %cst_64 = arith.constant 7.812500e-03 : f32
    %47 = vector.broadcast %cst_64 : f32 to vector<1x128xf32>
    %48 = arith.mulf %46, %47 : vector<1x128xf32>
    %49 = arith.mulf %44, %44 : vector<128x128xf32>
    %cst_65 = arith.constant dense<0.000000e+00> : vector<128xf32>
    %50 = vector.multi_reduction <add>, %49, %cst_65 [0] : vector<128x128xf32> to vector<128xf32>
    %51 = vector.shape_cast %50 : vector<128xf32> to vector<1x128xf32>
    %cst_66 = arith.constant 7.812500e-03 : f32
    %52 = vector.broadcast %cst_66 : f32 to vector<1x128xf32>
    %53 = arith.mulf %51, %52 : vector<1x128xf32>
    %54 = arith.mulf %48, %48 : vector<1x128xf32>
    %55 = arith.subf %53, %54 : vector<1x128xf32>
    %cst_67 = arith.constant 0.000000e+00 : f32
    %56 = vector.broadcast %cst_67 : f32 to vector<1x128xf32>
    %57 = arith.maximumf %55, %56 : vector<1x128xf32>
    %c0_68 = arith.constant 0 : index
    %c0_69 = arith.constant 0 : index
    %58 = vector.load %arg2[%c0_68, %c0_69] : memref<1x128xf32, #tpu.memory_space<vmem>>, vector<1x128xf32>
    %cst_70 = arith.constant 9.99999974E-6 : f32
    %59 = vector.broadcast %cst_70 : f32 to vector<1x128xf32>
    %60 = arith.addf %57, %59 : vector<1x128xf32>
    %61 = math.rsqrt %60 : vector<1x128xf32>
    %62 = arith.mulf %58, %61 : vector<1x128xf32>
    %c0_71 = arith.constant 0 : index
    %c0_72 = arith.constant 0 : index
    %63 = vector.load %arg3[%c0_71, %c0_72] : memref<1x128xf32, #tpu.memory_space<vmem>>, vector<1x128xf32>
    %64 = arith.mulf %48, %62 : vector<1x128xf32>
    %65 = arith.subf %63, %64 : vector<1x128xf32>
    %66 = vector.broadcast %62 : vector<1x128xf32> to vector<128x128xf32>
    %67 = arith.mulf %44, %66 : vector<128x128xf32>
    %68 = vector.broadcast %65 : vector<1x128xf32> to vector<128x128xf32>
    %69 = arith.addf %67, %68 : vector<128x128xf32>
    %cst_73 = arith.constant 0.000000e+00 : f32
    %70 = vector.broadcast %cst_73 : f32 to vector<128x128xf32>
    %71 = arith.cmpf ogt, %69, %70 : vector<128x128xf32>
    %cst_74 = arith.constant 2.000000e-01 : f32
    %72 = vector.broadcast %cst_74 : f32 to vector<128x128xf32>
    %73 = arith.mulf %72, %69 : vector<128x128xf32>
    %74 = arith.select %71, %69, %73 : vector<128x128xi1>, vector<128x128xf32>
    %75 = vector.shape_cast %74 : vector<128x128xf32> to vector<2x8x8x128xf32>
    %c0_75 = arith.constant 0 : index
    %c1_76 = arith.constant 1 : index
    %c1_77 = arith.constant 1 : index
    %c0_78 = arith.constant 0 : index
    %76 = vector.load %arg8[%c0_75, %c1_76, %c1_77, %c0_78] : memref<2x10x10x128xf32, #tpu.memory_space<vmem>>, vector<2x8x8x128xf32>
    tpu.vector_store %arg8[%c0_75, %c1_76, %c1_77, %c0_78], %75 {strides = array<i32>} : memref<2x10x10x128xf32, #tpu.memory_space<vmem>>, vector<2x8x8x128xf32>,
    %c0_79 = arith.constant 0 : index
    %c0_80 = arith.constant 0 : index
    %c0_81 = arith.constant 0 : index
    %c0_82 = arith.constant 0 : index
    %77 = vector.load %arg8[%c0_79, %c0_80, %c0_81, %c0_82] : memref<2x10x10x128xf32, #tpu.memory_space<vmem>>, vector<2x8x8x128xf32>
    %78 = vector.shape_cast %77 : vector<2x8x8x128xf32> to vector<128x128xf32>
    %79 = vector.extract_strided_slice %78 {offsets = [0, 0], sizes = [128, 8], strides = [1, 1]} : vector<128x128xf32> to vector<128x8xf32>
    %c0_83 = arith.constant 0 : index
    %c0_84 = arith.constant 0 : index
    %c1_85 = arith.constant 1 : index
    %c0_86 = arith.constant 0 : index
    %80 = vector.load %arg8[%c0_83, %c0_84, %c1_85, %c0_86] : memref<2x10x10x128xf32, #tpu.memory_space<vmem>>, vector<2x8x8x128xf32>
    %81 = vector.shape_cast %80 : vector<2x8x8x128xf32> to vector<128x128xf32>
    %82 = vector.extract_strided_slice %81 {offsets = [0, 0], sizes = [128, 8], strides = [1, 1]} : vector<128x128xf32> to vector<128x8xf32>
    %c0_87 = arith.constant 0 : index
    %c0_88 = arith.constant 0 : index
    %c2_89 = arith.constant 2 : index
    %c0_90 = arith.constant 0 : index
    %83 = vector.load %arg8[%c0_87, %c0_88, %c2_89, %c0_90] : memref<2x10x10x128xf32, #tpu.memory_space<vmem>>, vector<2x8x8x128xf32>
    %84 = vector.shape_cast %83 : vector<2x8x8x128xf32> to vector<128x128xf32>
    %85 = vector.extract_strided_slice %84 {offsets = [0, 0], sizes = [128, 8], strides = [1, 1]} : vector<128x128xf32> to vector<128x8xf32>
    %c0_91 = arith.constant 0 : index
    %c1_92 = arith.constant 1 : index
    %c0_93 = arith.constant 0 : index
    %c0_94 = arith.constant 0 : index
    %86 = vector.load %arg8[%c0_91, %c1_92, %c0_93, %c0_94] : memref<2x10x10x128xf32, #tpu.memory_space<vmem>>, vector<2x8x8x128xf32>
    %87 = vector.shape_cast %86 : vector<2x8x8x128xf32> to vector<128x128xf32>
    %88 = vector.extract_strided_slice %87 {offsets = [0, 0], sizes = [128, 8], strides = [1, 1]} : vector<128x128xf32> to vector<128x8xf32>
    %c0_95 = arith.constant 0 : index
    %c1_96 = arith.constant 1 : index
    %c1_97 = arith.constant 1 : index
    %c0_98 = arith.constant 0 : index
    %89 = vector.load %arg8[%c0_95, %c1_96, %c1_97, %c0_98] : memref<2x10x10x128xf32, #tpu.memory_space<vmem>>, vector<2x8x8x128xf32>
    %90 = vector.shape_cast %89 : vector<2x8x8x128xf32> to vector<128x128xf32>
    %91 = vector.extract_strided_slice %90 {offsets = [0, 0], sizes = [128, 8], strides = [1, 1]} : vector<128x128xf32> to vector<128x8xf32>
    %c0_99 = arith.constant 0 : index
    %c1_100 = arith.constant 1 : index
    %c2_101 = arith.constant 2 : index
    %c0_102 = arith.constant 0 : index
    %92 = vector.load %arg8[%c0_99, %c1_100, %c2_101, %c0_102] : memref<2x10x10x128xf32, #tpu.memory_space<vmem>>, vector<2x8x8x128xf32>
    %93 = vector.shape_cast %92 : vector<2x8x8x128xf32> to vector<128x128xf32>
    %94 = vector.extract_strided_slice %93 {offsets = [0, 0], sizes = [128, 8], strides = [1, 1]} : vector<128x128xf32> to vector<128x8xf32>
    %c0_103 = arith.constant 0 : index
    %c2_104 = arith.constant 2 : index
    %c0_105 = arith.constant 0 : index
    %c0_106 = arith.constant 0 : index
    %95 = vector.load %arg8[%c0_103, %c2_104, %c0_105, %c0_106] : memref<2x10x10x128xf32, #tpu.memory_space<vmem>>, vector<2x8x8x128xf32>
    %96 = vector.shape_cast %95 : vector<2x8x8x128xf32> to vector<128x128xf32>
    %97 = vector.extract_strided_slice %96 {offsets = [0, 0], sizes = [128, 8], strides = [1, 1]} : vector<128x128xf32> to vector<128x8xf32>
    %c0_107 = arith.constant 0 : index
    %c2_108 = arith.constant 2 : index
    %c1_109 = arith.constant 1 : index
    %c0_110 = arith.constant 0 : index
    %98 = vector.load %arg8[%c0_107, %c2_108, %c1_109, %c0_110] : memref<2x10x10x128xf32, #tpu.memory_space<vmem>>, vector<2x8x8x128xf32>
    %99 = vector.shape_cast %98 : vector<2x8x8x128xf32> to vector<128x128xf32>
    %100 = vector.extract_strided_slice %99 {offsets = [0, 0], sizes = [128, 8], strides = [1, 1]} : vector<128x128xf32> to vector<128x8xf32>
    %c0_111 = arith.constant 0 : index
    %c2_112 = arith.constant 2 : index
    %c2_113 = arith.constant 2 : index
    %c0_114 = arith.constant 0 : index
    %101 = vector.load %arg8[%c0_111, %c2_112, %c2_113, %c0_114] : memref<2x10x10x128xf32, #tpu.memory_space<vmem>>, vector<2x8x8x128xf32>
    %102 = vector.shape_cast %101 : vector<2x8x8x128xf32> to vector<128x128xf32>
    %103 = vector.extract_strided_slice %102 {offsets = [0, 0], sizes = [128, 8], strides = [1, 1]} : vector<128x128xf32> to vector<128x8xf32>
    %cst_115 = arith.constant 0.000000e+00 : f32
    %104 = vector.broadcast %cst_115 : f32 to vector<128x56xf32>
    %105 = tpu.concatenate %79, %82, %85, %88, %91, %94, %97, %100, %103, %104 in 1 : vector<128x8xf32>, vector<128x8xf32>, vector<128x8xf32>, vector<128x8xf32>, vector<128x8xf32>, vector<128x8xf32>, vector<128x8xf32>, vector<128x8xf32>, vector<128x8xf32>, vector<128x56xf32> -> vector<128x128xf32>
    %106 = arith.truncf %105 : vector<128x128xf32> to vector<128x128xbf16>
    %c0_116 = arith.constant 0 : index
    %c0_117 = arith.constant 0 : index
    %107 = vector.load %arg4[%c0_116, %c0_117] : memref<128x128xbf16, #tpu.memory_space<vmem>>, vector<128x128xbf16>
    %cst_118 = arith.constant dense<0.000000e+00> : vector<128x128xf32>
    %108 = tpu.matmul %106, %107, %cst_118 {dimension_numbers = #tpu.dot_dimension_numbers<[1], [0], [0], [1], [0, 0, 1, 1], [], []>} : vector<128x128xbf16>, vector<128x128xbf16>, vector<128x128xf32> -> vector<128x128xf32>
    %cst_119 = arith.constant dense<0.000000e+00> : vector<128xf32>
    %109 = vector.multi_reduction <add>, %108, %cst_119 [0] : vector<128x128xf32> to vector<128xf32>
    %110 = vector.shape_cast %109 : vector<128xf32> to vector<1x128xf32>
    %cst_120 = arith.constant 7.812500e-03 : f32
    %111 = vector.broadcast %cst_120 : f32 to vector<1x128xf32>
    %112 = arith.mulf %110, %111 : vector<1x128xf32>
    %113 = arith.mulf %108, %108 : vector<128x128xf32>
    %cst_121 = arith.constant dense<0.000000e+00> : vector<128xf32>
    %114 = vector.multi_reduction <add>, %113, %cst_121 [0] : vector<128x128xf32> to vector<128xf32>
    %115 = vector.shape_cast %114 : vector<128xf32> to vector<1x128xf32>
    %cst_122 = arith.constant 7.812500e-03 : f32
    %116 = vector.broadcast %cst_122 : f32 to vector<1x128xf32>
    %117 = arith.mulf %115, %116 : vector<1x128xf32>
    %118 = arith.mulf %112, %112 : vector<1x128xf32>
    %119 = arith.subf %117, %118 : vector<1x128xf32>
    %cst_123 = arith.constant 0.000000e+00 : f32
    %120 = vector.broadcast %cst_123 : f32 to vector<1x128xf32>
    %121 = arith.maximumf %119, %120 : vector<1x128xf32>
    %c0_124 = arith.constant 0 : index
    %c0_125 = arith.constant 0 : index
    %122 = vector.load %arg5[%c0_124, %c0_125] : memref<1x128xf32, #tpu.memory_space<vmem>>, vector<1x128xf32>
    %cst_126 = arith.constant 9.99999974E-6 : f32
    %123 = vector.broadcast %cst_126 : f32 to vector<1x128xf32>
    %124 = arith.addf %121, %123 : vector<1x128xf32>
    %125 = math.rsqrt %124 : vector<1x128xf32>
    %126 = arith.mulf %122, %125 : vector<1x128xf32>
    %c0_127 = arith.constant 0 : index
    %c0_128 = arith.constant 0 : index
    %127 = vector.load %arg6[%c0_127, %c0_128] : memref<1x128xf32, #tpu.memory_space<vmem>>, vector<1x128xf32>
    %128 = arith.mulf %112, %126 : vector<1x128xf32>
    %129 = arith.subf %127, %128 : vector<1x128xf32>
    %130 = vector.broadcast %126 : vector<1x128xf32> to vector<128x128xf32>
    %131 = arith.mulf %108, %130 : vector<128x128xf32>
    %132 = vector.broadcast %129 : vector<1x128xf32> to vector<128x128xf32>
    %133 = arith.addf %131, %132 : vector<128x128xf32>
    %cst_129 = arith.constant 0.000000e+00 : f32
    %134 = vector.broadcast %cst_129 : f32 to vector<128x128xf32>
    %135 = arith.cmpf ogt, %133, %134 : vector<128x128xf32>
    %cst_130 = arith.constant 2.000000e-01 : f32
    %136 = vector.broadcast %cst_130 : f32 to vector<128x128xf32>
    %137 = arith.mulf %136, %133 : vector<128x128xf32>
    %138 = arith.select %135, %133, %137 : vector<128x128xi1>, vector<128x128xf32>
    %139 = vector.shape_cast %138 : vector<128x128xf32> to vector<2x8x8x128xf32>
    %c0_131 = arith.constant 0 : index
    %c0_132 = arith.constant 0 : index
    %c0_133 = arith.constant 0 : index
    %c0_134 = arith.constant 0 : index
    %140 = vector.load %arg7[%c0_131, %c0_132, %c0_133, %c0_134] : memref<2x8x8x128xf32, #tpu.memory_space<vmem>>, vector<2x8x8x128xf32>
    tpu.vector_store %arg7[%c0_131, %c0_132, %c0_133, %c0_134], %139 {strides = array<i32>} : memref<2x8x8x128xf32, #tpu.memory_space<vmem>>, vector<2x8x8x128xf32>,
    return
  }
}

</mosaic_0001>

<llo_original>
// kernel: tpu_custom_call.1
$region0: #{tpu_custom_call.1}
  #allocation0 [shape = 'u32[]', space=smem, size = 0x4, offset = 0x4, fixed_abs, tag = 'smem constant byte address 0x4 - core index']
  #allocation1 [shape = 'u32[144,128]{1,0:T(1,128)}', space=vmem, size = 0x12000, scoped, tag = 'internal scratch']
  #allocation2 [shape = 'f32[2,10,10,128]{3,2,1,0:T(8,128)}', space=vmem, size = 0x28000, scoped, tag = 'scratch operand']
  %s0 = inlined_call_operand.hbm [shape: f32[2,16,16,128], index: 0, kind: input, shape index: {}]
  %s1 = inlined_call_operand.hbm [shape: bf16[128,128], index: 1, kind: input, shape index: {}]
  %s2 = inlined_call_operand.vmem [shape: f32[1,128], index: 2, kind: input, shape index: {}]
  %s3 = inlined_call_operand.vmem [shape: f32[1,128], index: 3, kind: input, shape index: {}]
  %s4 = inlined_call_operand.hbm [shape: bf16[128,128], index: 4, kind: input, shape index: {}]
  %s5 = inlined_call_operand.vmem [shape: f32[1,128], index: 5, kind: input, shape index: {}]
  %s6 = inlined_call_operand.vmem [shape: f32[1,128], index: 6, kind: input, shape index: {}]
  %s7 = inlined_call_operand.hbm [shape: f32[2,8,8,128], index: 7, kind: output, shape index: {}]
  %s8 = sld [smem:[#allocation0]]
  $region50: #{tpu_custom_call.1} parent=0
    _
  %s10 = ssub.s32 1, %s8
  %s11 = scalar_select 0, %s10, %s8
  $region1: #{tpu_custom_call.1} parent=0
    #allocation3 [shape = 'u8[262144]{0}', space=vmem, size = 0x40000, scoped, tag = 'input window, operand 0, single buffered']
    #allocation4 [shape = 's32[1]{0}', space=sflag, size = 0x4, scoped, tag = 'scoped memory for tpu_custom_call.1']
    #allocation5 [shape = 's32[1]{0}', space=sflag, size = 0x4, scoped, tag = 'scoped memory for tpu_custom_call.1']
    #allocation6 [shape = 'u8[32768]{0}', space=vmem, size = 0x8000, scoped, tag = 'input window, operand 1, single buffered']
    #allocation7 [shape = 's32[1]{0}', space=sflag, size = 0x4, scoped, tag = 'scoped memory for tpu_custom_call.1']
    #allocation8 [shape = 'u8[32768]{0}', space=vmem, size = 0x8000, scoped, tag = 'input window, operand 4, single buffered']
    #allocation9 [shape = 'u8[65536]{0}', space=vmem, size = 0x10000, scoped, tag = 'output window, operand 0, single buffered']
    %12 = vsyncpa [#allocation4], 0
    %13 = vsyncpa [#allocation7], 0
    %14 = vsyncpa [#allocation5], 0
    // Predicated region
    $region2: #{tpu_custom_call.1} parent=1 // pred_check
      _
    $region3: #{tpu_custom_call.1} parent=1 // pred_check_branch
      %16 = sbr.rel (0) target = $region5
    $region4: #{tpu_custom_call.1} parent=1 // pred_region
      %s18 = ssub.s32 8192, 8192
      %19 = vsyncadd [#allocation4], %s18
      %s20 = sshll.u32 [#allocation3], 4
      %s21 = int_to_ptr.vmem [resolvable:$true] %s20
      %26 = dma.hbm_to_vmem [thread:$0]  %s0, 8192, %s21, [#allocation4], 128, 128, 8
    $region5: #{tpu_custom_call.1} parent=1 // pred_fallthru
      _
    // Predicated region
    $region6: #{tpu_custom_call.1} parent=1 // pred_check
      _
    $region7: #{tpu_custom_call.1} parent=1 // pred_check_branch
      %28 = sbr.rel (0) target = $region9
    $region8: #{tpu_custom_call.1} parent=1 // pred_region
      %s30 = ssub.s32 1024, 1024
      %31 = vsyncadd [#allocation7], %s30
      %s32 = sshll.u32 [#allocation6], 4
      %s33 = int_to_ptr.vmem [resolvable:$true] %s32
      %38 = dma.hbm_to_vmem [thread:$0]  %s1, 1024, %s33, [#allocation7], 64, 64, 4
    $region9: #{tpu_custom_call.1} parent=1 // pred_fallthru
      _
    // Predicated region
    $region10: #{tpu_custom_call.1} parent=1 // pred_check
      _
    $region11: #{tpu_custom_call.1} parent=1 // pred_check_branch
      %40 = sbr.rel (0) target = $region13
    $region12: #{tpu_custom_call.1} parent=1 // pred_region
      _
    $region13: #{tpu_custom_call.1} parent=1 // pred_fallthru
      _
    // Predicated region
    $region14: #{tpu_custom_call.1} parent=1 // pred_check
      _
    $region15: #{tpu_custom_call.1} parent=1 // pred_check_branch
      %42 = sbr.rel (0) target = $region17
    $region16: #{tpu_custom_call.1} parent=1 // pred_region
      _
    $region17: #{tpu_custom_call.1} parent=1 // pred_fallthru
      _
    // Predicated region
    $region18: #{tpu_custom_call.1} parent=1 // pred_check
      _
    $region19: #{tpu_custom_call.1} parent=1 // pred_check_branch
      %44 = sbr.rel (0) target = $region21
    $region20: #{tpu_custom_call.1} parent=1 // pred_region
      %s46 = ssub.s32 1024, 1024
      %47 = vsyncadd [#allocation7], %s46
      %s48 = sshll.u32 [#allocation8], 4
      %s49 = int_to_ptr.vmem [resolvable:$true] %s48
      %54 = dma.hbm_to_vmem [thread:$0]  %s4, 1024, %s49, [#allocation7], 64, 64, 4
    $region21: #{tpu_custom_call.1} parent=1 // pred_fallthru
      _
    // Predicated region
    $region22: #{tpu_custom_call.1} parent=1 // pred_check
      _
    $region23: #{tpu_custom_call.1} parent=1 // pred_check_branch
      %56 = sbr.rel (0) target = $region25
    $region24: #{tpu_custom_call.1} parent=1 // pred_region
      _
    $region25: #{tpu_custom_call.1} parent=1 // pred_fallthru
      _
    // Predicated region
    $region26: #{tpu_custom_call.1} parent=1 // pred_check
      _
    $region27: #{tpu_custom_call.1} parent=1 // pred_check_branch
      %58 = sbr.rel (0) target = $region29
    $region28: #{tpu_custom_call.1} parent=1 // pred_region
      _
    $region29: #{tpu_custom_call.1} parent=1 // pred_fallthru
      _
    // Predicated region
    $region30: #{tpu_custom_call.1} parent=1 // pred_check
      _
    $region31: #{tpu_custom_call.1} parent=1 // pred_check_branch
      %60 = sbr.rel (0) target = $region33
    $region32: #{tpu_custom_call.1} parent=1 // pred_region
      %61 = dma.done [#allocation4], 8192
    $region33: #{tpu_custom_call.1} parent=1 // pred_fallthru
      _
    // Predicated region
    $region34: #{tpu_custom_call.1} parent=1 // pred_check
      _
    $region35: #{tpu_custom_call.1} parent=1 // pred_check_branch
      %63 = sbr.rel (0) target = $region37
    $region36: #{tpu_custom_call.1} parent=1 // pred_region
      %64 = dma.done [#allocation7], 1024
    $region37: #{tpu_custom_call.1} parent=1 // pred_fallthru
      _
    // Predicated region
    $region38: #{tpu_custom_call.1} parent=1 // pred_check
      _
    $region39: #{tpu_custom_call.1} parent=1 // pred_check_branch
      %66 = sbr.rel (0) target = $region41
    $region40: #{tpu_custom_call.1} parent=1 // pred_region
      %67 = dma.done [#allocation7], 1024
    $region41: #{tpu_custom_call.1} parent=1 // pred_fallthru
      _
    %69 = vst [vmem:[#allocation2] sm:$0xff] 0.0
    %70 = vst [vmem:[#allocation2 + $0x8] sm:$0x3] 0.0
    %71 = vst [vmem:[#allocation2 + $0xa0] sm:$0xff] 0.0
    %72 = vst [vmem:[#allocation2 + $0xa8] sm:$0x3] 0.0
    %s73 = scalar_lea.vmem [#allocation2], 144
    %74 = vst [vmem:[%s73] sm:$0xff] 0.0
    %75 = vst [vmem:[%s73 + $0x8] sm:$0x3] 0.0
    %76 = vst [vmem:[%s73 + $0xa0] sm:$0xff] 0.0
    %77 = vst [vmem:[%s73 + $0xa8] sm:$0x3] 0.0
    %78 = vst [vmem:[#allocation2] sm:$0x1] 0.0
    %79 = vst [vmem:[#allocation2 + $0x10] sm:$0x1] 0.0
    %80 = vst [vmem:[#allocation2 + $0x20] sm:$0x1] 0.0
    %81 = vst [vmem:[#allocation2 + $0x30] sm:$0x1] 0.0
    %82 = vst [vmem:[#allocation2 + $0x40] sm:$0x1] 0.0
    %83 = vst [vmem:[#allocation2 + $0x50] sm:$0x1] 0.0
    %84 = vst [vmem:[#allocation2 + $0x60] sm:$0x1] 0.0
    %85 = vst [vmem:[#allocation2 + $0x70] sm:$0x1] 0.0
    %86 = vst [vmem:[#allocation2 + $0x80] sm:$0x1] 0.0
    %87 = vst [vmem:[#allocation2 + $0x90] sm:$0x1] 0.0
    %88 = vst [vmem:[#allocation2 + $0xa0] sm:$0x1] 0.0
    %89 = vst [vmem:[#allocation2 + $0xb0] sm:$0x1] 0.0
    %90 = vst [vmem:[#allocation2 + $0xc0] sm:$0x1] 0.0
    %91 = vst [vmem:[#allocation2 + $0xd0] sm:$0x1] 0.0
    %92 = vst [vmem:[#allocation2 + $0xe0] sm:$0x1] 0.0
    %93 = vst [vmem:[#allocation2 + $0xf0] sm:$0x1] 0.0
    %94 = vst [vmem:[#allocation2 + $0x100] sm:$0x1] 0.0
    %95 = vst [vmem:[#allocation2 + $0x110] sm:$0x1] 0.0
    %96 = vst [vmem:[#allocation2 + $0x120] sm:$0x1] 0.0
    %97 = vst [vmem:[#allocation2 + $0x130] sm:$0x1] 0.0
    %98 = vst [vmem:[#allocation2 + $0x9] sm:$0x1] 0.0
    %99 = vst [vmem:[#allocation2 + $0x19] sm:$0x1] 0.0
    %100 = vst [vmem:[#allocation2 + $0x29] sm:$0x1] 0.0
    %101 = vst [vmem:[#allocation2 + $0x39] sm:$0x1] 0.0
    %102 = vst [vmem:[#allocation2 + $0x49] sm:$0x1] 0.0
    %103 = vst [vmem:[#allocation2 + $0x59] sm:$0x1] 0.0
    %104 = vst [vmem:[#allocation2 + $0x69] sm:$0x1] 0.0
    %105 = vst [vmem:[#allocation2 + $0x79] sm:$0x1] 0.0
    %106 = vst [vmem:[#allocation2 + $0x89] sm:$0x1] 0.0
    %107 = vst [vmem:[#allocation2 + $0x99] sm:$0x1] 0.0
    %108 = vst [vmem:[#allocation2 + $0xa9] sm:$0x1] 0.0
    %109 = vst [vmem:[#allocation2 + $0xb9] sm:$0x1] 0.0
    %110 = vst [vmem:[#allocation2 + $0xc9] sm:$0x1] 0.0
    %111 = vst [vmem:[#allocation2 + $0xd9] sm:$0x1] 0.0
    %112 = vst [vmem:[#allocation2 + $0xe9] sm:$0x1] 0.0
    %113 = vst [vmem:[#allocation2 + $0xf9] sm:$0x1] 0.0
    %114 = vst [vmem:[#allocation2 + $0x109] sm:$0x1] 0.0
    %115 = vst [vmem:[#allocation2 + $0x119] sm:$0x1] 0.0
    %116 = vst [vmem:[#allocation2 + $0x129] sm:$0x1] 0.0
    %117 = vst [vmem:[#allocation2 + $0x139] sm:$0x1] 0.0
    %v118 = vld [vmem:[#allocation3] sm:$0xff]
    %v119 = vld [vmem:[#allocation3 + $0x8] sm:$0xff]
    %v120 = vld [vmem:[#allocation3 + $0x10] sm:$0xff]
    %v121 = vld [vmem:[#allocation3 + $0x18] sm:$0xff]
    %v122 = vld [vmem:[#allocation3 + $0x20] sm:$0xff]
    %v123 = vld [vmem:[#allocation3 + $0x28] sm:$0xff]
    %v124 = vld [vmem:[#allocation3 + $0x30] sm:$0xff]
    %v125 = vld [vmem:[#allocation3 + $0x38] sm:$0xff]
    %v126 = vld [vmem:[#allocation3 + $0x40] sm:$0xff]
    %v127 = vld [vmem:[#allocation3 + $0x48] sm:$0xff]
    %v128 = vld [vmem:[#allocation3 + $0x50] sm:$0xff]
    %v129 = vld [vmem:[#allocation3 + $0x58] sm:$0xff]
    %v130 = vld [vmem:[#allocation3 + $0x60] sm:$0xff]
    %v131 = vld [vmem:[#allocation3 + $0x68] sm:$0xff]
    %v132 = vld [vmem:[#allocation3 + $0x70] sm:$0xff]
    %v133 = vld [vmem:[#allocation3 + $0x78] sm:$0xff]
    %v134 = vld [vmem:[#allocation3 + $0x80] sm:$0xff]
    %v135 = vld [vmem:[#allocation3 + $0x88] sm:$0xff]
    %v136 = vld [vmem:[#allocation3 + $0x90] sm:$0xff]
    %v137 = vld [vmem:[#allocation3 + $0x98] sm:$0xff]
    %v138 = vld [vmem:[#allocation3 + $0xa0] sm:$0xff]
    %v139 = vld [vmem:[#allocation3 + $0xa8] sm:$0xff]
    %v140 = vld [vmem:[#allocation3 + $0xb0] sm:$0xff]
    %v141 = vld [vmem:[#allocation3 + $0xb8] sm:$0xff]
    %v142 = vld [vmem:[#allocation3 + $0xc0] sm:$0xff]
    %v143 = vld [vmem:[#allocation3 + $0xc8] sm:$0xff]
    %v144 = vld [vmem:[#allocation3 + $0xd0] sm:$0xff]
    %v145 = vld [vmem:[#allocation3 + $0xd8] sm:$0xff]
    %v146 = vld [vmem:[#allocation3 + $0xe0] sm:$0xff]
    %v147 = vld [vmem:[#allocation3 + $0xe8] sm:$0xff]
    %v148 = vld [vmem:[#allocation3 + $0xf0] sm:$0xff]
    %v149 = vld [vmem:[#allocation3 + $0xf8] sm:$0xff]
    %v150 = vld [vmem:[#allocation3 + $0x100] sm:$0xff]
    %v151 = vld [vmem:[#allocation3 + $0x108] sm:$0xff]
    %v152 = vld [vmem:[#allocation3 + $0x110] sm:$0xff]
    %v153 = vld [vmem:[#allocation3 + $0x118] sm:$0xff]
    %v154 = vld [vmem:[#allocation3 + $0x120] sm:$0xff]
    %v155 = vld [vmem:[#allocation3 + $0x128] sm:$0xff]
    %v156 = vld [vmem:[#allocation3 + $0x130] sm:$0xff]
    %v157 = vld [vmem:[#allocation3 + $0x138] sm:$0xff]
    %v158 = vld [vmem:[#allocation3 + $0x140] sm:$0xff]
    %v159 = vld [vmem:[#allocation3 + $0x148] sm:$0xff]
    %v160 = vld [vmem:[#allocation3 + $0x150] sm:$0xff]
    %v161 = vld [vmem:[#allocation3 + $0x158] sm:$0xff]
    %v162 = vld [vmem:[#allocation3 + $0x160] sm:$0xff]
    %v163 = vld [vmem:[#allocation3 + $0x168] sm:$0xff]
    %v164 = vld [vmem:[#allocation3 + $0x170] sm:$0xff]
    %v165 = vld [vmem:[#allocation3 + $0x178] sm:$0xff]
    %v166 = vld [vmem:[#allocation3 + $0x180] sm:$0xff]
    %v167 = vld [vmem:[#allocation3 + $0x188] sm:$0xff]
    %v168 = vld [vmem:[#allocation3 + $0x190] sm:$0xff]
    %v169 = vld [vmem:[#allocation3 + $0x198] sm:$0xff]
    %v170 = vld [vmem:[#allocation3 + $0x1a0] sm:$0xff]
    %v171 = vld [vmem:[#allocation3 + $0x1a8] sm:$0xff]
    %v172 = vld [vmem:[#allocation3 + $0x1b0] sm:$0xff]
    %v173 = vld [vmem:[#allocation3 + $0x1b8] sm:$0xff]
    %v174 = vld [vmem:[#allocation3 + $0x1c0] sm:$0xff]
    %v175 = vld [vmem:[#allocation3 + $0x1c8] sm:$0xff]
    %v176 = vld [vmem:[#allocation3 + $0x1d0] sm:$0xff]
    %v177 = vld [vmem:[#allocation3 + $0x1d8] sm:$0xff]
    %v178 = vld [vmem:[#allocation3 + $0x1e0] sm:$0xff]
    %v179 = vld [vmem:[#allocation3 + $0x1e8] sm:$0xff]
    %v180 = vld [vmem:[#allocation3 + $0x1f0] sm:$0xff]
    %v181 = vld [vmem:[#allocation3 + $0x1f8] sm:$0xff]
    %v182 = vmax.f32 %v118, %v120
    %v183 = vmax.f32 %v119, %v121
    %v184 = vmax.f32 %v122, %v124
    %v185 = vmax.f32 %v123, %v125
    %v186 = vmax.f32 %v126, %v128
    %v187 = vmax.f32 %v127, %v129
    %v188 = vmax.f32 %v130, %v132
    %v189 = vmax.f32 %v131, %v133
    %v190 = vmax.f32 %v134, %v136
    %v191 = vmax.f32 %v135, %v137
    %v192 = vmax.f32 %v138, %v140
    %v193 = vmax.f32 %v139, %v141
    %v194 = vmax.f32 %v142, %v144
    %v195 = vmax.f32 %v143, %v145
    %v196 = vmax.f32 %v146, %v148
    %v197 = vmax.f32 %v147, %v149
    %v198 = vmax.f32 %v150, %v152
    %v199 = vmax.f32 %v151, %v153
    %v200 = vmax.f32 %v154, %v156
    %v201 = vmax.f32 %v155, %v157
    %v202 = vmax.f32 %v158, %v160
    %v203 = vmax.f32 %v159, %v161
    %v204 = vmax.f32 %v162, %v164
    %v205 = vmax.f32 %v163, %v165
    %v206 = vmax.f32 %v166, %v168
    %v207 = vmax.f32 %v167, %v169
    %v208 = vmax.f32 %v170, %v172
    %v209 = vmax.f32 %v171, %v173
    %v210 = vmax.f32 %v174, %v176
    %v211 = vmax.f32 %v175, %v177
    %v212 = vmax.f32 %v178, %v180
    %v213 = vmax.f32 %v179, %v181
    %v246 = vcombine.high %v182, %v182
    %v248 = vunpack.c.l.s4 1983009808
    %v249 = vunpack.c.0.s8 %v248
    %v250 = vlaneseq
    %v251 = vshrl.u32 %v250, 7
    %v252 = vsub.s32 %v249, %v251
    %v253 = vrot.slane %v182, %v252
    %v255 = vunpack.c.l.s4 1983009808
    %v256 = vunpack.c.0.s8 %v255
    %v257 = vlaneseq
    %v258 = vshrl.u32 %v257, 7
    %v259 = vsub.s32 %v256, %v258
    %v260 = vrot.slane %v246, %v259
    %v261 = vcombine.high %v253, %v253
    %v262 = vcombine.high %v260, %v260
    %v263 = vcombine.high %v183, %v183
    %v265 = vunpack.c.l.s4 1983009808
    %v266 = vunpack.c.0.s8 %v265
    %v267 = vlaneseq
    %v268 = vshrl.u32 %v267, 7
    %v269 = vsub.s32 %v266, %v268
    %v270 = vrot.slane %v183, %v269
    %v272 = vunpack.c.l.s4 1983009808
    %v273 = vunpack.c.0.s8 %v272
    %v274 = vlaneseq
    %v275 = vshrl.u32 %v274, 7
    %v276 = vsub.s32 %v273, %v275
    %v277 = vrot.slane %v263, %v276
    %v278 = vcombine.high %v270, %v270
    %v279 = vcombine.high %v277, %v277
    %v280 = vcombine.high %v184, %v184
    %v282 = vunpack.c.l.s4 1983009808
    %v283 = vunpack.c.0.s8 %v282
    %v284 = vlaneseq
    %v285 = vshrl.u32 %v284, 7
    %v286 = vsub.s32 %v283, %v285
    %v287 = vrot.slane %v184, %v286
    %v289 = vunpack.c.l.s4 1983009808
    %v290 = vunpack.c.0.s8 %v289
    %v291 = vlaneseq
    %v292 = vshrl.u32 %v291, 7
    %v293 = vsub.s32 %v290, %v292
    %v294 = vrot.slane %v280, %v293
    %v295 = vcombine.high %v287, %v287
    %v296 = vcombine.high %v294, %v294
    %v297 = vcombine.high %v185, %v185
    %v299 = vunpack.c.l.s4 1983009808
    %v300 = vunpack.c.0.s8 %v299
    %v301 = vlaneseq
    %v302 = vshrl.u32 %v301, 7
    %v303 = vsub.s32 %v300, %v302
    %v304 = vrot.slane %v185, %v303
    %v306 = vunpack.c.l.s4 1983009808
    %v307 = vunpack.c.0.s8 %v306
    %v308 = vlaneseq
    %v309 = vshrl.u32 %v308, 7
    %v310 = vsub.s32 %v307, %v309
    %v311 = vrot.slane %v297, %v310
    %v312 = vcombine.high %v304, %v304
    %v313 = vcombine.high %v311, %v311
    %v314 = vcombine.high %v186, %v186
    %v316 = vunpack.c.l.s4 1983009808
    %v317 = vunpack.c.0.s8 %v316
    %v318 = vlaneseq
    %v319 = vshrl.u32 %v318, 7
    %v320 = vsub.s32 %v317, %v319
    %v321 = vrot.slane %v186, %v320
    %v323 = vunpack.c.l.s4 1983009808
    %v324 = vunpack.c.0.s8 %v323
    %v325 = vlaneseq
    %v326 = vshrl.u32 %v325, 7
    %v327 = vsub.s32 %v324, %v326
    %v328 = vrot.slane %v314, %v327
    %v329 = vcombine.high %v321, %v321
    %v330 = vcombine.high %v328, %v328
    %v331 = vcombine.high %v187, %v187
    %v333 = vunpack.c.l.s4 1983009808
    %v334 = vunpack.c.0.s8 %v333
    %v335 = vlaneseq
    %v336 = vshrl.u32 %v335, 7
    %v337 = vsub.s32 %v334, %v336
    %v338 = vrot.slane %v187, %v337
    %v340 = vunpack.c.l.s4 1983009808
    %v341 = vunpack.c.0.s8 %v340
    %v342 = vlaneseq
    %v343 = vshrl.u32 %v342, 7
    %v344 = vsub.s32 %v341, %v343
    %v345 = vrot.slane %v331, %v344
    %v346 = vcombine.high %v338, %v338
    %v347 = vcombine.high %v345, %v345
    %v348 = vcombine.high %v188, %v188
    %v350 = vunpack.c.l.s4 1983009808
    %v351 = vunpack.c.0.s8 %v350
    %v352 = vlaneseq
    %v353 = vshrl.u32 %v352, 7
    %v354 = vsub.s32 %v351, %v353
    %v355 = vrot.slane %v188, %v354
    %v357 = vunpack.c.l.s4 1983009808
    %v358 = vunpack.c.0.s8 %v357
    %v359 = vlaneseq
    %v360 = vshrl.u32 %v359, 7
    %v361 = vsub.s32 %v358, %v360
    %v362 = vrot.slane %v348, %v361
    %v363 = vcombine.high %v355, %v355
    %v364 = vcombine.high %v362, %v362
    %v365 = vcombine.high %v189, %v189
    %v367 = vunpack.c.l.s4 1983009808
    %v368 = vunpack.c.0.s8 %v367
    %v369 = vlaneseq
    %v370 = vshrl.u32 %v369, 7
    %v371 = vsub.s32 %v368, %v370
    %v372 = vrot.slane %v189, %v371
    %v374 = vunpack.c.l.s4 1983009808
    %v375 = vunpack.c.0.s8 %v374
    %v376 = vlaneseq
    %v377 = vshrl.u32 %v376, 7
    %v378 = vsub.s32 %v375, %v377
    %v379 = vrot.slane %v365, %v378
    %v380 = vcombine.high %v372, %v372
    %v381 = vcombine.high %v379, %v379
    %v382 = vcombine.high %v190, %v190
    %v384 = vunpack.c.l.s4 1983009808
    %v385 = vunpack.c.0.s8 %v384
    %v386 = vlaneseq
    %v387 = vshrl.u32 %v386, 7
    %v388 = vsub.s32 %v385, %v387
    %v389 = vrot.slane %v190, %v388
    %v391 = vunpack.c.l.s4 1983009808
    %v392 = vunpack.c.0.s8 %v391
    %v393 = vlaneseq
    %v394 = vshrl.u32 %v393, 7
    %v395 = vsub.s32 %v392, %v394
    %v396 = vrot.slane %v382, %v395
    %v397 = vcombine.high %v389, %v389
    %v398 = vcombine.high %v396, %v396
    %v399 = vcombine.high %v191, %v191
    %v401 = vunpack.c.l.s4 1983009808
    %v402 = vunpack.c.0.s8 %v401
    %v403 = vlaneseq
    %v404 = vshrl.u32 %v403, 7
    %v405 = vsub.s32 %v402, %v404
    %v406 = vrot.slane %v191, %v405
    %v408 = vunpack.c.l.s4 1983009808
    %v409 = vunpack.c.0.s8 %v408
    %v410 = vlaneseq
    %v411 = vshrl.u32 %v410, 7
    %v412 = vsub.s32 %v409, %v411
    %v413 = vrot.slane %v399, %v412
    %v414 = vcombine.high %v406, %v406
    %v415 = vcombine.high %v413, %v413
    %v416 = vcombine.high %v192, %v192
    %v418 = vunpack.c.l.s4 1983009808
    %v419 = vunpack.c.0.s8 %v418
    %v420 = vlaneseq
    %v421 = vshrl.u32 %v420, 7
    %v422 = vsub.s32 %v419, %v421
    %v423 = vrot.slane %v192, %v422
    %v425 = vunpack.c.l.s4 1983009808
    %v426 = vunpack.c.0.s8 %v425
    %v427 = vlaneseq
    %v428 = vshrl.u32 %v427, 7
    %v429 = vsub.s32 %v426, %v428
    %v430 = vrot.slane %v416, %v429
    %v431 = vcombine.high %v423, %v423
    %v432 = vcombine.high %v430, %v430
    %v433 = vcombine.high %v193, %v193
    %v435 = vunpack.c.l.s4 1983009808
    %v436 = vunpack.c.0.s8 %v435
    %v437 = vlaneseq
    %v438 = vshrl.u32 %v437, 7
    %v439 = vsub.s32 %v436, %v438
    %v440 = vrot.slane %v193, %v439
    %v442 = vunpack.c.l.s4 1983009808
    %v443 = vunpack.c.0.s8 %v442
    %v444 = vlaneseq
    %v445 = vshrl.u32 %v444, 7
    %v446 = vsub.s32 %v443, %v445
    %v447 = vrot.slane %v433, %v446
    %v448 = vcombine.high %v440, %v440
    %v449 = vcombine.high %v447, %v447
    %v450 = vcombine.high %v194, %v194
    %v452 = vunpack.c.l.s4 1983009808
    %v453 = vunpack.c.0.s8 %v452
    %v454 = vlaneseq
    %v455 = vshrl.u32 %v454, 7
    %v456 = vsub.s32 %v453, %v455
    %v457 = vrot.slane %v194, %v456
    %v459 = vunpack.c.l.s4 1983009808
    %v460 = vunpack.c.0.s8 %v459
    %v461 = vlaneseq
    %v462 = vshrl.u32 %v461, 7
    %v463 = vsub.s32 %v460, %v462
    %v464 = vrot.slane %v450, %v463
    %v465 = vcombine.high %v457, %v457
    %v466 = vcombine.high %v464, %v464
    %v467 = vcombine.high %v195, %v195
    %v469 = vunpack.c.l.s4 1983009808
    %v470 = vunpack.c.0.s8 %v469
    %v471 = vlaneseq
    %v472 = vshrl.u32 %v471, 7
    %v473 = vsub.s32 %v470, %v472
    %v474 = vrot.slane %v195, %v473
    %v476 = vunpack.c.l.s4 1983009808
    %v477 = vunpack.c.0.s8 %v476
    %v478 = vlaneseq
    %v479 = vshrl.u32 %v478, 7
    %v480 = vsub.s32 %v477, %v479
    %v481 = vrot.slane %v467, %v480
    %v482 = vcombine.high %v474, %v474
    %v483 = vcombine.high %v481, %v481
    %v484 = vcombine.high %v196, %v196
    %v486 = vunpack.c.l.s4 1983009808
    %v487 = vunpack.c.0.s8 %v486
    %v488 = vlaneseq
    %v489 = vshrl.u32 %v488, 7
    %v490 = vsub.s32 %v487, %v489
    %v491 = vrot.slane %v196, %v490
    %v493 = vunpack.c.l.s4 1983009808
    %v494 = vunpack.c.0.s8 %v493
    %v495 = vlaneseq
    %v496 = vshrl.u32 %v495, 7
    %v497 = vsub.s32 %v494, %v496
    %v498 = vrot.slane %v484, %v497
    %v499 = vcombine.high %v491, %v491
    %v500 = vcombine.high %v498, %v498
    %v501 = vcombine.high %v197, %v197
    %v503 = vunpack.c.l.s4 1983009808
    %v504 = vunpack.c.0.s8 %v503
    %v505 = vlaneseq
    %v506 = vshrl.u32 %v505, 7
    %v507 = vsub.s32 %v504, %v506
    %v508 = vrot.slane %v197, %v507
    %v510 = vunpack.c.l.s4 1983009808
    %v511 = vunpack.c.0.s8 %v510
    %v512 = vlaneseq
    %v513 = vshrl.u32 %v512, 7
    %v514 = vsub.s32 %v511, %v513
    %v515 = vrot.slane %v501, %v514
    %v516 = vcombine.high %v508, %v508
    %v517 = vcombine.high %v515, %v515
    %v518 = vcombine.high %v198, %v198
    %v520 = vunpack.c.l.s4 1983009808
    %v521 = vunpack.c.0.s8 %v520
    %v522 = vlaneseq
    %v523 = vshrl.u32 %v522, 7
    %v524 = vsub.s32 %v521, %v523
    %v525 = vrot.slane %v198, %v524
    %v527 = vunpack.c.l.s4 1983009808
    %v528 = vunpack.c.0.s8 %v527
    %v529 = vlaneseq
    %v530 = vshrl.u32 %v529, 7
    %v531 = vsub.s32 %v528, %v530
    %v532 = vrot.slane %v518, %v531
    %v533 = vcombine.high %v525, %v525
    %v534 = vcombine.high %v532, %v532
    %v535 = vcombine.high %v199, %v199
    %v537 = vunpack.c.l.s4 1983009808
    %v538 = vunpack.c.0.s8 %v537
    %v539 = vlaneseq
    %v540 = vshrl.u32 %v539, 7
    %v541 = vsub.s32 %v538, %v540
    %v542 = vrot.slane %v199, %v541
    %v544 = vunpack.c.l.s4 1983009808
    %v545 = vunpack.c.0.s8 %v544
    %v546 = vlaneseq
    %v547 = vshrl.u32 %v546, 7
    %v548 = vsub.s32 %v545, %v547
    %v549 = vrot.slane %v535, %v548
    %v550 = vcombine.high %v542, %v542
    %v551 = vcombine.high %v549, %v549
    %v552 = vcombine.high %v200, %v200
    %v554 = vunpack.c.l.s4 1983009808
    %v555 = vunpack.c.0.s8 %v554
    %v556 = vlaneseq
    %v557 = vshrl.u32 %v556, 7
    %v558 = vsub.s32 %v555, %v557
    %v559 = vrot.slane %v200, %v558
    %v561 = vunpack.c.l.s4 1983009808
    %v562 = vunpack.c.0.s8 %v561
    %v563 = vlaneseq
    %v564 = vshrl.u32 %v563, 7
    %v565 = vsub.s32 %v562, %v564
    %v566 = vrot.slane %v552, %v565
    %v567 = vcombine.high %v559, %v559
    %v568 = vcombine.high %v566, %v566
    %v569 = vcombine.high %v201, %v201
    %v571 = vunpack.c.l.s4 1983009808
    %v572 = vunpack.c.0.s8 %v571
    %v573 = vlaneseq
    %v574 = vshrl.u32 %v573, 7
    %v575 = vsub.s32 %v572, %v574
    %v576 = vrot.slane %v201, %v575
    %v578 = vunpack.c.l.s4 1983009808
    %v579 = vunpack.c.0.s8 %v578
    %v580 = vlaneseq
    %v581 = vshrl.u32 %v580, 7
    %v582 = vsub.s32 %v579, %v581
    %v583 = vrot.slane %v569, %v582
    %v584 = vcombine.high %v576, %v576
    %v585 = vcombine.high %v583, %v583
    %v586 = vcombine.high %v202, %v202
    %v588 = vunpack.c.l.s4 1983009808
    %v589 = vunpack.c.0.s8 %v588
    %v590 = vlaneseq
    %v591 = vshrl.u32 %v590, 7
    %v592 = vsub.s32 %v589, %v591
    %v593 = vrot.slane %v202, %v592
    %v595 = vunpack.c.l.s4 1983009808
    %v596 = vunpack.c.0.s8 %v595
    %v597 = vlaneseq
    %v598 = vshrl.u32 %v597, 7
    %v599 = vsub.s32 %v596, %v598
    %v600 = vrot.slane %v586, %v599
    %v601 = vcombine.high %v593, %v593
    %v602 = vcombine.high %v600, %v600
    %v603 = vcombine.high %v203, %v203
    %v605 = vunpack.c.l.s4 1983009808
    %v606 = vunpack.c.0.s8 %v605
    %v607 = vlaneseq
    %v608 = vshrl.u32 %v607, 7
    %v609 = vsub.s32 %v606, %v608
    %v610 = vrot.slane %v203, %v609
    %v612 = vunpack.c.l.s4 1983009808
    %v613 = vunpack.c.0.s8 %v612
    %v614 = vlaneseq
    %v615 = vshrl.u32 %v614, 7
    %v616 = vsub.s32 %v613, %v615
    %v617 = vrot.slane %v603, %v616
    %v618 = vcombine.high %v610, %v610
    %v619 = vcombine.high %v617, %v617
    %v620 = vcombine.high %v204, %v204
    %v622 = vunpack.c.l.s4 1983009808
    %v623 = vunpack.c.0.s8 %v622
    %v624 = vlaneseq
    %v625 = vshrl.u32 %v624, 7
    %v626 = vsub.s32 %v623, %v625
    %v627 = vrot.slane %v204, %v626
    %v629 = vunpack.c.l.s4 1983009808
    %v630 = vunpack.c.0.s8 %v629
    %v631 = vlaneseq
    %v632 = vshrl.u32 %v631, 7
    %v633 = vsub.s32 %v630, %v632
    %v634 = vrot.slane %v620, %v633
    %v635 = vcombine.high %v627, %v627
    %v636 = vcombine.high %v634, %v634
    %v637 = vcombine.high %v205, %v205
    %v639 = vunpack.c.l.s4 1983009808
    %v640 = vunpack.c.0.s8 %v639
    %v641 = vlaneseq
    %v642 = vshrl.u32 %v641, 7
    %v643 = vsub.s32 %v640, %v642
    %v644 = vrot.slane %v205, %v643
    %v646 = vunpack.c.l.s4 1983009808
    %v647 = vunpack.c.0.s8 %v646
    %v648 = vlaneseq
    %v649 = vshrl.u32 %v648, 7
    %v650 = vsub.s32 %v647, %v649
    %v651 = vrot.slane %v637, %v650
    %v652 = vcombine.high %v644, %v644
    %v653 = vcombine.high %v651, %v651
    %v654 = vcombine.high %v206, %v206
    %v656 = vunpack.c.l.s4 1983009808
    %v657 = vunpack.c.0.s8 %v656
    %v658 = vlaneseq
    %v659 = vshrl.u32 %v658, 7
    %v660 = vsub.s32 %v657, %v659
    %v661 = vrot.slane %v206, %v660
    %v663 = vunpack.c.l.s4 1983009808
    %v664 = vunpack.c.0.s8 %v663
    %v665 = vlaneseq
    %v666 = vshrl.u32 %v665, 7
    %v667 = vsub.s32 %v664, %v666
    %v668 = vrot.slane %v654, %v667
    %v669 = vcombine.high %v661, %v661
    %v670 = vcombine.high %v668, %v668
    %v671 = vcombine.high %v207, %v207
    %v673 = vunpack.c.l.s4 1983009808
    %v674 = vunpack.c.0.s8 %v673
    %v675 = vlaneseq
    %v676 = vshrl.u32 %v675, 7
    %v677 = vsub.s32 %v674, %v676
    %v678 = vrot.slane %v207, %v677
    %v680 = vunpack.c.l.s4 1983009808
    %v681 = vunpack.c.0.s8 %v680
    %v682 = vlaneseq
    %v683 = vshrl.u32 %v682, 7
    %v684 = vsub.s32 %v681, %v683
    %v685 = vrot.slane %v671, %v684
    %v686 = vcombine.high %v678, %v678
    %v687 = vcombine.high %v685, %v685
    %v688 = vcombine.high %v208, %v208
    %v690 = vunpack.c.l.s4 1983009808
    %v691 = vunpack.c.0.s8 %v690
    %v692 = vlaneseq
    %v693 = vshrl.u32 %v692, 7
    %v694 = vsub.s32 %v691, %v693
    %v695 = vrot.slane %v208, %v694
    %v697 = vunpack.c.l.s4 1983009808
    %v698 = vunpack.c.0.s8 %v697
    %v699 = vlaneseq
    %v700 = vshrl.u32 %v699, 7
    %v701 = vsub.s32 %v698, %v700
    %v702 = vrot.slane %v688, %v701
    %v703 = vcombine.high %v695, %v695
    %v704 = vcombine.high %v702, %v702
    %v705 = vcombine.high %v209, %v209
    %v707 = vunpack.c.l.s4 1983009808
    %v708 = vunpack.c.0.s8 %v707
    %v709 = vlaneseq
    %v710 = vshrl.u32 %v709, 7
    %v711 = vsub.s32 %v708, %v710
    %v712 = vrot.slane %v209, %v711
    %v714 = vunpack.c.l.s4 1983009808
    %v715 = vunpack.c.0.s8 %v714
    %v716 = vlaneseq
    %v717 = vshrl.u32 %v716, 7
    %v718 = vsub.s32 %v715, %v717
    %v719 = vrot.slane %v705, %v718
    %v720 = vcombine.high %v712, %v712
    %v721 = vcombine.high %v719, %v719
    %v722 = vcombine.high %v210, %v210
    %v724 = vunpack.c.l.s4 1983009808
    %v725 = vunpack.c.0.s8 %v724
    %v726 = vlaneseq
    %v727 = vshrl.u32 %v726, 7
    %v728 = vsub.s32 %v725, %v727
    %v729 = vrot.slane %v210, %v728
    %v731 = vunpack.c.l.s4 1983009808
    %v732 = vunpack.c.0.s8 %v731
    %v733 = vlaneseq
    %v734 = vshrl.u32 %v733, 7
    %v735 = vsub.s32 %v732, %v734
    %v736 = vrot.slane %v722, %v735
    %v737 = vcombine.high %v729, %v729
    %v738 = vcombine.high %v736, %v736
    %v739 = vcombine.high %v211, %v211
    %v741 = vunpack.c.l.s4 1983009808
    %v742 = vunpack.c.0.s8 %v741
    %v743 = vlaneseq
    %v744 = vshrl.u32 %v743, 7
    %v745 = vsub.s32 %v742, %v744
    %v746 = vrot.slane %v211, %v745
    %v748 = vunpack.c.l.s4 1983009808
    %v749 = vunpack.c.0.s8 %v748
    %v750 = vlaneseq
    %v751 = vshrl.u32 %v750, 7
    %v752 = vsub.s32 %v749, %v751
    %v753 = vrot.slane %v739, %v752
    %v754 = vcombine.high %v746, %v746
    %v755 = vcombine.high %v753, %v753
    %v756 = vcombine.high %v212, %v212
    %v758 = vunpack.c.l.s4 1983009808
    %v759 = vunpack.c.0.s8 %v758
    %v760 = vlaneseq
    %v761 = vshrl.u32 %v760, 7
    %v762 = vsub.s32 %v759, %v761
    %v763 = vrot.slane %v212, %v762
    %v765 = vunpack.c.l.s4 1983009808
    %v766 = vunpack.c.0.s8 %v765
    %v767 = vlaneseq
    %v768 = vshrl.u32 %v767, 7
    %v769 = vsub.s32 %v766, %v768
    %v770 = vrot.slane %v756, %v769
    %v771 = vcombine.high %v763, %v763
    %v772 = vcombine.high %v770, %v770
    %v773 = vcombine.high %v213, %v213
    %v775 = vunpack.c.l.s4 1983009808
    %v776 = vunpack.c.0.s8 %v775
    %v777 = vlaneseq
    %v778 = vshrl.u32 %v777, 7
    %v779 = vsub.s32 %v776, %v778
    %v780 = vrot.slane %v213, %v779
    %v782 = vunpack.c.l.s4 1983009808
    %v783 = vunpack.c.0.s8 %v782
    %v784 = vlaneseq
    %v785 = vshrl.u32 %v784, 7
    %v786 = vsub.s32 %v783, %v785
    %v787 = vrot.slane %v773, %v786
    %v788 = vcombine.high %v780, %v780
    %v789 = vcombine.high %v787, %v787
    %vm918 = vcmask 1041408
    %v919 = vsel %vm918, %v253, -inf
    %v920 = vrot.slane %v919, 4
    %v921 = vmax.f32 %v919, %v920
    %v922 = vrot.slane %v921, 2
    %v923 = vmax.f32 %v921, %v922
    %v924 = vrot.slane %v923, 1
    %v925 = vmax.f32 %v923, %v924
    %v926 = vsel %vm918, %v261, -inf
    %v927 = vrot.slane %v926, 4
    %v928 = vmax.f32 %v926, %v927
    %v929 = vrot.slane %v928, 2
    %v930 = vmax.f32 %v928, %v929
    %v931 = vrot.slane %v930, 1
    %v932 = vmax.f32 %v930, %v931
    %v933 = vsel %vm918, %v260, -inf
    %v934 = vrot.slane %v933, 4
    %v935 = vmax.f32 %v933, %v934
    %v936 = vrot.slane %v935, 2
    %v937 = vmax.f32 %v935, %v936
    %v938 = vrot.slane %v937, 1
    %v939 = vmax.f32 %v937, %v938
    %v940 = vsel %vm918, %v262, -inf
    %v941 = vrot.slane %v940, 4
    %v942 = vmax.f32 %v940, %v941
    %v943 = vrot.slane %v942, 2
    %v944 = vmax.f32 %v942, %v943
    %v945 = vrot.slane %v944, 1
    %v946 = vmax.f32 %v944, %v945
    %v947 = vsel %vm918, %v270, -inf
    %v948 = vrot.slane %v947, 4
    %v949 = vmax.f32 %v947, %v948
    %v950 = vrot.slane %v949, 2
    %v951 = vmax.f32 %v949, %v950
    %v952 = vrot.slane %v951, 1
    %v953 = vmax.f32 %v951, %v952
    %v954 = vsel %vm918, %v278, -inf
    %v955 = vrot.slane %v954, 4
    %v956 = vmax.f32 %v954, %v955
    %v957 = vrot.slane %v956, 2
    %v958 = vmax.f32 %v956, %v957
    %v959 = vrot.slane %v958, 1
    %v960 = vmax.f32 %v958, %v959
    %v961 = vsel %vm918, %v277, -inf
    %v962 = vrot.slane %v961, 4
    %v963 = vmax.f32 %v961, %v962
    %v964 = vrot.slane %v963, 2
    %v965 = vmax.f32 %v963, %v964
    %v966 = vrot.slane %v965, 1
    %v967 = vmax.f32 %v965, %v966
    %v968 = vsel %vm918, %v279, -inf
    %v969 = vrot.slane %v968, 4
    %v970 = vmax.f32 %v968, %v969
    %v971 = vrot.slane %v970, 2
    %v972 = vmax.f32 %v970, %v971
    %v973 = vrot.slane %v972, 1
    %v974 = vmax.f32 %v972, %v973
    %v975 = vsel %vm918, %v287, -inf
    %v976 = vrot.slane %v975, 4
    %v977 = vmax.f32 %v975, %v976
    %v978 = vrot.slane %v977, 2
    %v979 = vmax.f32 %v977, %v978
    %v980 = vrot.slane %v979, 1
    %v981 = vmax.f32 %v979, %v980
    %v982 = vsel %vm918, %v295, -inf
    %v983 = vrot.slane %v982, 4
    %v984 = vmax.f32 %v982, %v983
    %v985 = vrot.slane %v984, 2
    %v986 = vmax.f32 %v984, %v985
    %v987 = vrot.slane %v986, 1
    %v988 = vmax.f32 %v986, %v987
    %v989 = vsel %vm918, %v294, -inf
    %v990 = vrot.slane %v989, 4
    %v991 = vmax.f32 %v989, %v990
    %v992 = vrot.slane %v991, 2
    %v993 = vmax.f32 %v991, %v992
    %v994 = vrot.slane %v993, 1
    %v995 = vmax.f32 %v993, %v994
    %v996 = vsel %vm918, %v296, -inf
    %v997 = vrot.slane %v996, 4
    %v998 = vmax.f32 %v996, %v997
    %v999 = vrot.slane %v998, 2
    %v1000 = vmax.f32 %v998, %v999
    %v1001 = vrot.slane %v1000, 1
    %v1002 = vmax.f32 %v1000, %v1001
    %v1003 = vsel %vm918, %v304, -inf
    %v1004 = vrot.slane %v1003, 4
    %v1005 = vmax.f32 %v1003, %v1004
    %v1006 = vrot.slane %v1005, 2
    %v1007 = vmax.f32 %v1005, %v1006
    %v1008 = vrot.slane %v1007, 1
    %v1009 = vmax.f32 %v1007, %v1008
    %v1010 = vsel %vm918, %v312, -inf
    %v1011 = vrot.slane %v1010, 4
    %v1012 = vmax.f32 %v1010, %v1011
    %v1013 = vrot.slane %v1012, 2
    %v1014 = vmax.f32 %v1012, %v1013
    %v1015 = vrot.slane %v1014, 1
    %v1016 = vmax.f32 %v1014, %v1015
    %v1017 = vsel %vm918, %v311, -inf
    %v1018 = vrot.slane %v1017, 4
    %v1019 = vmax.f32 %v1017, %v1018
    %v1020 = vrot.slane %v1019, 2
    %v1021 = vmax.f32 %v1019, %v1020
    %v1022 = vrot.slane %v1021, 1
    %v1023 = vmax.f32 %v1021, %v1022
    %v1024 = vsel %vm918, %v313, -inf
    %v1025 = vrot.slane %v1024, 4
    %v1026 = vmax.f32 %v1024, %v1025
    %v1027 = vrot.slane %v1026, 2
    %v1028 = vmax.f32 %v1026, %v1027
    %v1029 = vrot.slane %v1028, 1
    %v1030 = vmax.f32 %v1028, %v1029
    %v1031 = vsel %vm918, %v321, -inf
    %v1032 = vrot.slane %v1031, 4
    %v1033 = vmax.f32 %v1031, %v1032
    %v1034 = vrot.slane %v1033, 2
    %v1035 = vmax.f32 %v1033, %v1034
    %v1036 = vrot.slane %v1035, 1
    %v1037 = vmax.f32 %v1035, %v1036
    %v1038 = vsel %vm918, %v329, -inf
    %v1039 = vrot.slane %v1038, 4
    %v1040 = vmax.f32 %v1038, %v1039
    %v1041 = vrot.slane %v1040, 2
    %v1042 = vmax.f32 %v1040, %v1041
    %v1043 = vrot.slane %v1042, 1
    %v1044 = vmax.f32 %v1042, %v1043
    %v1045 = vsel %vm918, %v328, -inf
    %v1046 = vrot.slane %v1045, 4
    %v1047 = vmax.f32 %v1045, %v1046
    %v1048 = vrot.slane %v1047, 2
    %v1049 = vmax.f32 %v1047, %v1048
    %v1050 = vrot.slane %v1049, 1
    %v1051 = vmax.f32 %v1049, %v1050
    %v1052 = vsel %vm918, %v330, -inf
    %v1053 = vrot.slane %v1052, 4
    %v1054 = vmax.f32 %v1052, %v1053
    %v1055 = vrot.slane %v1054, 2
    %v1056 = vmax.f32 %v1054, %v1055
    %v1057 = vrot.slane %v1056, 1
    %v1058 = vmax.f32 %v1056, %v1057
    %v1059 = vsel %vm918, %v338, -inf
    %v1060 = vrot.slane %v1059, 4
    %v1061 = vmax.f32 %v1059, %v1060
    %v1062 = vrot.slane %v1061, 2
    %v1063 = vmax.f32 %v1061, %v1062
    %v1064 = vrot.slane %v1063, 1
    %v1065 = vmax.f32 %v1063, %v1064
    %v1066 = vsel %vm918, %v346, -inf
    %v1067 = vrot.slane %v1066, 4
    %v1068 = vmax.f32 %v1066, %v1067
    %v1069 = vrot.slane %v1068, 2
    %v1070 = vmax.f32 %v1068, %v1069
    %v1071 = vrot.slane %v1070, 1
    %v1072 = vmax.f32 %v1070, %v1071
    %v1073 = vsel %vm918, %v345, -inf
    %v1074 = vrot.slane %v1073, 4
    %v1075 = vmax.f32 %v1073, %v1074
    %v1076 = vrot.slane %v1075, 2
    %v1077 = vmax.f32 %v1075, %v1076
    %v1078 = vrot.slane %v1077, 1
    %v1079 = vmax.f32 %v1077, %v1078
    %v1080 = vsel %vm918, %v347, -inf
    %v1081 = vrot.slane %v1080, 4
    %v1082 = vmax.f32 %v1080, %v1081
    %v1083 = vrot.slane %v1082, 2
    %v1084 = vmax.f32 %v1082, %v1083
    %v1085 = vrot.slane %v1084, 1
    %v1086 = vmax.f32 %v1084, %v1085
    %v1087 = vsel %vm918, %v355, -inf
    %v1088 = vrot.slane %v1087, 4
    %v1089 = vmax.f32 %v1087, %v1088
    %v1090 = vrot.slane %v1089, 2
    %v1091 = vmax.f32 %v1089, %v1090
    %v1092 = vrot.slane %v1091, 1
    %v1093 = vmax.f32 %v1091, %v1092
    %v1094 = vsel %vm918, %v363, -inf
    %v1095 = vrot.slane %v1094, 4
    %v1096 = vmax.f32 %v1094, %v1095
    %v1097 = vrot.slane %v1096, 2
    %v1098 = vmax.f32 %v1096, %v1097
    %v1099 = vrot.slane %v1098, 1
    %v1100 = vmax.f32 %v1098, %v1099
    %v1101 = vsel %vm918, %v362, -inf
    %v1102 = vrot.slane %v1101, 4
    %v1103 = vmax.f32 %v1101, %v1102
    %v1104 = vrot.slane %v1103, 2
    %v1105 = vmax.f32 %v1103, %v1104
    %v1106 = vrot.slane %v1105, 1
    %v1107 = vmax.f32 %v1105, %v1106
    %v1108 = vsel %vm918, %v364, -inf
    %v1109 = vrot.slane %v1108, 4
    %v1110 = vmax.f32 %v1108, %v1109
    %v1111 = vrot.slane %v1110, 2
    %v1112 = vmax.f32 %v1110, %v1111
    %v1113 = vrot.slane %v1112, 1
    %v1114 = vmax.f32 %v1112, %v1113
    %v1115 = vsel %vm918, %v372, -inf
    %v1116 = vrot.slane %v1115, 4
    %v1117 = vmax.f32 %v1115, %v1116
    %v1118 = vrot.slane %v1117, 2
    %v1119 = vmax.f32 %v1117, %v1118
    %v1120 = vrot.slane %v1119, 1
    %v1121 = vmax.f32 %v1119, %v1120
    %v1122 = vsel %vm918, %v380, -inf
    %v1123 = vrot.slane %v1122, 4
    %v1124 = vmax.f32 %v1122, %v1123
    %v1125 = vrot.slane %v1124, 2
    %v1126 = vmax.f32 %v1124, %v1125
    %v1127 = vrot.slane %v1126, 1
    %v1128 = vmax.f32 %v1126, %v1127
    %v1129 = vsel %vm918, %v379, -inf
    %v1130 = vrot.slane %v1129, 4
    %v1131 = vmax.f32 %v1129, %v1130
    %v1132 = vrot.slane %v1131, 2
    %v1133 = vmax.f32 %v1131, %v1132
    %v1134 = vrot.slane %v1133, 1
    %v1135 = vmax.f32 %v1133, %v1134
    %v1136 = vsel %vm918, %v381, -inf
    %v1137 = vrot.slane %v1136, 4
    %v1138 = vmax.f32 %v1136, %v1137
    %v1139 = vrot.slane %v1138, 2
    %v1140 = vmax.f32 %v1138, %v1139
    %v1141 = vrot.slane %v1140, 1
    %v1142 = vmax.f32 %v1140, %v1141
    %v1143 = vsel %vm918, %v389, -inf
    %v1144 = vrot.slane %v1143, 4
    %v1145 = vmax.f32 %v1143, %v1144
    %v1146 = vrot.slane %v1145, 2
    %v1147 = vmax.f32 %v1145, %v1146
    %v1148 = vrot.slane %v1147, 1
    %v1149 = vmax.f32 %v1147, %v1148
    %v1150 = vsel %vm918, %v397, -inf
    %v1151 = vrot.slane %v1150, 4
    %v1152 = vmax.f32 %v1150, %v1151
    %v1153 = vrot.slane %v1152, 2
    %v1154 = vmax.f32 %v1152, %v1153
    %v1155 = vrot.slane %v1154, 1
    %v1156 = vmax.f32 %v1154, %v1155
    %v1157 = vsel %vm918, %v396, -inf
    %v1158 = vrot.slane %v1157, 4
    %v1159 = vmax.f32 %v1157, %v1158
    %v1160 = vrot.slane %v1159, 2
    %v1161 = vmax.f32 %v1159, %v1160
    %v1162 = vrot.slane %v1161, 1
    %v1163 = vmax.f32 %v1161, %v1162
    %v1164 = vsel %vm918, %v398, -inf
    %v1165 = vrot.slane %v1164, 4
    %v1166 = vmax.f32 %v1164, %v1165
    %v1167 = vrot.slane %v1166, 2
    %v1168 = vmax.f32 %v1166, %v1167
    %v1169 = vrot.slane %v1168, 1
    %v1170 = vmax.f32 %v1168, %v1169
    %v1171 = vsel %vm918, %v406, -inf
    %v1172 = vrot.slane %v1171, 4
    %v1173 = vmax.f32 %v1171, %v1172
    %v1174 = vrot.slane %v1173, 2
    %v1175 = vmax.f32 %v1173, %v1174
    %v1176 = vrot.slane %v1175, 1
    %v1177 = vmax.f32 %v1175, %v1176
    %v1178 = vsel %vm918, %v414, -inf
    %v1179 = vrot.slane %v1178, 4
    %v1180 = vmax.f32 %v1178, %v1179
    %v1181 = vrot.slane %v1180, 2
    %v1182 = vmax.f32 %v1180, %v1181
    %v1183 = vrot.slane %v1182, 1
    %v1184 = vmax.f32 %v1182, %v1183
    %v1185 = vsel %vm918, %v413, -inf
    %v1186 = vrot.slane %v1185, 4
    %v1187 = vmax.f32 %v1185, %v1186
    %v1188 = vrot.slane %v1187, 2
    %v1189 = vmax.f32 %v1187, %v1188
    %v1190 = vrot.slane %v1189, 1
    %v1191 = vmax.f32 %v1189, %v1190
    %v1192 = vsel %vm918, %v415, -inf
    %v1193 = vrot.slane %v1192, 4
    %v1194 = vmax.f32 %v1192, %v1193
    %v1195 = vrot.slane %v1194, 2
    %v1196 = vmax.f32 %v1194, %v1195
    %v1197 = vrot.slane %v1196, 1
    %v1198 = vmax.f32 %v1196, %v1197
    %v1199 = vsel %vm918, %v423, -inf
    %v1200 = vrot.slane %v1199, 4
    %v1201 = vmax.f32 %v1199, %v1200
    %v1202 = vrot.slane %v1201, 2
    %v1203 = vmax.f32 %v1201, %v1202
    %v1204 = vrot.slane %v1203, 1
    %v1205 = vmax.f32 %v1203, %v1204
    %v1206 = vsel %vm918, %v431, -inf
    %v1207 = vrot.slane %v1206, 4
    %v1208 = vmax.f32 %v1206, %v1207
    %v1209 = vrot.slane %v1208, 2
    %v1210 = vmax.f32 %v1208, %v1209
    %v1211 = vrot.slane %v1210, 1
    %v1212 = vmax.f32 %v1210, %v1211
    %v1213 = vsel %vm918, %v430, -inf
    %v1214 = vrot.slane %v1213, 4
    %v1215 = vmax.f32 %v1213, %v1214
    %v1216 = vrot.slane %v1215, 2
    %v1217 = vmax.f32 %v1215, %v1216
    %v1218 = vrot.slane %v1217, 1
    %v1219 = vmax.f32 %v1217, %v1218
    %v1220 = vsel %vm918, %v432, -inf
    %v1221 = vrot.slane %v1220, 4
    %v1222 = vmax.f32 %v1220, %v1221
    %v1223 = vrot.slane %v1222, 2
    %v1224 = vmax.f32 %v1222, %v1223
    %v1225 = vrot.slane %v1224, 1
    %v1226 = vmax.f32 %v1224, %v1225
    %v1227 = vsel %vm918, %v440, -inf
    %v1228 = vrot.slane %v1227, 4
    %v1229 = vmax.f32 %v1227, %v1228
    %v1230 = vrot.slane %v1229, 2
    %v1231 = vmax.f32 %v1229, %v1230
    %v1232 = vrot.slane %v1231, 1
    %v1233 = vmax.f32 %v1231, %v1232
    %v1234 = vsel %vm918, %v448, -inf
    %v1235 = vrot.slane %v1234, 4
    %v1236 = vmax.f32 %v1234, %v1235
    %v1237 = vrot.slane %v1236, 2
    %v1238 = vmax.f32 %v1236, %v1237
    %v1239 = vrot.slane %v1238, 1
    %v1240 = vmax.f32 %v1238, %v1239
    %v1241 = vsel %vm918, %v447, -inf
    %v1242 = vrot.slane %v1241, 4
    %v1243 = vmax.f32 %v1241, %v1242
    %v1244 = vrot.slane %v1243, 2
    %v1245 = vmax.f32 %v1243, %v1244
    %v1246 = vrot.slane %v1245, 1
    %v1247 = vmax.f32 %v1245, %v1246
    %v1248 = vsel %vm918, %v449, -inf
    %v1249 = vrot.slane %v1248, 4
    %v1250 = vmax.f32 %v1248, %v1249
    %v1251 = vrot.slane %v1250, 2
    %v1252 = vmax.f32 %v1250, %v1251
    %v1253 = vrot.slane %v1252, 1
    %v1254 = vmax.f32 %v1252, %v1253
    %v1255 = vsel %vm918, %v457, -inf
    %v1256 = vrot.slane %v1255, 4
    %v1257 = vmax.f32 %v1255, %v1256
    %v1258 = vrot.slane %v1257, 2
    %v1259 = vmax.f32 %v1257, %v1258
    %v1260 = vrot.slane %v1259, 1
    %v1261 = vmax.f32 %v1259, %v1260
    %v1262 = vsel %vm918, %v465, -inf
    %v1263 = vrot.slane %v1262, 4
    %v1264 = vmax.f32 %v1262, %v1263
    %v1265 = vrot.slane %v1264, 2
    %v1266 = vmax.f32 %v1264, %v1265
    %v1267 = vrot.slane %v1266, 1
    %v1268 = vmax.f32 %v1266, %v1267
    %v1269 = vsel %vm918, %v464, -inf
    %v1270 = vrot.slane %v1269, 4
    %v1271 = vmax.f32 %v1269, %v1270
    %v1272 = vrot.slane %v1271, 2
    %v1273 = vmax.f32 %v1271, %v1272
    %v1274 = vrot.slane %v1273, 1
    %v1275 = vmax.f32 %v1273, %v1274
    %v1276 = vsel %vm918, %v466, -inf
    %v1277 = vrot.slane %v1276, 4
    %v1278 = vmax.f32 %v1276, %v1277
    %v1279 = vrot.slane %v1278, 2
    %v1280 = vmax.f32 %v1278, %v1279
    %v1281 = vrot.slane %v1280, 1
    %v1282 = vmax.f32 %v1280, %v1281
    %v1283 = vsel %vm918, %v474, -inf
    %v1284 = vrot.slane %v1283, 4
    %v1285 = vmax.f32 %v1283, %v1284
    %v1286 = vrot.slane %v1285, 2
    %v1287 = vmax.f32 %v1285, %v1286
    %v1288 = vrot.slane %v1287, 1
    %v1289 = vmax.f32 %v1287, %v1288
    %v1290 = vsel %vm918, %v482, -inf
    %v1291 = vrot.slane %v1290, 4
    %v1292 = vmax.f32 %v1290, %v1291
    %v1293 = vrot.slane %v1292, 2
    %v1294 = vmax.f32 %v1292, %v1293
    %v1295 = vrot.slane %v1294, 1
    %v1296 = vmax.f32 %v1294, %v1295
    %v1297 = vsel %vm918, %v481, -inf
    %v1298 = vrot.slane %v1297, 4
    %v1299 = vmax.f32 %v1297, %v1298
    %v1300 = vrot.slane %v1299, 2
    %v1301 = vmax.f32 %v1299, %v1300
    %v1302 = vrot.slane %v1301, 1
    %v1303 = vmax.f32 %v1301, %v1302
    %v1304 = vsel %vm918, %v483, -inf
    %v1305 = vrot.slane %v1304, 4
    %v1306 = vmax.f32 %v1304, %v1305
    %v1307 = vrot.slane %v1306, 2
    %v1308 = vmax.f32 %v1306, %v1307
    %v1309 = vrot.slane %v1308, 1
    %v1310 = vmax.f32 %v1308, %v1309
    %v1311 = vsel %vm918, %v491, -inf
    %v1312 = vrot.slane %v1311, 4
    %v1313 = vmax.f32 %v1311, %v1312
    %v1314 = vrot.slane %v1313, 2
    %v1315 = vmax.f32 %v1313, %v1314
    %v1316 = vrot.slane %v1315, 1
    %v1317 = vmax.f32 %v1315, %v1316
    %v1318 = vsel %vm918, %v499, -inf
    %v1319 = vrot.slane %v1318, 4
    %v1320 = vmax.f32 %v1318, %v1319
    %v1321 = vrot.slane %v1320, 2
    %v1322 = vmax.f32 %v1320, %v1321
    %v1323 = vrot.slane %v1322, 1
    %v1324 = vmax.f32 %v1322, %v1323
    %v1325 = vsel %vm918, %v498, -inf
    %v1326 = vrot.slane %v1325, 4
    %v1327 = vmax.f32 %v1325, %v1326
    %v1328 = vrot.slane %v1327, 2
    %v1329 = vmax.f32 %v1327, %v1328
    %v1330 = vrot.slane %v1329, 1
    %v1331 = vmax.f32 %v1329, %v1330
    %v1332 = vsel %vm918, %v500, -inf
    %v1333 = vrot.slane %v1332, 4
    %v1334 = vmax.f32 %v1332, %v1333
    %v1335 = vrot.slane %v1334, 2
    %v1336 = vmax.f32 %v1334, %v1335
    %v1337 = vrot.slane %v1336, 1
    %v1338 = vmax.f32 %v1336, %v1337
    %v1339 = vsel %vm918, %v508, -inf
    %v1340 = vrot.slane %v1339, 4
    %v1341 = vmax.f32 %v1339, %v1340
    %v1342 = vrot.slane %v1341, 2
    %v1343 = vmax.f32 %v1341, %v1342
    %v1344 = vrot.slane %v1343, 1
    %v1345 = vmax.f32 %v1343, %v1344
    %v1346 = vsel %vm918, %v516, -inf
    %v1347 = vrot.slane %v1346, 4
    %v1348 = vmax.f32 %v1346, %v1347
    %v1349 = vrot.slane %v1348, 2
    %v1350 = vmax.f32 %v1348, %v1349
    %v1351 = vrot.slane %v1350, 1
    %v1352 = vmax.f32 %v1350, %v1351
    %v1353 = vsel %vm918, %v515, -inf
    %v1354 = vrot.slane %v1353, 4
    %v1355 = vmax.f32 %v1353, %v1354
    %v1356 = vrot.slane %v1355, 2
    %v1357 = vmax.f32 %v1355, %v1356
    %v1358 = vrot.slane %v1357, 1
    %v1359 = vmax.f32 %v1357, %v1358
    %v1360 = vsel %vm918, %v517, -inf
    %v1361 = vrot.slane %v1360, 4
    %v1362 = vmax.f32 %v1360, %v1361
    %v1363 = vrot.slane %v1362, 2
    %v1364 = vmax.f32 %v1362, %v1363
    %v1365 = vrot.slane %v1364, 1
    %v1366 = vmax.f32 %v1364, %v1365
    %v1367 = vsel %vm918, %v525, -inf
    %v1368 = vrot.slane %v1367, 4
    %v1369 = vmax.f32 %v1367, %v1368
    %v1370 = vrot.slane %v1369, 2
    %v1371 = vmax.f32 %v1369, %v1370
    %v1372 = vrot.slane %v1371, 1
    %v1373 = vmax.f32 %v1371, %v1372
    %v1374 = vsel %vm918, %v533, -inf
    %v1375 = vrot.slane %v1374, 4
    %v1376 = vmax.f32 %v1374, %v1375
    %v1377 = vrot.slane %v1376, 2
    %v1378 = vmax.f32 %v1376, %v1377
    %v1379 = vrot.slane %v1378, 1
    %v1380 = vmax.f32 %v1378, %v1379
    %v1381 = vsel %vm918, %v532, -inf
    %v1382 = vrot.slane %v1381, 4
    %v1383 = vmax.f32 %v1381, %v1382
    %v1384 = vrot.slane %v1383, 2
    %v1385 = vmax.f32 %v1383, %v1384
    %v1386 = vrot.slane %v1385, 1
    %v1387 = vmax.f32 %v1385, %v1386
    %v1388 = vsel %vm918, %v534, -inf
    %v1389 = vrot.slane %v1388, 4
    %v1390 = vmax.f32 %v1388, %v1389
    %v1391 = vrot.slane %v1390, 2
    %v1392 = vmax.f32 %v1390, %v1391
    %v1393 = vrot.slane %v1392, 1
    %v1394 = vmax.f32 %v1392, %v1393
    %v1395 = vsel %vm918, %v542, -inf
    %v1396 = vrot.slane %v1395, 4
    %v1397 = vmax.f32 %v1395, %v1396
    %v1398 = vrot.slane %v1397, 2
    %v1399 = vmax.f32 %v1397, %v1398
    %v1400 = vrot.slane %v1399, 1
    %v1401 = vmax.f32 %v1399, %v1400
    %v1402 = vsel %vm918, %v550, -inf
    %v1403 = vrot.slane %v1402, 4
    %v1404 = vmax.f32 %v1402, %v1403
    %v1405 = vrot.slane %v1404, 2
    %v1406 = vmax.f32 %v1404, %v1405
    %v1407 = vrot.slane %v1406, 1
    %v1408 = vmax.f32 %v1406, %v1407
    %v1409 = vsel %vm918, %v549, -inf
    %v1410 = vrot.slane %v1409, 4
    %v1411 = vmax.f32 %v1409, %v1410
    %v1412 = vrot.slane %v1411, 2
    %v1413 = vmax.f32 %v1411, %v1412
    %v1414 = vrot.slane %v1413, 1
    %v1415 = vmax.f32 %v1413, %v1414
    %v1416 = vsel %vm918, %v551, -inf
    %v1417 = vrot.slane %v1416, 4
    %v1418 = vmax.f32 %v1416, %v1417
    %v1419 = vrot.slane %v1418, 2
    %v1420 = vmax.f32 %v1418, %v1419
    %v1421 = vrot.slane %v1420, 1
    %v1422 = vmax.f32 %v1420, %v1421
    %v1423 = vsel %vm918, %v559, -inf
    %v1424 = vrot.slane %v1423, 4
    %v1425 = vmax.f32 %v1423, %v1424
    %v1426 = vrot.slane %v1425, 2
    %v1427 = vmax.f32 %v1425, %v1426
    %v1428 = vrot.slane %v1427, 1
    %v1429 = vmax.f32 %v1427, %v1428
    %v1430 = vsel %vm918, %v567, -inf
    %v1431 = vrot.slane %v1430, 4
    %v1432 = vmax.f32 %v1430, %v1431
    %v1433 = vrot.slane %v1432, 2
    %v1434 = vmax.f32 %v1432, %v1433
    %v1435 = vrot.slane %v1434, 1
    %v1436 = vmax.f32 %v1434, %v1435
    %v1437 = vsel %vm918, %v566, -inf
    %v1438 = vrot.slane %v1437, 4
    %v1439 = vmax.f32 %v1437, %v1438
    %v1440 = vrot.slane %v1439, 2
    %v1441 = vmax.f32 %v1439, %v1440
    %v1442 = vrot.slane %v1441, 1
    %v1443 = vmax.f32 %v1441, %v1442
    %v1444 = vsel %vm918, %v568, -inf
    %v1445 = vrot.slane %v1444, 4
    %v1446 = vmax.f32 %v1444, %v1445
    %v1447 = vrot.slane %v1446, 2
    %v1448 = vmax.f32 %v1446, %v1447
    %v1449 = vrot.slane %v1448, 1
    %v1450 = vmax.f32 %v1448, %v1449
    %v1451 = vsel %vm918, %v576, -inf
    %v1452 = vrot.slane %v1451, 4
    %v1453 = vmax.f32 %v1451, %v1452
    %v1454 = vrot.slane %v1453, 2
    %v1455 = vmax.f32 %v1453, %v1454
    %v1456 = vrot.slane %v1455, 1
    %v1457 = vmax.f32 %v1455, %v1456
    %v1458 = vsel %vm918, %v584, -inf
    %v1459 = vrot.slane %v1458, 4
    %v1460 = vmax.f32 %v1458, %v1459
    %v1461 = vrot.slane %v1460, 2
    %v1462 = vmax.f32 %v1460, %v1461
    %v1463 = vrot.slane %v1462, 1
    %v1464 = vmax.f32 %v1462, %v1463
    %v1465 = vsel %vm918, %v583, -inf
    %v1466 = vrot.slane %v1465, 4
    %v1467 = vmax.f32 %v1465, %v1466
    %v1468 = vrot.slane %v1467, 2
    %v1469 = vmax.f32 %v1467, %v1468
    %v1470 = vrot.slane %v1469, 1
    %v1471 = vmax.f32 %v1469, %v1470
    %v1472 = vsel %vm918, %v585, -inf
    %v1473 = vrot.slane %v1472, 4
    %v1474 = vmax.f32 %v1472, %v1473
    %v1475 = vrot.slane %v1474, 2
    %v1476 = vmax.f32 %v1474, %v1475
    %v1477 = vrot.slane %v1476, 1
    %v1478 = vmax.f32 %v1476, %v1477
    %v1479 = vsel %vm918, %v593, -inf
    %v1480 = vrot.slane %v1479, 4
    %v1481 = vmax.f32 %v1479, %v1480
    %v1482 = vrot.slane %v1481, 2
    %v1483 = vmax.f32 %v1481, %v1482
    %v1484 = vrot.slane %v1483, 1
    %v1485 = vmax.f32 %v1483, %v1484
    %v1486 = vsel %vm918, %v601, -inf
    %v1487 = vrot.slane %v1486, 4
    %v1488 = vmax.f32 %v1486, %v1487
    %v1489 = vrot.slane %v1488, 2
    %v1490 = vmax.f32 %v1488, %v1489
    %v1491 = vrot.slane %v1490, 1
    %v1492 = vmax.f32 %v1490, %v1491
    %v1493 = vsel %vm918, %v600, -inf
    %v1494 = vrot.slane %v1493, 4
    %v1495 = vmax.f32 %v1493, %v1494
    %v1496 = vrot.slane %v1495, 2
    %v1497 = vmax.f32 %v1495, %v1496
    %v1498 = vrot.slane %v1497, 1
    %v1499 = vmax.f32 %v1497, %v1498
    %v1500 = vsel %vm918, %v602, -inf
    %v1501 = vrot.slane %v1500, 4
    %v1502 = vmax.f32 %v1500, %v1501
    %v1503 = vrot.slane %v1502, 2
    %v1504 = vmax.f32 %v1502, %v1503
    %v1505 = vrot.slane %v1504, 1
    %v1506 = vmax.f32 %v1504, %v1505
    %v1507 = vsel %vm918, %v610, -inf
    %v1508 = vrot.slane %v1507, 4
    %v1509 = vmax.f32 %v1507, %v1508
    %v1510 = vrot.slane %v1509, 2
    %v1511 = vmax.f32 %v1509, %v1510
    %v1512 = vrot.slane %v1511, 1
    %v1513 = vmax.f32 %v1511, %v1512
    %v1514 = vsel %vm918, %v618, -inf
    %v1515 = vrot.slane %v1514, 4
    %v1516 = vmax.f32 %v1514, %v1515
    %v1517 = vrot.slane %v1516, 2
    %v1518 = vmax.f32 %v1516, %v1517
    %v1519 = vrot.slane %v1518, 1
    %v1520 = vmax.f32 %v1518, %v1519
    %v1521 = vsel %vm918, %v617, -inf
    %v1522 = vrot.slane %v1521, 4
    %v1523 = vmax.f32 %v1521, %v1522
    %v1524 = vrot.slane %v1523, 2
    %v1525 = vmax.f32 %v1523, %v1524
    %v1526 = vrot.slane %v1525, 1
    %v1527 = vmax.f32 %v1525, %v1526
    %v1528 = vsel %vm918, %v619, -inf
    %v1529 = vrot.slane %v1528, 4
    %v1530 = vmax.f32 %v1528, %v1529
    %v1531 = vrot.slane %v1530, 2
    %v1532 = vmax.f32 %v1530, %v1531
    %v1533 = vrot.slane %v1532, 1
    %v1534 = vmax.f32 %v1532, %v1533
    %v1535 = vsel %vm918, %v627, -inf
    %v1536 = vrot.slane %v1535, 4
    %v1537 = vmax.f32 %v1535, %v1536
    %v1538 = vrot.slane %v1537, 2
    %v1539 = vmax.f32 %v1537, %v1538
    %v1540 = vrot.slane %v1539, 1
    %v1541 = vmax.f32 %v1539, %v1540
    %v1542 = vsel %vm918, %v635, -inf
    %v1543 = vrot.slane %v1542, 4
    %v1544 = vmax.f32 %v1542, %v1543
    %v1545 = vrot.slane %v1544, 2
    %v1546 = vmax.f32 %v1544, %v1545
    %v1547 = vrot.slane %v1546, 1
    %v1548 = vmax.f32 %v1546, %v1547
    %v1549 = vsel %vm918, %v634, -inf
    %v1550 = vrot.slane %v1549, 4
    %v1551 = vmax.f32 %v1549, %v1550
    %v1552 = vrot.slane %v1551, 2
    %v1553 = vmax.f32 %v1551, %v1552
    %v1554 = vrot.slane %v1553, 1
    %v1555 = vmax.f32 %v1553, %v1554
    %v1556 = vsel %vm918, %v636, -inf
    %v1557 = vrot.slane %v1556, 4
    %v1558 = vmax.f32 %v1556, %v1557
    %v1559 = vrot.slane %v1558, 2
    %v1560 = vmax.f32 %v1558, %v1559
    %v1561 = vrot.slane %v1560, 1
    %v1562 = vmax.f32 %v1560, %v1561
    %v1563 = vsel %vm918, %v644, -inf
    %v1564 = vrot.slane %v1563, 4
    %v1565 = vmax.f32 %v1563, %v1564
    %v1566 = vrot.slane %v1565, 2
    %v1567 = vmax.f32 %v1565, %v1566
    %v1568 = vrot.slane %v1567, 1
    %v1569 = vmax.f32 %v1567, %v1568
    %v1570 = vsel %vm918, %v652, -inf
    %v1571 = vrot.slane %v1570, 4
    %v1572 = vmax.f32 %v1570, %v1571
    %v1573 = vrot.slane %v1572, 2
    %v1574 = vmax.f32 %v1572, %v1573
    %v1575 = vrot.slane %v1574, 1
    %v1576 = vmax.f32 %v1574, %v1575
    %v1577 = vsel %vm918, %v651, -inf
    %v1578 = vrot.slane %v1577, 4
    %v1579 = vmax.f32 %v1577, %v1578
    %v1580 = vrot.slane %v1579, 2
    %v1581 = vmax.f32 %v1579, %v1580
    %v1582 = vrot.slane %v1581, 1
    %v1583 = vmax.f32 %v1581, %v1582
    %v1584 = vsel %vm918, %v653, -inf
    %v1585 = vrot.slane %v1584, 4
    %v1586 = vmax.f32 %v1584, %v1585
    %v1587 = vrot.slane %v1586, 2
    %v1588 = vmax.f32 %v1586, %v1587
    %v1589 = vrot.slane %v1588, 1
    %v1590 = vmax.f32 %v1588, %v1589
    %v1591 = vsel %vm918, %v661, -inf
    %v1592 = vrot.slane %v1591, 4
    %v1593 = vmax.f32 %v1591, %v1592
    %v1594 = vrot.slane %v1593, 2
    %v1595 = vmax.f32 %v1593, %v1594
    %v1596 = vrot.slane %v1595, 1
    %v1597 = vmax.f32 %v1595, %v1596
    %v1598 = vsel %vm918, %v669, -inf
    %v1599 = vrot.slane %v1598, 4
    %v1600 = vmax.f32 %v1598, %v1599
    %v1601 = vrot.slane %v1600, 2
    %v1602 = vmax.f32 %v1600, %v1601
    %v1603 = vrot.slane %v1602, 1
    %v1604 = vmax.f32 %v1602, %v1603
    %v1605 = vsel %vm918, %v668, -inf
    %v1606 = vrot.slane %v1605, 4
    %v1607 = vmax.f32 %v1605, %v1606
    %v1608 = vrot.slane %v1607, 2
    %v1609 = vmax.f32 %v1607, %v1608
    %v1610 = vrot.slane %v1609, 1
    %v1611 = vmax.f32 %v1609, %v1610
    %v1612 = vsel %vm918, %v670, -inf
    %v1613 = vrot.slane %v1612, 4
    %v1614 = vmax.f32 %v1612, %v1613
    %v1615 = vrot.slane %v1614, 2
    %v1616 = vmax.f32 %v1614, %v1615
    %v1617 = vrot.slane %v1616, 1
    %v1618 = vmax.f32 %v1616, %v1617
    %v1619 = vsel %vm918, %v678, -inf
    %v1620 = vrot.slane %v1619, 4
    %v1621 = vmax.f32 %v1619, %v1620
    %v1622 = vrot.slane %v1621, 2
    %v1623 = vmax.f32 %v1621, %v1622
    %v1624 = vrot.slane %v1623, 1
    %v1625 = vmax.f32 %v1623, %v1624
    %v1626 = vsel %vm918, %v686, -inf
    %v1627 = vrot.slane %v1626, 4
    %v1628 = vmax.f32 %v1626, %v1627
    %v1629 = vrot.slane %v1628, 2
    %v1630 = vmax.f32 %v1628, %v1629
    %v1631 = vrot.slane %v1630, 1
    %v1632 = vmax.f32 %v1630, %v1631
    %v1633 = vsel %vm918, %v685, -inf
    %v1634 = vrot.slane %v1633, 4
    %v1635 = vmax.f32 %v1633, %v1634
    %v1636 = vrot.slane %v1635, 2
    %v1637 = vmax.f32 %v1635, %v1636
    %v1638 = vrot.slane %v1637, 1
    %v1639 = vmax.f32 %v1637, %v1638
    %v1640 = vsel %vm918, %v687, -inf
    %v1641 = vrot.slane %v1640, 4
    %v1642 = vmax.f32 %v1640, %v1641
    %v1643 = vrot.slane %v1642, 2
    %v1644 = vmax.f32 %v1642, %v1643
    %v1645 = vrot.slane %v1644, 1
    %v1646 = vmax.f32 %v1644, %v1645
    %v1647 = vsel %vm918, %v695, -inf
    %v1648 = vrot.slane %v1647, 4
    %v1649 = vmax.f32 %v1647, %v1648
    %v1650 = vrot.slane %v1649, 2
    %v1651 = vmax.f32 %v1649, %v1650
    %v1652 = vrot.slane %v1651, 1
    %v1653 = vmax.f32 %v1651, %v1652
    %v1654 = vsel %vm918, %v703, -inf
    %v1655 = vrot.slane %v1654, 4
    %v1656 = vmax.f32 %v1654, %v1655
    %v1657 = vrot.slane %v1656, 2
    %v1658 = vmax.f32 %v1656, %v1657
    %v1659 = vrot.slane %v1658, 1
    %v1660 = vmax.f32 %v1658, %v1659
    %v1661 = vsel %vm918, %v702, -inf
    %v1662 = vrot.slane %v1661, 4
    %v1663 = vmax.f32 %v1661, %v1662
    %v1664 = vrot.slane %v1663, 2
    %v1665 = vmax.f32 %v1663, %v1664
    %v1666 = vrot.slane %v1665, 1
    %v1667 = vmax.f32 %v1665, %v1666
    %v1668 = vsel %vm918, %v704, -inf
    %v1669 = vrot.slane %v1668, 4
    %v1670 = vmax.f32 %v1668, %v1669
    %v1671 = vrot.slane %v1670, 2
    %v1672 = vmax.f32 %v1670, %v1671
    %v1673 = vrot.slane %v1672, 1
    %v1674 = vmax.f32 %v1672, %v1673
    %v1675 = vsel %vm918, %v712, -inf
    %v1676 = vrot.slane %v1675, 4
    %v1677 = vmax.f32 %v1675, %v1676
    %v1678 = vrot.slane %v1677, 2
    %v1679 = vmax.f32 %v1677, %v1678
    %v1680 = vrot.slane %v1679, 1
    %v1681 = vmax.f32 %v1679, %v1680
    %v1682 = vsel %vm918, %v720, -inf
    %v1683 = vrot.slane %v1682, 4
    %v1684 = vmax.f32 %v1682, %v1683
    %v1685 = vrot.slane %v1684, 2
    %v1686 = vmax.f32 %v1684, %v1685
    %v1687 = vrot.slane %v1686, 1
    %v1688 = vmax.f32 %v1686, %v1687
    %v1689 = vsel %vm918, %v719, -inf
    %v1690 = vrot.slane %v1689, 4
    %v1691 = vmax.f32 %v1689, %v1690
    %v1692 = vrot.slane %v1691, 2
    %v1693 = vmax.f32 %v1691, %v1692
    %v1694 = vrot.slane %v1693, 1
    %v1695 = vmax.f32 %v1693, %v1694
    %v1696 = vsel %vm918, %v721, -inf
    %v1697 = vrot.slane %v1696, 4
    %v1698 = vmax.f32 %v1696, %v1697
    %v1699 = vrot.slane %v1698, 2
    %v1700 = vmax.f32 %v1698, %v1699
    %v1701 = vrot.slane %v1700, 1
    %v1702 = vmax.f32 %v1700, %v1701
    %v1703 = vsel %vm918, %v729, -inf
    %v1704 = vrot.slane %v1703, 4
    %v1705 = vmax.f32 %v1703, %v1704
    %v1706 = vrot.slane %v1705, 2
    %v1707 = vmax.f32 %v1705, %v1706
    %v1708 = vrot.slane %v1707, 1
    %v1709 = vmax.f32 %v1707, %v1708
    %v1710 = vsel %vm918, %v737, -inf
    %v1711 = vrot.slane %v1710, 4
    %v1712 = vmax.f32 %v1710, %v1711
    %v1713 = vrot.slane %v1712, 2
    %v1714 = vmax.f32 %v1712, %v1713
    %v1715 = vrot.slane %v1714, 1
    %v1716 = vmax.f32 %v1714, %v1715
    %v1717 = vsel %vm918, %v736, -inf
    %v1718 = vrot.slane %v1717, 4
    %v1719 = vmax.f32 %v1717, %v1718
    %v1720 = vrot.slane %v1719, 2
    %v1721 = vmax.f32 %v1719, %v1720
    %v1722 = vrot.slane %v1721, 1
    %v1723 = vmax.f32 %v1721, %v1722
    %v1724 = vsel %vm918, %v738, -inf
    %v1725 = vrot.slane %v1724, 4
    %v1726 = vmax.f32 %v1724, %v1725
    %v1727 = vrot.slane %v1726, 2
    %v1728 = vmax.f32 %v1726, %v1727
    %v1729 = vrot.slane %v1728, 1
    %v1730 = vmax.f32 %v1728, %v1729
    %v1731 = vsel %vm918, %v746, -inf
    %v1732 = vrot.slane %v1731, 4
    %v1733 = vmax.f32 %v1731, %v1732
    %v1734 = vrot.slane %v1733, 2
    %v1735 = vmax.f32 %v1733, %v1734
    %v1736 = vrot.slane %v1735, 1
    %v1737 = vmax.f32 %v1735, %v1736
    %v1738 = vsel %vm918, %v754, -inf
    %v1739 = vrot.slane %v1738, 4
    %v1740 = vmax.f32 %v1738, %v1739
    %v1741 = vrot.slane %v1740, 2
    %v1742 = vmax.f32 %v1740, %v1741
    %v1743 = vrot.slane %v1742, 1
    %v1744 = vmax.f32 %v1742, %v1743
    %v1745 = vsel %vm918, %v753, -inf
    %v1746 = vrot.slane %v1745, 4
    %v1747 = vmax.f32 %v1745, %v1746
    %v1748 = vrot.slane %v1747, 2
    %v1749 = vmax.f32 %v1747, %v1748
    %v1750 = vrot.slane %v1749, 1
    %v1751 = vmax.f32 %v1749, %v1750
    %v1752 = vsel %vm918, %v755, -inf
    %v1753 = vrot.slane %v1752, 4
    %v1754 = vmax.f32 %v1752, %v1753
    %v1755 = vrot.slane %v1754, 2
    %v1756 = vmax.f32 %v1754, %v1755
    %v1757 = vrot.slane %v1756, 1
    %v1758 = vmax.f32 %v1756, %v1757
    %v1759 = vsel %vm918, %v763, -inf
    %v1760 = vrot.slane %v1759, 4
    %v1761 = vmax.f32 %v1759, %v1760
    %v1762 = vrot.slane %v1761, 2
    %v1763 = vmax.f32 %v1761, %v1762
    %v1764 = vrot.slane %v1763, 1
    %v1765 = vmax.f32 %v1763, %v1764
    %v1766 = vsel %vm918, %v771, -inf
    %v1767 = vrot.slane %v1766, 4
    %v1768 = vmax.f32 %v1766, %v1767
    %v1769 = vrot.slane %v1768, 2
    %v1770 = vmax.f32 %v1768, %v1769
    %v1771 = vrot.slane %v1770, 1
    %v1772 = vmax.f32 %v1770, %v1771
    %v1773 = vsel %vm918, %v770, -inf
    %v1774 = vrot.slane %v1773, 4
    %v1775 = vmax.f32 %v1773, %v1774
    %v1776 = vrot.slane %v1775, 2
    %v1777 = vmax.f32 %v1775, %v1776
    %v1778 = vrot.slane %v1777, 1
    %v1779 = vmax.f32 %v1777, %v1778
    %v1780 = vsel %vm918, %v772, -inf
    %v1781 = vrot.slane %v1780, 4
    %v1782 = vmax.f32 %v1780, %v1781
    %v1783 = vrot.slane %v1782, 2
    %v1784 = vmax.f32 %v1782, %v1783
    %v1785 = vrot.slane %v1784, 1
    %v1786 = vmax.f32 %v1784, %v1785
    %v1787 = vsel %vm918, %v780, -inf
    %v1788 = vrot.slane %v1787, 4
    %v1789 = vmax.f32 %v1787, %v1788
    %v1790 = vrot.slane %v1789, 2
    %v1791 = vmax.f32 %v1789, %v1790
    %v1792 = vrot.slane %v1791, 1
    %v1793 = vmax.f32 %v1791, %v1792
    %v1794 = vsel %vm918, %v788, -inf
    %v1795 = vrot.slane %v1794, 4
    %v1796 = vmax.f32 %v1794, %v1795
    %v1797 = vrot.slane %v1796, 2
    %v1798 = vmax.f32 %v1796, %v1797
    %v1799 = vrot.slane %v1798, 1
    %v1800 = vmax.f32 %v1798, %v1799
    %v1801 = vsel %vm918, %v787, -inf
    %v1802 = vrot.slane %v1801, 4
    %v1803 = vmax.f32 %v1801, %v1802
    %v1804 = vrot.slane %v1803, 2
    %v1805 = vmax.f32 %v1803, %v1804
    %v1806 = vrot.slane %v1805, 1
    %v1807 = vmax.f32 %v1805, %v1806
    %v1808 = vsel %vm918, %v789, -inf
    %v1809 = vrot.slane %v1808, 4
    %v1810 = vmax.f32 %v1808, %v1809
    %v1811 = vrot.slane %v1810, 2
    %v1812 = vmax.f32 %v1810, %v1811
    %v1813 = vrot.slane %v1812, 1
    %v1814 = vmax.f32 %v1812, %v1813
    %vm1943 = vcmask 1041409
    %v1944 = vsel %vm1943, %v932, %v925
    %vm1945 = vcmask 1042434
    %v1946 = vsel %vm1945, %v939, %v1944
    %vm1947 = vcmask 1043459
    %v1948 = vsel %vm1947, %v946, %v1946
    %vm1949 = vcmask 1044484
    %v1950 = vsel %vm1949, %v953, %v1948
    %vm1951 = vcmask 1045509
    %v1952 = vsel %vm1951, %v960, %v1950
    %vm1953 = vcmask 1046534
    %v1954 = vsel %vm1953, %v967, %v1952
    %vm1955 = vcmask 1047559
    %v1956 = vsel %vm1955, %v974, %v1954
    %v1957 = vsel %vm1943, %v988, %v981
    %v1958 = vsel %vm1945, %v995, %v1957
    %v1959 = vsel %vm1947, %v1002, %v1958
    %v1960 = vsel %vm1949, %v1009, %v1959
    %v1961 = vsel %vm1951, %v1016, %v1960
    %v1962 = vsel %vm1953, %v1023, %v1961
    %v1963 = vsel %vm1955, %v1030, %v1962
    %v1964 = vsel %vm1943, %v1044, %v1037
    %v1965 = vsel %vm1945, %v1051, %v1964
    %v1966 = vsel %vm1947, %v1058, %v1965
    %v1967 = vsel %vm1949, %v1065, %v1966
    %v1968 = vsel %vm1951, %v1072, %v1967
    %v1969 = vsel %vm1953, %v1079, %v1968
    %v1970 = vsel %vm1955, %v1086, %v1969
    %v1971 = vsel %vm1943, %v1100, %v1093
    %v1972 = vsel %vm1945, %v1107, %v1971
    %v1973 = vsel %vm1947, %v1114, %v1972
    %v1974 = vsel %vm1949, %v1121, %v1973
    %v1975 = vsel %vm1951, %v1128, %v1974
    %v1976 = vsel %vm1953, %v1135, %v1975
    %v1977 = vsel %vm1955, %v1142, %v1976
    %v1978 = vsel %vm1943, %v1156, %v1149
    %v1979 = vsel %vm1945, %v1163, %v1978
    %v1980 = vsel %vm1947, %v1170, %v1979
    %v1981 = vsel %vm1949, %v1177, %v1980
    %v1982 = vsel %vm1951, %v1184, %v1981
    %v1983 = vsel %vm1953, %v1191, %v1982
    %v1984 = vsel %vm1955, %v1198, %v1983
    %v1985 = vsel %vm1943, %v1212, %v1205
    %v1986 = vsel %vm1945, %v1219, %v1985
    %v1987 = vsel %vm1947, %v1226, %v1986
    %v1988 = vsel %vm1949, %v1233, %v1987
    %v1989 = vsel %vm1951, %v1240, %v1988
    %v1990 = vsel %vm1953, %v1247, %v1989
    %v1991 = vsel %vm1955, %v1254, %v1990
    %v1992 = vsel %vm1943, %v1268, %v1261
    %v1993 = vsel %vm1945, %v1275, %v1992
    %v1994 = vsel %vm1947, %v1282, %v1993
    %v1995 = vsel %vm1949, %v1289, %v1994
    %v1996 = vsel %vm1951, %v1296, %v1995
    %v1997 = vsel %vm1953, %v1303, %v1996
    %v1998 = vsel %vm1955, %v1310, %v1997
    %v1999 = vsel %vm1943, %v1324, %v1317
    %v2000 = vsel %vm1945, %v1331, %v1999
    %v2001 = vsel %vm1947, %v1338, %v2000
    %v2002 = vsel %vm1949, %v1345, %v2001
    %v2003 = vsel %vm1951, %v1352, %v2002
    %v2004 = vsel %vm1953, %v1359, %v2003
    %v2005 = vsel %vm1955, %v1366, %v2004
    %v2006 = vsel %vm1943, %v1380, %v1373
    %v2007 = vsel %vm1945, %v1387, %v2006
    %v2008 = vsel %vm1947, %v1394, %v2007
    %v2009 = vsel %vm1949, %v1401, %v2008
    %v2010 = vsel %vm1951, %v1408, %v2009
    %v2011 = vsel %vm1953, %v1415, %v2010
    %v2012 = vsel %vm1955, %v1422, %v2011
    %v2013 = vsel %vm1943, %v1436, %v1429
    %v2014 = vsel %vm1945, %v1443, %v2013
    %v2015 = vsel %vm1947, %v1450, %v2014
    %v2016 = vsel %vm1949, %v1457, %v2015
    %v2017 = vsel %vm1951, %v1464, %v2016
    %v2018 = vsel %vm1953, %v1471, %v2017
    %v2019 = vsel %vm1955, %v1478, %v2018
    %v2020 = vsel %vm1943, %v1492, %v1485
    %v2021 = vsel %vm1945, %v1499, %v2020
    %v2022 = vsel %vm1947, %v1506, %v2021
    %v2023 = vsel %vm1949, %v1513, %v2022
    %v2024 = vsel %vm1951, %v1520, %v2023
    %v2025 = vsel %vm1953, %v1527, %v2024
    %v2026 = vsel %vm1955, %v1534, %v2025
    %v2027 = vsel %vm1943, %v1548, %v1541
    %v2028 = vsel %vm1945, %v1555, %v2027
    %v2029 = vsel %vm1947, %v1562, %v2028
    %v2030 = vsel %vm1949, %v1569, %v2029
    %v2031 = vsel %vm1951, %v1576, %v2030
    %v2032 = vsel %vm1953, %v1583, %v2031
    %v2033 = vsel %vm1955, %v1590, %v2032
    %v2034 = vsel %vm1943, %v1604, %v1597
    %v2035 = vsel %vm1945, %v1611, %v2034
    %v2036 = vsel %vm1947, %v1618, %v2035
    %v2037 = vsel %vm1949, %v1625, %v2036
    %v2038 = vsel %vm1951, %v1632, %v2037
    %v2039 = vsel %vm1953, %v1639, %v2038
    %v2040 = vsel %vm1955, %v1646, %v2039
    %v2041 = vsel %vm1943, %v1660, %v1653
    %v2042 = vsel %vm1945, %v1667, %v2041
    %v2043 = vsel %vm1947, %v1674, %v2042
    %v2044 = vsel %vm1949, %v1681, %v2043
    %v2045 = vsel %vm1951, %v1688, %v2044
    %v2046 = vsel %vm1953, %v1695, %v2045
    %v2047 = vsel %vm1955, %v1702, %v2046
    %v2048 = vsel %vm1943, %v1716, %v1709
    %v2049 = vsel %vm1945, %v1723, %v2048
    %v2050 = vsel %vm1947, %v1730, %v2049
    %v2051 = vsel %vm1949, %v1737, %v2050
    %v2052 = vsel %vm1951, %v1744, %v2051
    %v2053 = vsel %vm1953, %v1751, %v2052
    %v2054 = vsel %vm1955, %v1758, %v2053
    %v2055 = vsel %vm1943, %v1772, %v1765
    %v2056 = vsel %vm1945, %v1779, %v2055
    %v2057 = vsel %vm1947, %v1786, %v2056
    %v2058 = vsel %vm1949, %v1793, %v2057
    %v2059 = vsel %vm1951, %v1800, %v2058
    %v2060 = vsel %vm1953, %v1807, %v2059
    %v2061 = vsel %vm1955, %v1814, %v2060
    %s2078 = scalar_lea.vmem [#allocation2], 16
    %2079 = vst [vmem:[%s2078 + $0x1] sm:$0xff] %v1956
    %2080 = vst [vmem:[%s2078 + $0x11] sm:$0xff] %v1963
    %2081 = vst [vmem:[%s2078 + $0x21] sm:$0xff] %v1970
    %2082 = vst [vmem:[%s2078 + $0x31] sm:$0xff] %v1977
    %2083 = vst [vmem:[%s2078 + $0x41] sm:$0xff] %v1984
    %2084 = vst [vmem:[%s2078 + $0x51] sm:$0xff] %v1991
    %2085 = vst [vmem:[%s2078 + $0x61] sm:$0xff] %v1998
    %2086 = vst [vmem:[%s2078 + $0x71] sm:$0xff] %v2005
    %2087 = vst [vmem:[%s2078 + $0xa1] sm:$0xff] %v2012
    %2088 = vst [vmem:[%s2078 + $0xb1] sm:$0xff] %v2019
    %2089 = vst [vmem:[%s2078 + $0xc1] sm:$0xff] %v2026
    %2090 = vst [vmem:[%s2078 + $0xd1] sm:$0xff] %v2033
    %2091 = vst [vmem:[%s2078 + $0xe1] sm:$0xff] %v2040
    %2092 = vst [vmem:[%s2078 + $0xf1] sm:$0xff] %v2047
    %2093 = vst [vmem:[%s2078 + $0x101] sm:$0xff] %v2054
    %2094 = vst [vmem:[%s2078 + $0x111] sm:$0xff] %v2061
    %v2095 = vld [vmem:[#allocation2] sm:$0xff]
    %v2096 = vld [vmem:[#allocation2 + $0x10] sm:$0xff]
    %v2097 = vld [vmem:[#allocation2 + $0x20] sm:$0xff]
    %v2098 = vld [vmem:[#allocation2 + $0x30] sm:$0xff]
    %v2099 = vld [vmem:[#allocation2 + $0x40] sm:$0xff]
    %v2100 = vld [vmem:[#allocation2 + $0x50] sm:$0xff]
    %v2101 = vld [vmem:[#allocation2 + $0x60] sm:$0xff]
    %v2102 = vld [vmem:[#allocation2 + $0x70] sm:$0xff]
    %v2103 = vld [vmem:[#allocation2 + $0xa0] sm:$0xff]
    %v2104 = vld [vmem:[#allocation2 + $0xb0] sm:$0xff]
    %v2105 = vld [vmem:[#allocation2 + $0xc0] sm:$0xff]
    %v2106 = vld [vmem:[#allocation2 + $0xd0] sm:$0xff]
    %v2107 = vld [vmem:[#allocation2 + $0xe0] sm:$0xff]
    %v2108 = vld [vmem:[#allocation2 + $0xf0] sm:$0xff]
    %v2109 = vld [vmem:[#allocation2 + $0x100] sm:$0xff]
    %v2110 = vld [vmem:[#allocation2 + $0x110] sm:$0xff]
    %v2111 = vld [vmem:[#allocation2 + $0x1] sm:$0xff]
    %v2112 = vld [vmem:[#allocation2 + $0x11] sm:$0xff]
    %v2113 = vld [vmem:[#allocation2 + $0x21] sm:$0xff]
    %v2114 = vld [vmem:[#allocation2 + $0x31] sm:$0xff]
    %v2115 = vld [vmem:[#allocation2 + $0x41] sm:$0xff]
    %v2116 = vld [vmem:[#allocation2 + $0x51] sm:$0xff]
    %v2117 = vld [vmem:[#allocation2 + $0x61] sm:$0xff]
    %v2118 = vld [vmem:[#allocation2 + $0x71] sm:$0xff]
    %v2119 = vld [vmem:[#allocation2 + $0xa1] sm:$0xff]
    %v2120 = vld [vmem:[#allocation2 + $0xb1] sm:$0xff]
    %v2121 = vld [vmem:[#allocation2 + $0xc1] sm:$0xff]
    %v2122 = vld [vmem:[#allocation2 + $0xd1] sm:$0xff]
    %v2123 = vld [vmem:[#allocation2 + $0xe1] sm:$0xff]
    %v2124 = vld [vmem:[#allocation2 + $0xf1] sm:$0xff]
    %v2125 = vld [vmem:[#allocation2 + $0x101] sm:$0xff]
    %v2126 = vld [vmem:[#allocation2 + $0x111] sm:$0xff]
    %v2127 = vld [vmem:[#allocation2 + $0x2] sm:$0xff]
    %v2128 = vld [vmem:[#allocation2 + $0x12] sm:$0xff]
    %v2129 = vld [vmem:[#allocation2 + $0x22] sm:$0xff]
    %v2130 = vld [vmem:[#allocation2 + $0x32] sm:$0xff]
    %v2131 = vld [vmem:[#allocation2 + $0x42] sm:$0xff]
    %v2132 = vld [vmem:[#allocation2 + $0x52] sm:$0xff]
    %v2133 = vld [vmem:[#allocation2 + $0x62] sm:$0xff]
    %v2134 = vld [vmem:[#allocation2 + $0x72] sm:$0xff]
    %v2135 = vld [vmem:[#allocation2 + $0xa2] sm:$0xff]
    %v2136 = vld [vmem:[#allocation2 + $0xb2] sm:$0xff]
    %v2137 = vld [vmem:[#allocation2 + $0xc2] sm:$0xff]
    %v2138 = vld [vmem:[#allocation2 + $0xd2] sm:$0xff]
    %v2139 = vld [vmem:[#allocation2 + $0xe2] sm:$0xff]
    %v2140 = vld [vmem:[#allocation2 + $0xf2] sm:$0xff]
    %v2141 = vld [vmem:[#allocation2 + $0x102] sm:$0xff]
    %v2142 = vld [vmem:[#allocation2 + $0x112] sm:$0xff]
    %v2143 = vld [vmem:[%s2078] sm:$0xff]
    %v2144 = vld [vmem:[%s2078 + $0x10] sm:$0xff]
    %v2145 = vld [vmem:[%s2078 + $0x20] sm:$0xff]
    %v2146 = vld [vmem:[%s2078 + $0x30] sm:$0xff]
    %v2147 = vld [vmem:[%s2078 + $0x40] sm:$0xff]
    %v2148 = vld [vmem:[%s2078 + $0x50] sm:$0xff]
    %v2149 = vld [vmem:[%s2078 + $0x60] sm:$0xff]
    %v2150 = vld [vmem:[%s2078 + $0x70] sm:$0xff]
    %v2151 = vld [vmem:[%s2078 + $0xa0] sm:$0xff]
    %v2152 = vld [vmem:[%s2078 + $0xb0] sm:$0xff]
    %v2153 = vld [vmem:[%s2078 + $0xc0] sm:$0xff]
    %v2154 = vld [vmem:[%s2078 + $0xd0] sm:$0xff]
    %v2155 = vld [vmem:[%s2078 + $0xe0] sm:$0xff]
    %v2156 = vld [vmem:[%s2078 + $0xf0] sm:$0xff]
    %v2157 = vld [vmem:[%s2078 + $0x100] sm:$0xff]
    %v2158 = vld [vmem:[%s2078 + $0x110] sm:$0xff]
    %v2159 = vld [vmem:[%s2078 + $0x1] sm:$0xff]
    %v2160 = vld [vmem:[%s2078 + $0x11] sm:$0xff]
    %v2161 = vld [vmem:[%s2078 + $0x21] sm:$0xff]
    %v2162 = vld [vmem:[%s2078 + $0x31] sm:$0xff]
    %v2163 = vld [vmem:[%s2078 + $0x41] sm:$0xff]
    %v2164 = vld [vmem:[%s2078 + $0x51] sm:$0xff]
    %v2165 = vld [vmem:[%s2078 + $0x61] sm:$0xff]
    %v2166 = vld [vmem:[%s2078 + $0x71] sm:$0xff]
    %v2167 = vld [vmem:[%s2078 + $0xa1] sm:$0xff]
    %v2168 = vld [vmem:[%s2078 + $0xb1] sm:$0xff]
    %v2169 = vld [vmem:[%s2078 + $0xc1] sm:$0xff]
    %v2170 = vld [vmem:[%s2078 + $0xd1] sm:$0xff]
    %v2171 = vld [vmem:[%s2078 + $0xe1] sm:$0xff]
    %v2172 = vld [vmem:[%s2078 + $0xf1] sm:$0xff]
    %v2173 = vld [vmem:[%s2078 + $0x101] sm:$0xff]
    %v2174 = vld [vmem:[%s2078 + $0x111] sm:$0xff]
    %v2175 = vld [vmem:[%s2078 + $0x2] sm:$0xff]
    %v2176 = vld [vmem:[%s2078 + $0x12] sm:$0xff]
    %v2177 = vld [vmem:[%s2078 + $0x22] sm:$0xff]
    %v2178 = vld [vmem:[%s2078 + $0x32] sm:$0xff]
    %v2179 = vld [vmem:[%s2078 + $0x42] sm:$0xff]
    %v2180 = vld [vmem:[%s2078 + $0x52] sm:$0xff]
    %v2181 = vld [vmem:[%s2078 + $0x62] sm:$0xff]
    %v2182 = vld [vmem:[%s2078 + $0x72] sm:$0xff]
    %v2183 = vld [vmem:[%s2078 + $0xa2] sm:$0xff]
    %v2184 = vld [vmem:[%s2078 + $0xb2] sm:$0xff]
    %v2185 = vld [vmem:[%s2078 + $0xc2] sm:$0xff]
    %v2186 = vld [vmem:[%s2078 + $0xd2] sm:$0xff]
    %v2187 = vld [vmem:[%s2078 + $0xe2] sm:$0xff]
    %v2188 = vld [vmem:[%s2078 + $0xf2] sm:$0xff]
    %v2189 = vld [vmem:[%s2078 + $0x102] sm:$0xff]
    %v2190 = vld [vmem:[%s2078 + $0x112] sm:$0xff]
    %s2191 = scalar_lea.vmem [#allocation2], 32
    %v2192 = vld [vmem:[%s2191] sm:$0xff]
    %v2193 = vld [vmem:[%s2191 + $0x10] sm:$0xff]
    %v2194 = vld [vmem:[%s2191 + $0x20] sm:$0xff]
    %v2195 = vld [vmem:[%s2191 + $0x30] sm:$0xff]
    %v2196 = vld [vmem:[%s2191 + $0x40] sm:$0xff]
    %v2197 = vld [vmem:[%s2191 + $0x50] sm:$0xff]
    %v2198 = vld [vmem:[%s2191 + $0x60] sm:$0xff]
    %v2199 = vld [vmem:[%s2191 + $0x70] sm:$0xff]
    %v2200 = vld [vmem:[%s2191 + $0xa0] sm:$0xff]
    %v2201 = vld [vmem:[%s2191 + $0xb0] sm:$0xff]
    %v2202 = vld [vmem:[%s2191 + $0xc0] sm:$0xff]
    %v2203 = vld [vmem:[%s2191 + $0xd0] sm:$0xff]
    %v2204 = vld [vmem:[%s2191 + $0xe0] sm:$0xff]
    %v2205 = vld [vmem:[%s2191 + $0xf0] sm:$0xff]
    %v2206 = vld [vmem:[%s2191 + $0x100] sm:$0xff]
    %v2207 = vld [vmem:[%s2191 + $0x110] sm:$0xff]
    %v2208 = vld [vmem:[%s2191 + $0x1] sm:$0xff]
    %v2209 = vld [vmem:[%s2191 + $0x11] sm:$0xff]
    %v2210 = vld [vmem:[%s2191 + $0x21] sm:$0xff]
    %v2211 = vld [vmem:[%s2191 + $0x31] sm:$0xff]
    %v2212 = vld [vmem:[%s2191 + $0x41] sm:$0xff]
    %v2213 = vld [vmem:[%s2191 + $0x51] sm:$0xff]
    %v2214 = vld [vmem:[%s2191 + $0x61] sm:$0xff]
    %v2215 = vld [vmem:[%s2191 + $0x71] sm:$0xff]
    %v2216 = vld [vmem:[%s2191 + $0xa1] sm:$0xff]
    %v2217 = vld [vmem:[%s2191 + $0xb1] sm:$0xff]
    %v2218 = vld [vmem:[%s2191 + $0xc1] sm:$0xff]
    %v2219 = vld [vmem:[%s2191 + $0xd1] sm:$0xff]
    %v2220 = vld [vmem:[%s2191 + $0xe1] sm:$0xff]
    %v2221 = vld [vmem:[%s2191 + $0xf1] sm:$0xff]
    %v2222 = vld [vmem:[%s2191 + $0x101] sm:$0xff]
    %v2223 = vld [vmem:[%s2191 + $0x111] sm:$0xff]
    %v2224 = vld [vmem:[%s2191 + $0x2] sm:$0xff]
    %v2225 = vld [vmem:[%s2191 + $0x12] sm:$0xff]
    %v2226 = vld [vmem:[%s2191 + $0x22] sm:$0xff]
    %v2227 = vld [vmem:[%s2191 + $0x32] sm:$0xff]
    %v2228 = vld [vmem:[%s2191 + $0x42] sm:$0xff]
    %v2229 = vld [vmem:[%s2191 + $0x52] sm:$0xff]
    %v2230 = vld [vmem:[%s2191 + $0x62] sm:$0xff]
    %v2231 = vld [vmem:[%s2191 + $0x72] sm:$0xff]
    %v2232 = vld [vmem:[%s2191 + $0xa2] sm:$0xff]
    %v2233 = vld [vmem:[%s2191 + $0xb2] sm:$0xff]
    %v2234 = vld [vmem:[%s2191 + $0xc2] sm:$0xff]
    %v2235 = vld [vmem:[%s2191 + $0xd2] sm:$0xff]
    %v2236 = vld [vmem:[%s2191 + $0xe2] sm:$0xff]
    %v2237 = vld [vmem:[%s2191 + $0xf2] sm:$0xff]
    %v2238 = vld [vmem:[%s2191 + $0x102] sm:$0xff]
    %v2239 = vld [vmem:[%s2191 + $0x112] sm:$0xff]
    %2256 = vrot.lane.b32.xlu0 %v2111, 4
    %v2257 = vpop.permute.xlu0 %2256
    %2258 = vrot.lane.b32.xlu0 %v2112, 4
    %v2259 = vpop.permute.xlu0 %2258
    %2260 = vrot.lane.b32.xlu0 %v2113, 4
    %v2261 = vpop.permute.xlu0 %2260
    %2262 = vrot.lane.b32.xlu0 %v2114, 4
    %v2263 = vpop.permute.xlu0 %2262
    %2264 = vrot.lane.b32.xlu0 %v2115, 4
    %v2265 = vpop.permute.xlu0 %2264
    %2266 = vrot.lane.b32.xlu0 %v2116, 4
    %v2267 = vpop.permute.xlu0 %2266
    %2268 = vrot.lane.b32.xlu0 %v2117, 4
    %v2269 = vpop.permute.xlu0 %2268
    %2270 = vrot.lane.b32.xlu0 %v2118, 4
    %v2271 = vpop.permute.xlu0 %2270
    %2272 = vrot.lane.b32.xlu0 %v2119, 4
    %v2273 = vpop.permute.xlu0 %2272
    %2274 = vrot.lane.b32.xlu0 %v2120, 4
    %v2275 = vpop.permute.xlu0 %2274
    %2276 = vrot.lane.b32.xlu0 %v2121, 4
    %v2277 = vpop.permute.xlu0 %2276
    %2278 = vrot.lane.b32.xlu0 %v2122, 4
    %v2279 = vpop.permute.xlu0 %2278
    %2280 = vrot.lane.b32.xlu0 %v2123, 4
    %v2281 = vpop.permute.xlu0 %2280
    %2282 = vrot.lane.b32.xlu0 %v2124, 4
    %v2283 = vpop.permute.xlu0 %2282
    %2284 = vrot.lane.b32.xlu0 %v2125, 4
    %v2285 = vpop.permute.xlu0 %2284
    %2286 = vrot.lane.b32.xlu0 %v2126, 4
    %v2287 = vpop.permute.xlu0 %2286
    %2320 = vrot.lane.b32.xlu0 %v2127, 8
    %v2321 = vpop.permute.xlu0 %2320
    %2322 = vrot.lane.b32.xlu0 %v2128, 8
    %v2323 = vpop.permute.xlu0 %2322
    %2324 = vrot.lane.b32.xlu0 %v2129, 8
    %v2325 = vpop.permute.xlu0 %2324
    %2326 = vrot.lane.b32.xlu0 %v2130, 8
    %v2327 = vpop.permute.xlu0 %2326
    %2328 = vrot.lane.b32.xlu0 %v2131, 8
    %v2329 = vpop.permute.xlu0 %2328
    %2330 = vrot.lane.b32.xlu0 %v2132, 8
    %v2331 = vpop.permute.xlu0 %2330
    %2332 = vrot.lane.b32.xlu0 %v2133, 8
    %v2333 = vpop.permute.xlu0 %2332
    %2334 = vrot.lane.b32.xlu0 %v2134, 8
    %v2335 = vpop.permute.xlu0 %2334
    %2336 = vrot.lane.b32.xlu0 %v2135, 8
    %v2337 = vpop.permute.xlu0 %2336
    %2338 = vrot.lane.b32.xlu0 %v2136, 8
    %v2339 = vpop.permute.xlu0 %2338
    %2340 = vrot.lane.b32.xlu0 %v2137, 8
    %v2341 = vpop.permute.xlu0 %2340
    %2342 = vrot.lane.b32.xlu0 %v2138, 8
    %v2343 = vpop.permute.xlu0 %2342
    %2344 = vrot.lane.b32.xlu0 %v2139, 8
    %v2345 = vpop.permute.xlu0 %2344
    %2346 = vrot.lane.b32.xlu0 %v2140, 8
    %v2347 = vpop.permute.xlu0 %2346
    %2348 = vrot.lane.b32.xlu0 %v2141, 8
    %v2349 = vpop.permute.xlu0 %2348
    %2350 = vrot.lane.b32.xlu0 %v2142, 8
    %v2351 = vpop.permute.xlu0 %2350
    %2384 = vrot.lane.b32.xlu0 %v2143, 12
    %v2385 = vpop.permute.xlu0 %2384
    %2386 = vrot.lane.b32.xlu0 %v2144, 12
    %v2387 = vpop.permute.xlu0 %2386
    %2388 = vrot.lane.b32.xlu0 %v2145, 12
    %v2389 = vpop.permute.xlu0 %2388
    %2390 = vrot.lane.b32.xlu0 %v2146, 12
    %v2391 = vpop.permute.xlu0 %2390
    %2392 = vrot.lane.b32.xlu0 %v2147, 12
    %v2393 = vpop.permute.xlu0 %2392
    %2394 = vrot.lane.b32.xlu0 %v2148, 12
    %v2395 = vpop.permute.xlu0 %2394
    %2396 = vrot.lane.b32.xlu0 %v2149, 12
    %v2397 = vpop.permute.xlu0 %2396
    %2398 = vrot.lane.b32.xlu0 %v2150, 12
    %v2399 = vpop.permute.xlu0 %2398
    %2400 = vrot.lane.b32.xlu0 %v2151, 12
    %v2401 = vpop.permute.xlu0 %2400
    %2402 = vrot.lane.b32.xlu0 %v2152, 12
    %v2403 = vpop.permute.xlu0 %2402
    %2404 = vrot.lane.b32.xlu0 %v2153, 12
    %v2405 = vpop.permute.xlu0 %2404
    %2406 = vrot.lane.b32.xlu0 %v2154, 12
    %v2407 = vpop.permute.xlu0 %2406
    %2408 = vrot.lane.b32.xlu0 %v2155, 12
    %v2409 = vpop.permute.xlu0 %2408
    %2410 = vrot.lane.b32.xlu0 %v2156, 12
    %v2411 = vpop.permute.xlu0 %2410
    %2412 = vrot.lane.b32.xlu0 %v2157, 12
    %v2413 = vpop.permute.xlu0 %2412
    %2414 = vrot.lane.b32.xlu0 %v2158, 12
    %v2415 = vpop.permute.xlu0 %2414
    %2448 = vrot.lane.b32.xlu0 %v2159, 16
    %v2449 = vpop.permute.xlu0 %2448
    %2450 = vrot.lane.b32.xlu0 %v2160, 16
    %v2451 = vpop.permute.xlu0 %2450
    %2452 = vrot.lane.b32.xlu0 %v2161, 16
    %v2453 = vpop.permute.xlu0 %2452
    %2454 = vrot.lane.b32.xlu0 %v2162, 16
    %v2455 = vpop.permute.xlu0 %2454
    %2456 = vrot.lane.b32.xlu0 %v2163, 16
    %v2457 = vpop.permute.xlu0 %2456
    %2458 = vrot.lane.b32.xlu0 %v2164, 16
    %v2459 = vpop.permute.xlu0 %2458
    %2460 = vrot.lane.b32.xlu0 %v2165, 16
    %v2461 = vpop.permute.xlu0 %2460
    %2462 = vrot.lane.b32.xlu0 %v2166, 16
    %v2463 = vpop.permute.xlu0 %2462
    %2464 = vrot.lane.b32.xlu0 %v2167, 16
    %v2465 = vpop.permute.xlu0 %2464
    %2466 = vrot.lane.b32.xlu0 %v2168, 16
    %v2467 = vpop.permute.xlu0 %2466
    %2468 = vrot.lane.b32.xlu0 %v2169, 16
    %v2469 = vpop.permute.xlu0 %2468
    %2470 = vrot.lane.b32.xlu0 %v2170, 16
    %v2471 = vpop.permute.xlu0 %2470
    %2472 = vrot.lane.b32.xlu0 %v2171, 16
    %v2473 = vpop.permute.xlu0 %2472
    %2474 = vrot.lane.b32.xlu0 %v2172, 16
    %v2475 = vpop.permute.xlu0 %2474
    %2476 = vrot.lane.b32.xlu0 %v2173, 16
    %v2477 = vpop.permute.xlu0 %2476
    %2478 = vrot.lane.b32.xlu0 %v2174, 16
    %v2479 = vpop.permute.xlu0 %2478
    %2512 = vrot.lane.b32.xlu0 %v2175, 20
    %v2513 = vpop.permute.xlu0 %2512
    %2514 = vrot.lane.b32.xlu0 %v2176, 20
    %v2515 = vpop.permute.xlu0 %2514
    %2516 = vrot.lane.b32.xlu0 %v2177, 20
    %v2517 = vpop.permute.xlu0 %2516
    %2518 = vrot.lane.b32.xlu0 %v2178, 20
    %v2519 = vpop.permute.xlu0 %2518
    %2520 = vrot.lane.b32.xlu0 %v2179, 20
    %v2521 = vpop.permute.xlu0 %2520
    %2522 = vrot.lane.b32.xlu0 %v2180, 20
    %v2523 = vpop.permute.xlu0 %2522
    %2524 = vrot.lane.b32.xlu0 %v2181, 20
    %v2525 = vpop.permute.xlu0 %2524
    %2526 = vrot.lane.b32.xlu0 %v2182, 20
    %v2527 = vpop.permute.xlu0 %2526
    %2528 = vrot.lane.b32.xlu0 %v2183, 20
    %v2529 = vpop.permute.xlu0 %2528
    %2530 = vrot.lane.b32.xlu0 %v2184, 20
    %v2531 = vpop.permute.xlu0 %2530
    %2532 = vrot.lane.b32.xlu0 %v2185, 20
    %v2533 = vpop.permute.xlu0 %2532
    %2534 = vrot.lane.b32.xlu0 %v2186, 20
    %v2535 = vpop.permute.xlu0 %2534
    %2536 = vrot.lane.b32.xlu0 %v2187, 20
    %v2537 = vpop.permute.xlu0 %2536
    %2538 = vrot.lane.b32.xlu0 %v2188, 20
    %v2539 = vpop.permute.xlu0 %2538
    %2540 = vrot.lane.b32.xlu0 %v2189, 20
    %v2541 = vpop.permute.xlu0 %2540
    %2542 = vrot.lane.b32.xlu0 %v2190, 20
    %v2543 = vpop.permute.xlu0 %2542
    %2576 = vrot.lane.b32.xlu0 %v2192, 24
    %v2577 = vpop.permute.xlu0 %2576
    %2578 = vrot.lane.b32.xlu0 %v2193, 24
    %v2579 = vpop.permute.xlu0 %2578
    %2580 = vrot.lane.b32.xlu0 %v2194, 24
    %v2581 = vpop.permute.xlu0 %2580
    %2582 = vrot.lane.b32.xlu0 %v2195, 24
    %v2583 = vpop.permute.xlu0 %2582
    %2584 = vrot.lane.b32.xlu0 %v2196, 24
    %v2585 = vpop.permute.xlu0 %2584
    %2586 = vrot.lane.b32.xlu0 %v2197, 24
    %v2587 = vpop.permute.xlu0 %2586
    %2588 = vrot.lane.b32.xlu0 %v2198, 24
    %v2589 = vpop.permute.xlu0 %2588
    %2590 = vrot.lane.b32.xlu0 %v2199, 24
    %v2591 = vpop.permute.xlu0 %2590
    %2592 = vrot.lane.b32.xlu0 %v2200, 24
    %v2593 = vpop.permute.xlu0 %2592
    %2594 = vrot.lane.b32.xlu0 %v2201, 24
    %v2595 = vpop.permute.xlu0 %2594
    %2596 = vrot.lane.b32.xlu0 %v2202, 24
    %v2597 = vpop.permute.xlu0 %2596
    %2598 = vrot.lane.b32.xlu0 %v2203, 24
    %v2599 = vpop.permute.xlu0 %2598
    %2600 = vrot.lane.b32.xlu0 %v2204, 24
    %v2601 = vpop.permute.xlu0 %2600
    %2602 = vrot.lane.b32.xlu0 %v2205, 24
    %v2603 = vpop.permute.xlu0 %2602
    %2604 = vrot.lane.b32.xlu0 %v2206, 24
    %v2605 = vpop.permute.xlu0 %2604
    %2606 = vrot.lane.b32.xlu0 %v2207, 24
    %v2607 = vpop.permute.xlu0 %2606
    %2640 = vrot.lane.b32.xlu0 %v2208, 28
    %v2641 = vpop.permute.xlu0 %2640
    %2642 = vrot.lane.b32.xlu0 %v2209, 28
    %v2643 = vpop.permute.xlu0 %2642
    %2644 = vrot.lane.b32.xlu0 %v2210, 28
    %v2645 = vpop.permute.xlu0 %2644
    %2646 = vrot.lane.b32.xlu0 %v2211, 28
    %v2647 = vpop.permute.xlu0 %2646
    %2648 = vrot.lane.b32.xlu0 %v2212, 28
    %v2649 = vpop.permute.xlu0 %2648
    %2650 = vrot.lane.b32.xlu0 %v2213, 28
    %v2651 = vpop.permute.xlu0 %2650
    %2652 = vrot.lane.b32.xlu0 %v2214, 28
    %v2653 = vpop.permute.xlu0 %2652
    %2654 = vrot.lane.b32.xlu0 %v2215, 28
    %v2655 = vpop.permute.xlu0 %2654
    %2656 = vrot.lane.b32.xlu0 %v2216, 28
    %v2657 = vpop.permute.xlu0 %2656
    %2658 = vrot.lane.b32.xlu0 %v2217, 28
    %v2659 = vpop.permute.xlu0 %2658
    %2660 = vrot.lane.b32.xlu0 %v2218, 28
    %v2661 = vpop.permute.xlu0 %2660
    %2662 = vrot.lane.b32.xlu0 %v2219, 28
    %v2663 = vpop.permute.xlu0 %2662
    %2664 = vrot.lane.b32.xlu0 %v2220, 28
    %v2665 = vpop.permute.xlu0 %2664
    %2666 = vrot.lane.b32.xlu0 %v2221, 28
    %v2667 = vpop.permute.xlu0 %2666
    %2668 = vrot.lane.b32.xlu0 %v2222, 28
    %v2669 = vpop.permute.xlu0 %2668
    %2670 = vrot.lane.b32.xlu0 %v2223, 28
    %v2671 = vpop.permute.xlu0 %2670
    %2704 = vrot.lane.b32.xlu0 %v2224, 32
    %v2705 = vpop.permute.xlu0 %2704
    %2706 = vrot.lane.b32.xlu0 %v2225, 32
    %v2707 = vpop.permute.xlu0 %2706
    %2708 = vrot.lane.b32.xlu0 %v2226, 32
    %v2709 = vpop.permute.xlu0 %2708
    %2710 = vrot.lane.b32.xlu0 %v2227, 32
    %v2711 = vpop.permute.xlu0 %2710
    %2712 = vrot.lane.b32.xlu0 %v2228, 32
    %v2713 = vpop.permute.xlu0 %2712
    %2714 = vrot.lane.b32.xlu0 %v2229, 32
    %v2715 = vpop.permute.xlu0 %2714
    %2716 = vrot.lane.b32.xlu0 %v2230, 32
    %v2717 = vpop.permute.xlu0 %2716
    %2718 = vrot.lane.b32.xlu0 %v2231, 32
    %v2719 = vpop.permute.xlu0 %2718
    %2720 = vrot.lane.b32.xlu0 %v2232, 32
    %v2721 = vpop.permute.xlu0 %2720
    %2722 = vrot.lane.b32.xlu0 %v2233, 32
    %v2723 = vpop.permute.xlu0 %2722
    %2724 = vrot.lane.b32.xlu0 %v2234, 32
    %v2725 = vpop.permute.xlu0 %2724
    %2726 = vrot.lane.b32.xlu0 %v2235, 32
    %v2727 = vpop.permute.xlu0 %2726
    %2728 = vrot.lane.b32.xlu0 %v2236, 32
    %v2729 = vpop.permute.xlu0 %2728
    %2730 = vrot.lane.b32.xlu0 %v2237, 32
    %v2731 = vpop.permute.xlu0 %2730
    %2732 = vrot.lane.b32.xlu0 %v2238, 32
    %v2733 = vpop.permute.xlu0 %2732
    %2734 = vrot.lane.b32.xlu0 %v2239, 32
    %v2735 = vpop.permute.xlu0 %2734
    %vm2752 = vcmask 31744
    %v2753 = vsel %vm2752, %v2095, %v2257
    %v2754 = vsel %vm2752, %v2096, %v2259
    %v2755 = vsel %vm2752, %v2097, %v2261
    %v2756 = vsel %vm2752, %v2098, %v2263
    %v2757 = vsel %vm2752, %v2099, %v2265
    %v2758 = vsel %vm2752, %v2100, %v2267
    %v2759 = vsel %vm2752, %v2101, %v2269
    %v2760 = vsel %vm2752, %v2102, %v2271
    %v2761 = vsel %vm2752, %v2103, %v2273
    %v2762 = vsel %vm2752, %v2104, %v2275
    %v2763 = vsel %vm2752, %v2105, %v2277
    %v2764 = vsel %vm2752, %v2106, %v2279
    %v2765 = vsel %vm2752, %v2107, %v2281
    %v2766 = vsel %vm2752, %v2108, %v2283
    %v2767 = vsel %vm2752, %v2109, %v2285
    %v2768 = vsel %vm2752, %v2110, %v2287
    %vm2769 = vcmask 64512
    %v2770 = vsel %vm2769, %v2753, %v2321
    %v2771 = vsel %vm2769, %v2754, %v2323
    %v2772 = vsel %vm2769, %v2755, %v2325
    %v2773 = vsel %vm2769, %v2756, %v2327
    %v2774 = vsel %vm2769, %v2757, %v2329
    %v2775 = vsel %vm2769, %v2758, %v2331
    %v2776 = vsel %vm2769, %v2759, %v2333
    %v2777 = vsel %vm2769, %v2760, %v2335
    %v2778 = vsel %vm2769, %v2761, %v2337
    %v2779 = vsel %vm2769, %v2762, %v2339
    %v2780 = vsel %vm2769, %v2763, %v2341
    %v2781 = vsel %vm2769, %v2764, %v2343
    %v2782 = vsel %vm2769, %v2765, %v2345
    %v2783 = vsel %vm2769, %v2766, %v2347
    %v2784 = vsel %vm2769, %v2767, %v2349
    %v2785 = vsel %vm2769, %v2768, %v2351
    %vm2786 = vcmask 97280
    %v2787 = vsel %vm2786, %v2770, %v2385
    %v2788 = vsel %vm2786, %v2771, %v2387
    %v2789 = vsel %vm2786, %v2772, %v2389
    %v2790 = vsel %vm2786, %v2773, %v2391
    %v2791 = vsel %vm2786, %v2774, %v2393
    %v2792 = vsel %vm2786, %v2775, %v2395
    %v2793 = vsel %vm2786, %v2776, %v2397
    %v2794 = vsel %vm2786, %v2777, %v2399
    %v2795 = vsel %vm2786, %v2778, %v2401
    %v2796 = vsel %vm2786, %v2779, %v2403
    %v2797 = vsel %vm2786, %v2780, %v2405
    %v2798 = vsel %vm2786, %v2781, %v2407
    %v2799 = vsel %vm2786, %v2782, %v2409
    %v2800 = vsel %vm2786, %v2783, %v2411
    %v2801 = vsel %vm2786, %v2784, %v2413
    %v2802 = vsel %vm2786, %v2785, %v2415
    %vm2803 = vcmask 130048
    %v2804 = vsel %vm2803, %v2787, %v2449
    %v2805 = vsel %vm2803, %v2788, %v2451
    %v2806 = vsel %vm2803, %v2789, %v2453
    %v2807 = vsel %vm2803, %v2790, %v2455
    %v2808 = vsel %vm2803, %v2791, %v2457
    %v2809 = vsel %vm2803, %v2792, %v2459
    %v2810 = vsel %vm2803, %v2793, %v2461
    %v2811 = vsel %vm2803, %v2794, %v2463
    %v2812 = vsel %vm2803, %v2795, %v2465
    %v2813 = vsel %vm2803, %v2796, %v2467
    %v2814 = vsel %vm2803, %v2797, %v2469
    %v2815 = vsel %vm2803, %v2798, %v2471
    %v2816 = vsel %vm2803, %v2799, %v2473
    %v2817 = vsel %vm2803, %v2800, %v2475
    %v2818 = vsel %vm2803, %v2801, %v2477
    %v2819 = vsel %vm2803, %v2802, %v2479
    %vm2820 = vcmask 162816
    %v2821 = vsel %vm2820, %v2804, %v2513
    %v2822 = vsel %vm2820, %v2805, %v2515
    %v2823 = vsel %vm2820, %v2806, %v2517
    %v2824 = vsel %vm2820, %v2807, %v2519
    %v2825 = vsel %vm2820, %v2808, %v2521
    %v2826 = vsel %vm2820, %v2809, %v2523
    %v2827 = vsel %vm2820, %v2810, %v2525
    %v2828 = vsel %vm2820, %v2811, %v2527
    %v2829 = vsel %vm2820, %v2812, %v2529
    %v2830 = vsel %vm2820, %v2813, %v2531
    %v2831 = vsel %vm2820, %v2814, %v2533
    %v2832 = vsel %vm2820, %v2815, %v2535
    %v2833 = vsel %vm2820, %v2816, %v2537
    %v2834 = vsel %vm2820, %v2817, %v2539
    %v2835 = vsel %vm2820, %v2818, %v2541
    %v2836 = vsel %vm2820, %v2819, %v2543
    %vm2837 = vcmask 195584
    %v2838 = vsel %vm2837, %v2821, %v2577
    %v2839 = vsel %vm2837, %v2822, %v2579
    %v2840 = vsel %vm2837, %v2823, %v2581
    %v2841 = vsel %vm2837, %v2824, %v2583
    %v2842 = vsel %vm2837, %v2825, %v2585
    %v2843 = vsel %vm2837, %v2826, %v2587
    %v2844 = vsel %vm2837, %v2827, %v2589
    %v2845 = vsel %vm2837, %v2828, %v2591
    %v2846 = vsel %vm2837, %v2829, %v2593
    %v2847 = vsel %vm2837, %v2830, %v2595
    %v2848 = vsel %vm2837, %v2831, %v2597
    %v2849 = vsel %vm2837, %v2832, %v2599
    %v2850 = vsel %vm2837, %v2833, %v2601
    %v2851 = vsel %vm2837, %v2834, %v2603
    %v2852 = vsel %vm2837, %v2835, %v2605
    %v2853 = vsel %vm2837, %v2836, %v2607
    %vm2854 = vcmask 228352
    %v2855 = vsel %vm2854, %v2838, %v2641
    %v2856 = vsel %vm2854, %v2839, %v2643
    %v2857 = vsel %vm2854, %v2840, %v2645
    %v2858 = vsel %vm2854, %v2841, %v2647
    %v2859 = vsel %vm2854, %v2842, %v2649
    %v2860 = vsel %vm2854, %v2843, %v2651
    %v2861 = vsel %vm2854, %v2844, %v2653
    %v2862 = vsel %vm2854, %v2845, %v2655
    %v2863 = vsel %vm2854, %v2846, %v2657
    %v2864 = vsel %vm2854, %v2847, %v2659
    %v2865 = vsel %vm2854, %v2848, %v2661
    %v2866 = vsel %vm2854, %v2849, %v2663
    %v2867 = vsel %vm2854, %v2850, %v2665
    %v2868 = vsel %vm2854, %v2851, %v2667
    %v2869 = vsel %vm2854, %v2852, %v2669
    %v2870 = vsel %vm2854, %v2853, %v2671
    %vm2871 = vcmask 261120
    %v2872 = vsel %vm2871, %v2855, %v2705
    %v2873 = vsel %vm2871, %v2856, %v2707
    %v2874 = vsel %vm2871, %v2857, %v2709
    %v2875 = vsel %vm2871, %v2858, %v2711
    %v2876 = vsel %vm2871, %v2859, %v2713
    %v2877 = vsel %vm2871, %v2860, %v2715
    %v2878 = vsel %vm2871, %v2861, %v2717
    %v2879 = vsel %vm2871, %v2862, %v2719
    %v2880 = vsel %vm2871, %v2863, %v2721
    %v2881 = vsel %vm2871, %v2864, %v2723
    %v2882 = vsel %vm2871, %v2865, %v2725
    %v2883 = vsel %vm2871, %v2866, %v2727
    %v2884 = vsel %vm2871, %v2867, %v2729
    %v2885 = vsel %vm2871, %v2868, %v2731
    %v2886 = vsel %vm2871, %v2869, %v2733
    %v2887 = vsel %vm2871, %v2870, %v2735
    %vm2888 = vcmask 293888
    %v2889 = vsel %vm2888, %v2872, 0.0
    %v2890 = vsel %vm2888, %v2873, 0.0
    %v2891 = vsel %vm2888, %v2874, 0.0
    %v2892 = vsel %vm2888, %v2875, 0.0
    %v2893 = vsel %vm2888, %v2876, 0.0
    %v2894 = vsel %vm2888, %v2877, 0.0
    %v2895 = vsel %vm2888, %v2878, 0.0
    %v2896 = vsel %vm2888, %v2879, 0.0
    %v2897 = vsel %vm2888, %v2880, 0.0
    %v2898 = vsel %vm2888, %v2881, 0.0
    %v2899 = vsel %vm2888, %v2882, 0.0
    %v2900 = vsel %vm2888, %v2883, 0.0
    %v2901 = vsel %vm2888, %v2884, 0.0
    %v2902 = vsel %vm2888, %v2885, 0.0
    %v2903 = vsel %vm2888, %v2886, 0.0
    %v2904 = vsel %vm2888, %v2887, 0.0
    %v2905 = vpack.c.bf16 %v2890, %v2889
    %v2906 = vpack.c.bf16 %v2892, %v2891
    %v2907 = vpack.c.bf16 %v2894, %v2893
    %v2908 = vpack.c.bf16 %v2896, %v2895
    %v2909 = vpack.c.bf16 %v2898, %v2897
    %v2910 = vpack.c.bf16 %v2900, %v2899
    %v2911 = vpack.c.bf16 %v2902, %v2901
    %v2912 = vpack.c.bf16 %v2904, %v2903
    %v2913 = vld [vmem:[#allocation6] sm:$0xf]
    %v2914 = vld [vmem:[#allocation6 + $0x4] sm:$0xf]
    %v2915 = vld [vmem:[#allocation6 + $0x8] sm:$0xf]
    %v2916 = vld [vmem:[#allocation6 + $0xc] sm:$0xf]
    %v2917 = vld [vmem:[#allocation6 + $0x10] sm:$0xf]
    %v2918 = vld [vmem:[#allocation6 + $0x14] sm:$0xf]
    %v2919 = vld [vmem:[#allocation6 + $0x18] sm:$0xf]
    %v2920 = vld [vmem:[#allocation6 + $0x1c] sm:$0xf]
    %v2921 = vld [vmem:[#allocation6 + $0x20] sm:$0xf]
    %v2922 = vld [vmem:[#allocation6 + $0x24] sm:$0xf]
    %v2923 = vld [vmem:[#allocation6 + $0x28] sm:$0xf]
    %v2924 = vld [vmem:[#allocation6 + $0x2c] sm:$0xf]
    %v2925 = vld [vmem:[#allocation6 + $0x30] sm:$0xf]
    %v2926 = vld [vmem:[#allocation6 + $0x34] sm:$0xf]
    %v2927 = vld [vmem:[#allocation6 + $0x38] sm:$0xf]
    %v2928 = vld [vmem:[#allocation6 + $0x3c] sm:$0xf]
    %v2945 = vunpack.c.l.b16 %v2913
    %v2946 = vunpack.c.l.b16 %v2914
    %v2947 = vunpack.c.l.b16 %v2915
    %v2948 = vunpack.c.l.b16 %v2916
    %v2949 = vunpack.c.l.b16 %v2917
    %v2950 = vunpack.c.l.b16 %v2918
    %v2951 = vunpack.c.l.b16 %v2919
    %v2952 = vunpack.c.l.b16 %v2920
    %v2953 = vunpack.c.l.b16 %v2921
    %v2954 = vunpack.c.l.b16 %v2922
    %v2955 = vunpack.c.l.b16 %v2923
    %v2956 = vunpack.c.l.b16 %v2924
    %v2957 = vunpack.c.l.b16 %v2925
    %v2958 = vunpack.c.l.b16 %v2926
    %v2959 = vunpack.c.l.b16 %v2927
    %v2960 = vunpack.c.l.b16 %v2928
    %v2961 = vpack.c.b16 %v2946, %v2945
    %v2962 = vpack.c.b16 %v2948, %v2947
    %v2963 = vpack.c.b16 %v2950, %v2949
    %v2964 = vpack.c.b16 %v2952, %v2951
    %v2965 = vpack.c.b16 %v2954, %v2953
    %v2966 = vpack.c.b16 %v2956, %v2955
    %v2967 = vpack.c.b16 %v2958, %v2957
    %v2968 = vpack.c.b16 %v2960, %v2959
    %2977 = vmatprep.subr.bf16.mxu0 0
    %2978 = vmatpush1.bf16.msra.mxu0 %v2968
    %2979 = vmatprep.subr.bf16.mxu0 0
    %2980 = vmatpush1.bf16.msra.mxu0 %v2967
    %2981 = vmatprep.subr.bf16.mxu0 0
    %2982 = vmatpush1.bf16.msra.mxu0 %v2966
    %2983 = vmatprep.subr.bf16.mxu0 0
    %2984 = vmatpush1.bf16.msra.mxu0 %v2965
    %2985 = vmatprep.subr.bf16.mxu0 0
    %2986 = vmatpush1.bf16.msra.mxu0 %v2964
    %2987 = vmatprep.subr.bf16.mxu0 0
    %2988 = vmatpush1.bf16.msra.mxu0 %v2963
    %2989 = vmatprep.subr.bf16.mxu0 0
    %2990 = vmatpush1.bf16.msra.mxu0 %v2962
    %2991 = vmatprep.subr.bf16.mxu0 0
    %2992 = vmatpush1.bf16.msra.mxu0 %v2961
    %2993 = vmatprep.subr.bf16.mxu0 0
    %2994 = vmatpush2.bf16.msra.mxu0 0
    %2995 = vmatprep.subr.bf16.mxu0 0
    %2996 = vmatpush2.bf16.msra.mxu0 0
    %2997 = vmatprep.subr.bf16.mxu0 0
    %2998 = vmatpush2.bf16.msra.mxu0 0
    %2999 = vmatprep.subr.bf16.mxu0 0
    %3000 = vmatpush2.bf16.msra.mxu0 0
    %3001 = vmatprep.subr.bf16.mxu0 0
    %3002 = vmatpush2.bf16.msra.mxu0 0
    %3003 = vmatprep.subr.bf16.mxu0 0
    %3004 = vmatpush2.bf16.msra.mxu0 0
    %3005 = vmatprep.subr.bf16.mxu0 0
    %3006 = vmatpush2.bf16.msra.mxu0 0
    %3007 = vmatprep.subr.bf16.mxu0 0
    %3008 = vmatpush2.bf16.msra.mxu0 0
    %3009 = vmatprep.mubr.bf16.mxu0 0
    %3010 = vmatmul.mubr.bf16.gmra.mxu0 %v2905
    %v3011 = vpop.f32.mrf.mxu0
    %v3012 = vadd.f32 0.0, %v3011
    %v3013 = vpop.f32.mrf.mxu0
    %v3014 = vpop.f32.mrf.mxu0
    %v3015 = vadd.f32 0.0, %v3014
    %v3016 = vpop.f32.mrf.mxu0
    %3017 = vmatprep.mubr.bf16.mxu0 0
    %3018 = vmatmul.mubr.bf16.gmra.mxu0 %v2906
    %v3019 = vpop.f32.mrf.mxu0
    %v3020 = vadd.f32 0.0, %v3019
    %v3021 = vpop.f32.mrf.mxu0
    %v3022 = vpop.f32.mrf.mxu0
    %v3023 = vadd.f32 0.0, %v3022
    %v3024 = vpop.f32.mrf.mxu0
    %3025 = vmatprep.mubr.bf16.mxu0 0
    %3026 = vmatmul.mubr.bf16.gmra.mxu0 %v2907
    %v3027 = vpop.f32.mrf.mxu0
    %v3028 = vadd.f32 0.0, %v3027
    %v3029 = vpop.f32.mrf.mxu0
    %v3030 = vpop.f32.mrf.mxu0
    %v3031 = vadd.f32 0.0, %v3030
    %v3032 = vpop.f32.mrf.mxu0
    %3033 = vmatprep.mubr.bf16.mxu0 0
    %3034 = vmatmul.mubr.bf16.gmra.mxu0 %v2908
    %v3035 = vpop.f32.mrf.mxu0
    %v3036 = vadd.f32 0.0, %v3035
    %v3037 = vpop.f32.mrf.mxu0
    %v3038 = vpop.f32.mrf.mxu0
    %v3039 = vadd.f32 0.0, %v3038
    %v3040 = vpop.f32.mrf.mxu0
    %3041 = vmatprep.mubr.bf16.mxu0 0
    %3042 = vmatmul.mubr.bf16.gmra.mxu0 %v2909
    %v3043 = vpop.f32.mrf.mxu0
    %v3044 = vadd.f32 0.0, %v3043
    %v3045 = vpop.f32.mrf.mxu0
    %v3046 = vpop.f32.mrf.mxu0
    %v3047 = vadd.f32 0.0, %v3046
    %v3048 = vpop.f32.mrf.mxu0
    %3049 = vmatprep.mubr.bf16.mxu0 0
    %3050 = vmatmul.mubr.bf16.gmra.mxu0 %v2910
    %v3051 = vpop.f32.mrf.mxu0
    %v3052 = vadd.f32 0.0, %v3051
    %v3053 = vpop.f32.mrf.mxu0
    %v3054 = vpop.f32.mrf.mxu0
    %v3055 = vadd.f32 0.0, %v3054
    %v3056 = vpop.f32.mrf.mxu0
    %3057 = vmatprep.mubr.bf16.mxu0 0
    %3058 = vmatmul.mubr.bf16.gmra.mxu0 %v2911
    %v3059 = vpop.f32.mrf.mxu0
    %v3060 = vadd.f32 0.0, %v3059
    %v3061 = vpop.f32.mrf.mxu0
    %v3062 = vpop.f32.mrf.mxu0
    %v3063 = vadd.f32 0.0, %v3062
    %v3064 = vpop.f32.mrf.mxu0
    %3065 = vmatprep.mubr.bf16.mxu0 0
    %3066 = vmatmul.mubr.bf16.gmra.mxu0 %v2912
    %v3067 = vpop.f32.mrf.mxu0
    %v3068 = vadd.f32 0.0, %v3067
    %v3069 = vpop.f32.mrf.mxu0
    %v3070 = vpop.f32.mrf.mxu0
    %v3071 = vadd.f32 0.0, %v3070
    %v3072 = vpop.f32.mrf.mxu0
    %3073 = vdwg.mxu0
    %v3074 = vadd.f32 %v3012, %v3015
    %v3075 = vadd.f32 %v3074, %v3020
    %v3076 = vadd.f32 %v3075, %v3023
    %v3077 = vadd.f32 %v3076, %v3028
    %v3078 = vadd.f32 %v3077, %v3031
    %v3079 = vadd.f32 %v3078, %v3036
    %v3080 = vadd.f32 %v3079, %v3039
    %v3081 = vadd.f32 %v3080, %v3044
    %v3082 = vadd.f32 %v3081, %v3047
    %v3083 = vadd.f32 %v3082, %v3052
    %v3084 = vadd.f32 %v3083, %v3055
    %v3085 = vadd.f32 %v3084, %v3060
    %v3086 = vadd.f32 %v3085, %v3063
    %v3087 = vadd.f32 %v3086, %v3068
    %v3088 = vadd.f32 %v3087, %v3071
    %v3089 = vrot.slane %v3088, 4
    %v3090 = vadd.f32 %v3088, %v3089
    %v3091 = vrot.slane %v3090, 2
    %v3092 = vadd.f32 %v3090, %v3091
    %v3093 = vrot.slane %v3092, 1
    %v3094 = vadd.f32 %v3092, %v3093
    %v3095 = vmul.f32 %v3094, 0.0078125
    %v3096 = vmul.f32 %v3012, %v3012
    %v3097 = vmul.f32 %v3015, %v3015
    %v3098 = vmul.f32 %v3020, %v3020
    %v3099 = vmul.f32 %v3023, %v3023
    %v3100 = vmul.f32 %v3028, %v3028
    %v3101 = vmul.f32 %v3031, %v3031
    %v3102 = vmul.f32 %v3036, %v3036
    %v3103 = vmul.f32 %v3039, %v3039
    %v3104 = vmul.f32 %v3044, %v3044
    %v3105 = vmul.f32 %v3047, %v3047
    %v3106 = vmul.f32 %v3052, %v3052
    %v3107 = vmul.f32 %v3055, %v3055
    %v3108 = vmul.f32 %v3060, %v3060
    %v3109 = vmul.f32 %v3063, %v3063
    %v3110 = vmul.f32 %v3068, %v3068
    %v3111 = vmul.f32 %v3071, %v3071
    %v3112 = vadd.f32 %v3096, %v3097
    %v3113 = vadd.f32 %v3112, %v3098
    %v3114 = vadd.f32 %v3113, %v3099
    %v3115 = vadd.f32 %v3114, %v3100
    %v3116 = vadd.f32 %v3115, %v3101
    %v3117 = vadd.f32 %v3116, %v3102
    %v3118 = vadd.f32 %v3117, %v3103
    %v3119 = vadd.f32 %v3118, %v3104
    %v3120 = vadd.f32 %v3119, %v3105
    %v3121 = vadd.f32 %v3120, %v3106
    %v3122 = vadd.f32 %v3121, %v3107
    %v3123 = vadd.f32 %v3122, %v3108
    %v3124 = vadd.f32 %v3123, %v3109
    %v3125 = vadd.f32 %v3124, %v3110
    %v3126 = vadd.f32 %v3125, %v3111
    %v3127 = vrot.slane %v3126, 4
    %v3128 = vadd.f32 %v3126, %v3127
    %v3129 = vrot.slane %v3128, 2
    %v3130 = vadd.f32 %v3128, %v3129
    %v3131 = vrot.slane %v3130, 1
    %v3132 = vadd.f32 %v3130, %v3131
    %v3133 = vmul.f32 %v3132, 0.0078125
    %v3134 = vmul.f32 %v3095, %v3095
    %v3135 = vsub.f32 %v3133, %v3134
    %v3136 = vmax.f32 %v3135, 0.0
    %v3137 = vld [vmem:[%s2] sm:$0x1]
    %v3138 = vadd.f32 %v3136, 1e-05
    %v3139 = vrsqrt.pop %v3138
    %v3140 = vmul.f32 %v3137, %v3139
    %v3141 = vld [vmem:[%s3] sm:$0x1]
    %v3142 = vmul.f32 %v3095, %v3140
    %v3143 = vsub.f32 %v3141, %v3142
    %v3145 = vlaneseq
    %v3146 = vshrl.u32 %v3145, 7
    %v3147 = vsub.s32 0, %v3146
    %v3148 = vrot.slane %v3140, %v3147
    %v3150 = vmul.f32 %v3012, %v3148
    %v3151 = vmul.f32 %v3015, %v3148
    %v3152 = vmul.f32 %v3020, %v3148
    %v3153 = vmul.f32 %v3023, %v3148
    %v3154 = vmul.f32 %v3028, %v3148
    %v3155 = vmul.f32 %v3031, %v3148
    %v3156 = vmul.f32 %v3036, %v3148
    %v3157 = vmul.f32 %v3039, %v3148
    %v3158 = vmul.f32 %v3044, %v3148
    %v3159 = vmul.f32 %v3047, %v3148
    %v3160 = vmul.f32 %v3052, %v3148
    %v3161 = vmul.f32 %v3055, %v3148
    %v3162 = vmul.f32 %v3060, %v3148
    %v3163 = vmul.f32 %v3063, %v3148
    %v3164 = vmul.f32 %v3068, %v3148
    %v3165 = vmul.f32 %v3071, %v3148
    %v3167 = vlaneseq
    %v3168 = vshrl.u32 %v3167, 7
    %v3169 = vsub.s32 0, %v3168
    %v3170 = vrot.slane %v3143, %v3169
    %v3172 = vadd.f32 %v3150, %v3170
    %v3173 = vadd.f32 %v3151, %v3170
    %v3174 = vadd.f32 %v3152, %v3170
    %v3175 = vadd.f32 %v3153, %v3170
    %v3176 = vadd.f32 %v3154, %v3170
    %v3177 = vadd.f32 %v3155, %v3170
    %v3178 = vadd.f32 %v3156, %v3170
    %v3179 = vadd.f32 %v3157, %v3170
    %v3180 = vadd.f32 %v3158, %v3170
    %v3181 = vadd.f32 %v3159, %v3170
    %v3182 = vadd.f32 %v3160, %v3170
    %v3183 = vadd.f32 %v3161, %v3170
    %v3184 = vadd.f32 %v3162, %v3170
    %v3185 = vadd.f32 %v3163, %v3170
    %v3186 = vadd.f32 %v3164, %v3170
    %v3187 = vadd.f32 %v3165, %v3170
    %vm3188 = vcmp.gt.f32.partialorder %v3172, 0.0
    %vm3189 = vcmp.gt.f32.partialorder %v3173, 0.0
    %vm3190 = vcmp.gt.f32.partialorder %v3174, 0.0
    %vm3191 = vcmp.gt.f32.partialorder %v3175, 0.0
    %vm3192 = vcmp.gt.f32.partialorder %v3176, 0.0
    %vm3193 = vcmp.gt.f32.partialorder %v3177, 0.0
    %vm3194 = vcmp.gt.f32.partialorder %v3178, 0.0
    %vm3195 = vcmp.gt.f32.partialorder %v3179, 0.0
    %vm3196 = vcmp.gt.f32.partialorder %v3180, 0.0
    %vm3197 = vcmp.gt.f32.partialorder %v3181, 0.0
    %vm3198 = vcmp.gt.f32.partialorder %v3182, 0.0
    %vm3199 = vcmp.gt.f32.partialorder %v3183, 0.0
    %vm3200 = vcmp.gt.f32.partialorder %v3184, 0.0
    %vm3201 = vcmp.gt.f32.partialorder %v3185, 0.0
    %vm3202 = vcmp.gt.f32.partialorder %v3186, 0.0
    %vm3203 = vcmp.gt.f32.partialorder %v3187, 0.0
    %v3204 = vmul.f32 %v3172, 0.2
    %v3205 = vmul.f32 %v3173, 0.2
    %v3206 = vmul.f32 %v3174, 0.2
    %v3207 = vmul.f32 %v3175, 0.2
    %v3208 = vmul.f32 %v3176, 0.2
    %v3209 = vmul.f32 %v3177, 0.2
    %v3210 = vmul.f32 %v3178, 0.2
    %v3211 = vmul.f32 %v3179, 0.2
    %v3212 = vmul.f32 %v3180, 0.2
    %v3213 = vmul.f32 %v3181, 0.2
    %v3214 = vmul.f32 %v3182, 0.2
    %v3215 = vmul.f32 %v3183, 0.2
    %v3216 = vmul.f32 %v3184, 0.2
    %v3217 = vmul.f32 %v3185, 0.2
    %v3218 = vmul.f32 %v3186, 0.2
    %v3219 = vmul.f32 %v3187, 0.2
    %v3220 = vsel %vm3188, %v3172, %v3204
    %v3221 = vsel %vm3189, %v3173, %v3205
    %v3222 = vsel %vm3190, %v3174, %v3206
    %v3223 = vsel %vm3191, %v3175, %v3207
    %v3224 = vsel %vm3192, %v3176, %v3208
    %v3225 = vsel %vm3193, %v3177, %v3209
    %v3226 = vsel %vm3194, %v3178, %v3210
    %v3227 = vsel %vm3195, %v3179, %v3211
    %v3228 = vsel %vm3196, %v3180, %v3212
    %v3229 = vsel %vm3197, %v3181, %v3213
    %v3230 = vsel %vm3198, %v3182, %v3214
    %v3231 = vsel %vm3199, %v3183, %v3215
    %v3232 = vsel %vm3200, %v3184, %v3216
    %v3233 = vsel %vm3201, %v3185, %v3217
    %v3234 = vsel %vm3202, %v3186, %v3218
    %v3235 = vsel %vm3203, %v3187, %v3219
    %3236 = vst [vmem:[%s2078 + $0x1] sm:$0xff] %v3220
    %3237 = vst [vmem:[%s2078 + $0x11] sm:$0xff] %v3221
    %3238 = vst [vmem:[%s2078 + $0x21] sm:$0xff] %v3222
    %3239 = vst [vmem:[%s2078 + $0x31] sm:$0xff] %v3223
    %3240 = vst [vmem:[%s2078 + $0x41] sm:$0xff] %v3224
    %3241 = vst [vmem:[%s2078 + $0x51] sm:$0xff] %v3225
    %3242 = vst [vmem:[%s2078 + $0x61] sm:$0xff] %v3226
    %3243 = vst [vmem:[%s2078 + $0x71] sm:$0xff] %v3227
    %3244 = vst [vmem:[%s2078 + $0xa1] sm:$0xff] %v3228
    %3245 = vst [vmem:[%s2078 + $0xb1] sm:$0xff] %v3229
    %3246 = vst [vmem:[%s2078 + $0xc1] sm:$0xff] %v3230
    %3247 = vst [vmem:[%s2078 + $0xd1] sm:$0xff] %v3231
    %3248 = vst [vmem:[%s2078 + $0xe1] sm:$0xff] %v3232
    %3249 = vst [vmem:[%s2078 + $0xf1] sm:$0xff] %v3233
    %3250 = vst [vmem:[%s2078 + $0x101] sm:$0xff] %v3234
    %3251 = vst [vmem:[%s2078 + $0x111] sm:$0xff] %v3235
    %v3252 = vld [vmem:[#allocation2] sm:$0xff]
    %v3253 = vld [vmem:[#allocation2 + $0x10] sm:$0xff]
    %v3254 = vld [vmem:[#allocation2 + $0x20] sm:$0xff]
    %v3255 = vld [vmem:[#allocation2 + $0x30] sm:$0xff]
    %v3256 = vld [vmem:[#allocation2 + $0x40] sm:$0xff]
    %v3257 = vld [vmem:[#allocation2 + $0x50] sm:$0xff]
    %v3258 = vld [vmem:[#allocation2 + $0x60] sm:$0xff]
    %v3259 = vld [vmem:[#allocation2 + $0x70] sm:$0xff]
    %v3260 = vld [vmem:[#allocation2 + $0xa0] sm:$0xff]
    %v3261 = vld [vmem:[#allocation2 + $0xb0] sm:$0xff]
    %v3262 = vld [vmem:[#allocation2 + $0xc0] sm:$0xff]
    %v3263 = vld [vmem:[#allocation2 + $0xd0] sm:$0xff]
    %v3264 = vld [vmem:[#allocation2 + $0xe0] sm:$0xff]
    %v3265 = vld [vmem:[#allocation2 + $0xf0] sm:$0xff]
    %v3266 = vld [vmem:[#allocation2 + $0x100] sm:$0xff]
    %v3267 = vld [vmem:[#allocation2 + $0x110] sm:$0xff]
    %v3268 = vld [vmem:[#allocation2 + $0x1] sm:$0xff]
    %v3269 = vld [vmem:[#allocation2 + $0x11] sm:$0xff]
    %v3270 = vld [vmem:[#allocation2 + $0x21] sm:$0xff]
    %v3271 = vld [vmem:[#allocation2 + $0x31] sm:$0xff]
    %v3272 = vld [vmem:[#allocation2 + $0x41] sm:$0xff]
    %v3273 = vld [vmem:[#allocation2 + $0x51] sm:$0xff]
    %v3274 = vld [vmem:[#allocation2 + $0x61] sm:$0xff]
    %v3275 = vld [vmem:[#allocation2 + $0x71] sm:$0xff]
    %v3276 = vld [vmem:[#allocation2 + $0xa1] sm:$0xff]
    %v3277 = vld [vmem:[#allocation2 + $0xb1] sm:$0xff]
    %v3278 = vld [vmem:[#allocation2 + $0xc1] sm:$0xff]
    %v3279 = vld [vmem:[#allocation2 + $0xd1] sm:$0xff]
    %v3280 = vld [vmem:[#allocation2 + $0xe1] sm:$0xff]
    %v3281 = vld [vmem:[#allocation2 + $0xf1] sm:$0xff]
    %v3282 = vld [vmem:[#allocation2 + $0x101] sm:$0xff]
    %v3283 = vld [vmem:[#allocation2 + $0x111] sm:$0xff]
    %v3284 = vld [vmem:[#allocation2 + $0x2] sm:$0xff]
    %v3285 = vld [vmem:[#allocation2 + $0x12] sm:$0xff]
    %v3286 = vld [vmem:[#allocation2 + $0x22] sm:$0xff]
    %v3287 = vld [vmem:[#allocation2 + $0x32] sm:$0xff]
    %v3288 = vld [vmem:[#allocation2 + $0x42] sm:$0xff]
    %v3289 = vld [vmem:[#allocation2 + $0x52] sm:$0xff]
    %v3290 = vld [vmem:[#allocation2 + $0x62] sm:$0xff]
    %v3291 = vld [vmem:[#allocation2 + $0x72] sm:$0xff]
    %v3292 = vld [vmem:[#allocation2 + $0xa2] sm:$0xff]
    %v3293 = vld [vmem:[#allocation2 + $0xb2] sm:$0xff]
    %v3294 = vld [vmem:[#allocation2 + $0xc2] sm:$0xff]
    %v3295 = vld [vmem:[#allocation2 + $0xd2] sm:$0xff]
    %v3296 = vld [vmem:[#allocation2 + $0xe2] sm:$0xff]
    %v3297 = vld [vmem:[#allocation2 + $0xf2] sm:$0xff]
    %v3298 = vld [vmem:[#allocation2 + $0x102] sm:$0xff]
    %v3299 = vld [vmem:[#allocation2 + $0x112] sm:$0xff]
    %v3300 = vld [vmem:[%s2078] sm:$0xff]
    %v3301 = vld [vmem:[%s2078 + $0x10] sm:$0xff]
    %v3302 = vld [vmem:[%s2078 + $0x20] sm:$0xff]
    %v3303 = vld [vmem:[%s2078 + $0x30] sm:$0xff]
    %v3304 = vld [vmem:[%s2078 + $0x40] sm:$0xff]
    %v3305 = vld [vmem:[%s2078 + $0x50] sm:$0xff]
    %v3306 = vld [vmem:[%s2078 + $0x60] sm:$0xff]
    %v3307 = vld [vmem:[%s2078 + $0x70] sm:$0xff]
    %v3308 = vld [vmem:[%s2078 + $0xa0] sm:$0xff]
    %v3309 = vld [vmem:[%s2078 + $0xb0] sm:$0xff]
    %v3310 = vld [vmem:[%s2078 + $0xc0] sm:$0xff]
    %v3311 = vld [vmem:[%s2078 + $0xd0] sm:$0xff]
    %v3312 = vld [vmem:[%s2078 + $0xe0] sm:$0xff]
    %v3313 = vld [vmem:[%s2078 + $0xf0] sm:$0xff]
    %v3314 = vld [vmem:[%s2078 + $0x100] sm:$0xff]
    %v3315 = vld [vmem:[%s2078 + $0x110] sm:$0xff]
    %v3316 = vld [vmem:[%s2078 + $0x1] sm:$0xff]
    %v3317 = vld [vmem:[%s2078 + $0x11] sm:$0xff]
    %v3318 = vld [vmem:[%s2078 + $0x21] sm:$0xff]
    %v3319 = vld [vmem:[%s2078 + $0x31] sm:$0xff]
    %v3320 = vld [vmem:[%s2078 + $0x41] sm:$0xff]
    %v3321 = vld [vmem:[%s2078 + $0x51] sm:$0xff]
    %v3322 = vld [vmem:[%s2078 + $0x61] sm:$0xff]
    %v3323 = vld [vmem:[%s2078 + $0x71] sm:$0xff]
    %v3324 = vld [vmem:[%s2078 + $0xa1] sm:$0xff]
    %v3325 = vld [vmem:[%s2078 + $0xb1] sm:$0xff]
    %v3326 = vld [vmem:[%s2078 + $0xc1] sm:$0xff]
    %v3327 = vld [vmem:[%s2078 + $0xd1] sm:$0xff]
    %v3328 = vld [vmem:[%s2078 + $0xe1] sm:$0xff]
    %v3329 = vld [vmem:[%s2078 + $0xf1] sm:$0xff]
    %v3330 = vld [vmem:[%s2078 + $0x101] sm:$0xff]
    %v3331 = vld [vmem:[%s2078 + $0x111] sm:$0xff]
    %v3332 = vld [vmem:[%s2078 + $0x2] sm:$0xff]
    %v3333 = vld [vmem:[%s2078 + $0x12] sm:$0xff]
    %v3334 = vld [vmem:[%s2078 + $0x22] sm:$0xff]
    %v3335 = vld [vmem:[%s2078 + $0x32] sm:$0xff]
    %v3336 = vld [vmem:[%s2078 + $0x42] sm:$0xff]
    %v3337 = vld [vmem:[%s2078 + $0x52] sm:$0xff]
    %v3338 = vld [vmem:[%s2078 + $0x62] sm:$0xff]
    %v3339 = vld [vmem:[%s2078 + $0x72] sm:$0xff]
    %v3340 = vld [vmem:[%s2078 + $0xa2] sm:$0xff]
    %v3341 = vld [vmem:[%s2078 + $0xb2] sm:$0xff]
    %v3342 = vld [vmem:[%s2078 + $0xc2] sm:$0xff]
    %v3343 = vld [vmem:[%s2078 + $0xd2] sm:$0xff]
    %v3344 = vld [vmem:[%s2078 + $0xe2] sm:$0xff]
    %v3345 = vld [vmem:[%s2078 + $0xf2] sm:$0xff]
    %v3346 = vld [vmem:[%s2078 + $0x102] sm:$0xff]
    %v3347 = vld [vmem:[%s2078 + $0x112] sm:$0xff]
    %v3348 = vld [vmem:[%s2191] sm:$0xff]
    %v3349 = vld [vmem:[%s2191 + $0x10] sm:$0xff]
    %v3350 = vld [vmem:[%s2191 + $0x20] sm:$0xff]
    %v3351 = vld [vmem:[%s2191 + $0x30] sm:$0xff]
    %v3352 = vld [vmem:[%s2191 + $0x40] sm:$0xff]
    %v3353 = vld [vmem:[%s2191 + $0x50] sm:$0xff]
    %v3354 = vld [vmem:[%s2191 + $0x60] sm:$0xff]
    %v3355 = vld [vmem:[%s2191 + $0x70] sm:$0xff]
    %v3356 = vld [vmem:[%s2191 + $0xa0] sm:$0xff]
    %v3357 = vld [vmem:[%s2191 + $0xb0] sm:$0xff]
    %v3358 = vld [vmem:[%s2191 + $0xc0] sm:$0xff]
    %v3359 = vld [vmem:[%s2191 + $0xd0] sm:$0xff]
    %v3360 = vld [vmem:[%s2191 + $0xe0] sm:$0xff]
    %v3361 = vld [vmem:[%s2191 + $0xf0] sm:$0xff]
    %v3362 = vld [vmem:[%s2191 + $0x100] sm:$0xff]
    %v3363 = vld [vmem:[%s2191 + $0x110] sm:$0xff]
    %v3364 = vld [vmem:[%s2191 + $0x1] sm:$0xff]
    %v3365 = vld [vmem:[%s2191 + $0x11] sm:$0xff]
    %v3366 = vld [vmem:[%s2191 + $0x21] sm:$0xff]
    %v3367 = vld [vmem:[%s2191 + $0x31] sm:$0xff]
    %v3368 = vld [vmem:[%s2191 + $0x41] sm:$0xff]
    %v3369 = vld [vmem:[%s2191 + $0x51] sm:$0xff]
    %v3370 = vld [vmem:[%s2191 + $0x61] sm:$0xff]
    %v3371 = vld [vmem:[%s2191 + $0x71] sm:$0xff]
    %v3372 = vld [vmem:[%s2191 + $0xa1] sm:$0xff]
    %v3373 = vld [vmem:[%s2191 + $0xb1] sm:$0xff]
    %v3374 = vld [vmem:[%s2191 + $0xc1] sm:$0xff]
    %v3375 = vld [vmem:[%s2191 + $0xd1] sm:$0xff]
    %v3376 = vld [vmem:[%s2191 + $0xe1] sm:$0xff]
    %v3377 = vld [vmem:[%s2191 + $0xf1] sm:$0xff]
    %v3378 = vld [vmem:[%s2191 + $0x101] sm:$0xff]
    %v3379 = vld [vmem:[%s2191 + $0x111] sm:$0xff]
    %v3380 = vld [vmem:[%s2191 + $0x2] sm:$0xff]
    %v3381 = vld [vmem:[%s2191 + $0x12] sm:$0xff]
    %v3382 = vld [vmem:[%s2191 + $0x22] sm:$0xff]
    %v3383 = vld [vmem:[%s2191 + $0x32] sm:$0xff]
    %v3384 = vld [vmem:[%s2191 + $0x42] sm:$0xff]
    %v3385 = vld [vmem:[%s2191 + $0x52] sm:$0xff]
    %v3386 = vld [vmem:[%s2191 + $0x62] sm:$0xff]
    %v3387 = vld [vmem:[%s2191 + $0x72] sm:$0xff]
    %v3388 = vld [vmem:[%s2191 + $0xa2] sm:$0xff]
    %v3389 = vld [vmem:[%s2191 + $0xb2] sm:$0xff]
    %v3390 = vld [vmem:[%s2191 + $0xc2] sm:$0xff]
    %v3391 = vld [vmem:[%s2191 + $0xd2] sm:$0xff]
    %v3392 = vld [vmem:[%s2191 + $0xe2] sm:$0xff]
    %v3393 = vld [vmem:[%s2191 + $0xf2] sm:$0xff]
    %v3394 = vld [vmem:[%s2191 + $0x102] sm:$0xff]
    %v3395 = vld [vmem:[%s2191 + $0x112] sm:$0xff]
    %3412 = vrot.lane.b32.xlu0 %v3268, 8
    %v3413 = vpop.permute.xlu0 %3412
    %3414 = vrot.lane.b32.xlu0 %v3269, 8
    %v3415 = vpop.permute.xlu0 %3414
    %3416 = vrot.lane.b32.xlu0 %v3270, 8
    %v3417 = vpop.permute.xlu0 %3416
    %3418 = vrot.lane.b32.xlu0 %v3271, 8
    %v3419 = vpop.permute.xlu0 %3418
    %3420 = vrot.lane.b32.xlu0 %v3272, 8
    %v3421 = vpop.permute.xlu0 %3420
    %3422 = vrot.lane.b32.xlu0 %v3273, 8
    %v3423 = vpop.permute.xlu0 %3422
    %3424 = vrot.lane.b32.xlu0 %v3274, 8
    %v3425 = vpop.permute.xlu0 %3424
    %3426 = vrot.lane.b32.xlu0 %v3275, 8
    %v3427 = vpop.permute.xlu0 %3426
    %3428 = vrot.lane.b32.xlu0 %v3276, 8
    %v3429 = vpop.permute.xlu0 %3428
    %3430 = vrot.lane.b32.xlu0 %v3277, 8
    %v3431 = vpop.permute.xlu0 %3430
    %3432 = vrot.lane.b32.xlu0 %v3278, 8
    %v3433 = vpop.permute.xlu0 %3432
    %3434 = vrot.lane.b32.xlu0 %v3279, 8
    %v3435 = vpop.permute.xlu0 %3434
    %3436 = vrot.lane.b32.xlu0 %v3280, 8
    %v3437 = vpop.permute.xlu0 %3436
    %3438 = vrot.lane.b32.xlu0 %v3281, 8
    %v3439 = vpop.permute.xlu0 %3438
    %3440 = vrot.lane.b32.xlu0 %v3282, 8
    %v3441 = vpop.permute.xlu0 %3440
    %3442 = vrot.lane.b32.xlu0 %v3283, 8
    %v3443 = vpop.permute.xlu0 %3442
    %3476 = vrot.lane.b32.xlu0 %v3284, 16
    %v3477 = vpop.permute.xlu0 %3476
    %3478 = vrot.lane.b32.xlu0 %v3285, 16
    %v3479 = vpop.permute.xlu0 %3478
    %3480 = vrot.lane.b32.xlu0 %v3286, 16
    %v3481 = vpop.permute.xlu0 %3480
    %3482 = vrot.lane.b32.xlu0 %v3287, 16
    %v3483 = vpop.permute.xlu0 %3482
    %3484 = vrot.lane.b32.xlu0 %v3288, 16
    %v3485 = vpop.permute.xlu0 %3484
    %3486 = vrot.lane.b32.xlu0 %v3289, 16
    %v3487 = vpop.permute.xlu0 %3486
    %3488 = vrot.lane.b32.xlu0 %v3290, 16
    %v3489 = vpop.permute.xlu0 %3488
    %3490 = vrot.lane.b32.xlu0 %v3291, 16
    %v3491 = vpop.permute.xlu0 %3490
    %3492 = vrot.lane.b32.xlu0 %v3292, 16
    %v3493 = vpop.permute.xlu0 %3492
    %3494 = vrot.lane.b32.xlu0 %v3293, 16
    %v3495 = vpop.permute.xlu0 %3494
    %3496 = vrot.lane.b32.xlu0 %v3294, 16
    %v3497 = vpop.permute.xlu0 %3496
    %3498 = vrot.lane.b32.xlu0 %v3295, 16
    %v3499 = vpop.permute.xlu0 %3498
    %3500 = vrot.lane.b32.xlu0 %v3296, 16
    %v3501 = vpop.permute.xlu0 %3500
    %3502 = vrot.lane.b32.xlu0 %v3297, 16
    %v3503 = vpop.permute.xlu0 %3502
    %3504 = vrot.lane.b32.xlu0 %v3298, 16
    %v3505 = vpop.permute.xlu0 %3504
    %3506 = vrot.lane.b32.xlu0 %v3299, 16
    %v3507 = vpop.permute.xlu0 %3506
    %3540 = vrot.lane.b32.xlu0 %v3300, 24
    %v3541 = vpop.permute.xlu0 %3540
    %3542 = vrot.lane.b32.xlu0 %v3301, 24
    %v3543 = vpop.permute.xlu0 %3542
    %3544 = vrot.lane.b32.xlu0 %v3302, 24
    %v3545 = vpop.permute.xlu0 %3544
    %3546 = vrot.lane.b32.xlu0 %v3303, 24
    %v3547 = vpop.permute.xlu0 %3546
    %3548 = vrot.lane.b32.xlu0 %v3304, 24
    %v3549 = vpop.permute.xlu0 %3548
    %3550 = vrot.lane.b32.xlu0 %v3305, 24
    %v3551 = vpop.permute.xlu0 %3550
    %3552 = vrot.lane.b32.xlu0 %v3306, 24
    %v3553 = vpop.permute.xlu0 %3552
    %3554 = vrot.lane.b32.xlu0 %v3307, 24
    %v3555 = vpop.permute.xlu0 %3554
    %3556 = vrot.lane.b32.xlu0 %v3308, 24
    %v3557 = vpop.permute.xlu0 %3556
    %3558 = vrot.lane.b32.xlu0 %v3309, 24
    %v3559 = vpop.permute.xlu0 %3558
    %3560 = vrot.lane.b32.xlu0 %v3310, 24
    %v3561 = vpop.permute.xlu0 %3560
    %3562 = vrot.lane.b32.xlu0 %v3311, 24
    %v3563 = vpop.permute.xlu0 %3562
    %3564 = vrot.lane.b32.xlu0 %v3312, 24
    %v3565 = vpop.permute.xlu0 %3564
    %3566 = vrot.lane.b32.xlu0 %v3313, 24
    %v3567 = vpop.permute.xlu0 %3566
    %3568 = vrot.lane.b32.xlu0 %v3314, 24
    %v3569 = vpop.permute.xlu0 %3568
    %3570 = vrot.lane.b32.xlu0 %v3315, 24
    %v3571 = vpop.permute.xlu0 %3570
    %3604 = vrot.lane.b32.xlu0 %v3316, 32
    %v3605 = vpop.permute.xlu0 %3604
    %3606 = vrot.lane.b32.xlu0 %v3317, 32
    %v3607 = vpop.permute.xlu0 %3606
    %3608 = vrot.lane.b32.xlu0 %v3318, 32
    %v3609 = vpop.permute.xlu0 %3608
    %3610 = vrot.lane.b32.xlu0 %v3319, 32
    %v3611 = vpop.permute.xlu0 %3610
    %3612 = vrot.lane.b32.xlu0 %v3320, 32
    %v3613 = vpop.permute.xlu0 %3612
    %3614 = vrot.lane.b32.xlu0 %v3321, 32
    %v3615 = vpop.permute.xlu0 %3614
    %3616 = vrot.lane.b32.xlu0 %v3322, 32
    %v3617 = vpop.permute.xlu0 %3616
    %3618 = vrot.lane.b32.xlu0 %v3323, 32
    %v3619 = vpop.permute.xlu0 %3618
    %3620 = vrot.lane.b32.xlu0 %v3324, 32
    %v3621 = vpop.permute.xlu0 %3620
    %3622 = vrot.lane.b32.xlu0 %v3325, 32
    %v3623 = vpop.permute.xlu0 %3622
    %3624 = vrot.lane.b32.xlu0 %v3326, 32
    %v3625 = vpop.permute.xlu0 %3624
    %3626 = vrot.lane.b32.xlu0 %v3327, 32
    %v3627 = vpop.permute.xlu0 %3626
    %3628 = vrot.lane.b32.xlu0 %v3328, 32
    %v3629 = vpop.permute.xlu0 %3628
    %3630 = vrot.lane.b32.xlu0 %v3329, 32
    %v3631 = vpop.permute.xlu0 %3630
    %3632 = vrot.lane.b32.xlu0 %v3330, 32
    %v3633 = vpop.permute.xlu0 %3632
    %3634 = vrot.lane.b32.xlu0 %v3331, 32
    %v3635 = vpop.permute.xlu0 %3634
    %3668 = vrot.lane.b32.xlu0 %v3332, 40
    %v3669 = vpop.permute.xlu0 %3668
    %3670 = vrot.lane.b32.xlu0 %v3333, 40
    %v3671 = vpop.permute.xlu0 %3670
    %3672 = vrot.lane.b32.xlu0 %v3334, 40
    %v3673 = vpop.permute.xlu0 %3672
    %3674 = vrot.lane.b32.xlu0 %v3335, 40
    %v3675 = vpop.permute.xlu0 %3674
    %3676 = vrot.lane.b32.xlu0 %v3336, 40
    %v3677 = vpop.permute.xlu0 %3676
    %3678 = vrot.lane.b32.xlu0 %v3337, 40
    %v3679 = vpop.permute.xlu0 %3678
    %3680 = vrot.lane.b32.xlu0 %v3338, 40
    %v3681 = vpop.permute.xlu0 %3680
    %3682 = vrot.lane.b32.xlu0 %v3339, 40
    %v3683 = vpop.permute.xlu0 %3682
    %3684 = vrot.lane.b32.xlu0 %v3340, 40
    %v3685 = vpop.permute.xlu0 %3684
    %3686 = vrot.lane.b32.xlu0 %v3341, 40
    %v3687 = vpop.permute.xlu0 %3686
    %3688 = vrot.lane.b32.xlu0 %v3342, 40
    %v3689 = vpop.permute.xlu0 %3688
    %3690 = vrot.lane.b32.xlu0 %v3343, 40
    %v3691 = vpop.permute.xlu0 %3690
    %3692 = vrot.lane.b32.xlu0 %v3344, 40
    %v3693 = vpop.permute.xlu0 %3692
    %3694 = vrot.lane.b32.xlu0 %v3345, 40
    %v3695 = vpop.permute.xlu0 %3694
    %3696 = vrot.lane.b32.xlu0 %v3346, 40
    %v3697 = vpop.permute.xlu0 %3696
    %3698 = vrot.lane.b32.xlu0 %v3347, 40
    %v3699 = vpop.permute.xlu0 %3698
    %3732 = vrot.lane.b32.xlu0 %v3348, 48
    %v3733 = vpop.permute.xlu0 %3732
    %3734 = vrot.lane.b32.xlu0 %v3349, 48
    %v3735 = vpop.permute.xlu0 %3734
    %3736 = vrot.lane.b32.xlu0 %v3350, 48
    %v3737 = vpop.permute.xlu0 %3736
    %3738 = vrot.lane.b32.xlu0 %v3351, 48
    %v3739 = vpop.permute.xlu0 %3738
    %3740 = vrot.lane.b32.xlu0 %v3352, 48
    %v3741 = vpop.permute.xlu0 %3740
    %3742 = vrot.lane.b32.xlu0 %v3353, 48
    %v3743 = vpop.permute.xlu0 %3742
    %3744 = vrot.lane.b32.xlu0 %v3354, 48
    %v3745 = vpop.permute.xlu0 %3744
    %3746 = vrot.lane.b32.xlu0 %v3355, 48
    %v3747 = vpop.permute.xlu0 %3746
    %3748 = vrot.lane.b32.xlu0 %v3356, 48
    %v3749 = vpop.permute.xlu0 %3748
    %3750 = vrot.lane.b32.xlu0 %v3357, 48
    %v3751 = vpop.permute.xlu0 %3750
    %3752 = vrot.lane.b32.xlu0 %v3358, 48
    %v3753 = vpop.permute.xlu0 %3752
    %3754 = vrot.lane.b32.xlu0 %v3359, 48
    %v3755 = vpop.permute.xlu0 %3754
    %3756 = vrot.lane.b32.xlu0 %v3360, 48
    %v3757 = vpop.permute.xlu0 %3756
    %3758 = vrot.lane.b32.xlu0 %v3361, 48
    %v3759 = vpop.permute.xlu0 %3758
    %3760 = vrot.lane.b32.xlu0 %v3362, 48
    %v3761 = vpop.permute.xlu0 %3760
    %3762 = vrot.lane.b32.xlu0 %v3363, 48
    %v3763 = vpop.permute.xlu0 %3762
    %3796 = vrot.lane.b32.xlu0 %v3364, 56
    %v3797 = vpop.permute.xlu0 %3796
    %3798 = vrot.lane.b32.xlu0 %v3365, 56
    %v3799 = vpop.permute.xlu0 %3798
    %3800 = vrot.lane.b32.xlu0 %v3366, 56
    %v3801 = vpop.permute.xlu0 %3800
    %3802 = vrot.lane.b32.xlu0 %v3367, 56
    %v3803 = vpop.permute.xlu0 %3802
    %3804 = vrot.lane.b32.xlu0 %v3368, 56
    %v3805 = vpop.permute.xlu0 %3804
    %3806 = vrot.lane.b32.xlu0 %v3369, 56
    %v3807 = vpop.permute.xlu0 %3806
    %3808 = vrot.lane.b32.xlu0 %v3370, 56
    %v3809 = vpop.permute.xlu0 %3808
    %3810 = vrot.lane.b32.xlu0 %v3371, 56
    %v3811 = vpop.permute.xlu0 %3810
    %3812 = vrot.lane.b32.xlu0 %v3372, 56
    %v3813 = vpop.permute.xlu0 %3812
    %3814 = vrot.lane.b32.xlu0 %v3373, 56
    %v3815 = vpop.permute.xlu0 %3814
    %3816 = vrot.lane.b32.xlu0 %v3374, 56
    %v3817 = vpop.permute.xlu0 %3816
    %3818 = vrot.lane.b32.xlu0 %v3375, 56
    %v3819 = vpop.permute.xlu0 %3818
    %3820 = vrot.lane.b32.xlu0 %v3376, 56
    %v3821 = vpop.permute.xlu0 %3820
    %3822 = vrot.lane.b32.xlu0 %v3377, 56
    %v3823 = vpop.permute.xlu0 %3822
    %3824 = vrot.lane.b32.xlu0 %v3378, 56
    %v3825 = vpop.permute.xlu0 %3824
    %3826 = vrot.lane.b32.xlu0 %v3379, 56
    %v3827 = vpop.permute.xlu0 %3826
    %3860 = vrot.lane.b32.xlu0 %v3380, 64
    %v3861 = vpop.permute.xlu0 %3860
    %3862 = vrot.lane.b32.xlu0 %v3381, 64
    %v3863 = vpop.permute.xlu0 %3862
    %3864 = vrot.lane.b32.xlu0 %v3382, 64
    %v3865 = vpop.permute.xlu0 %3864
    %3866 = vrot.lane.b32.xlu0 %v3383, 64
    %v3867 = vpop.permute.xlu0 %3866
    %3868 = vrot.lane.b32.xlu0 %v3384, 64
    %v3869 = vpop.permute.xlu0 %3868
    %3870 = vrot.lane.b32.xlu0 %v3385, 64
    %v3871 = vpop.permute.xlu0 %3870
    %3872 = vrot.lane.b32.xlu0 %v3386, 64
    %v3873 = vpop.permute.xlu0 %3872
    %3874 = vrot.lane.b32.xlu0 %v3387, 64
    %v3875 = vpop.permute.xlu0 %3874
    %3876 = vrot.lane.b32.xlu0 %v3388, 64
    %v3877 = vpop.permute.xlu0 %3876
    %3878 = vrot.lane.b32.xlu0 %v3389, 64
    %v3879 = vpop.permute.xlu0 %3878
    %3880 = vrot.lane.b32.xlu0 %v3390, 64
    %v3881 = vpop.permute.xlu0 %3880
    %3882 = vrot.lane.b32.xlu0 %v3391, 64
    %v3883 = vpop.permute.xlu0 %3882
    %3884 = vrot.lane.b32.xlu0 %v3392, 64
    %v3885 = vpop.permute.xlu0 %3884
    %3886 = vrot.lane.b32.xlu0 %v3393, 64
    %v3887 = vpop.permute.xlu0 %3886
    %3888 = vrot.lane.b32.xlu0 %v3394, 64
    %v3889 = vpop.permute.xlu0 %3888
    %3890 = vrot.lane.b32.xlu0 %v3395, 64
    %v3891 = vpop.permute.xlu0 %3890
    %v3908 = vsel %vm2769, %v3252, %v3413
    %v3909 = vsel %vm2769, %v3253, %v3415
    %v3910 = vsel %vm2769, %v3254, %v3417
    %v3911 = vsel %vm2769, %v3255, %v3419
    %v3912 = vsel %vm2769, %v3256, %v3421
    %v3913 = vsel %vm2769, %v3257, %v3423
    %v3914 = vsel %vm2769, %v3258, %v3425
    %v3915 = vsel %vm2769, %v3259, %v3427
    %v3916 = vsel %vm2769, %v3260, %v3429
    %v3917 = vsel %vm2769, %v3261, %v3431
    %v3918 = vsel %vm2769, %v3262, %v3433
    %v3919 = vsel %vm2769, %v3263, %v3435
    %v3920 = vsel %vm2769, %v3264, %v3437
    %v3921 = vsel %vm2769, %v3265, %v3439
    %v3922 = vsel %vm2769, %v3266, %v3441
    %v3923 = vsel %vm2769, %v3267, %v3443
    %v3924 = vsel %vm2803, %v3908, %v3477
    %v3925 = vsel %vm2803, %v3909, %v3479
    %v3926 = vsel %vm2803, %v3910, %v3481
    %v3927 = vsel %vm2803, %v3911, %v3483
    %v3928 = vsel %vm2803, %v3912, %v3485
    %v3929 = vsel %vm2803, %v3913, %v3487
    %v3930 = vsel %vm2803, %v3914, %v3489
    %v3931 = vsel %vm2803, %v3915, %v3491
    %v3932 = vsel %vm2803, %v3916, %v3493
    %v3933 = vsel %vm2803, %v3917, %v3495
    %v3934 = vsel %vm2803, %v3918, %v3497
    %v3935 = vsel %vm2803, %v3919, %v3499
    %v3936 = vsel %vm2803, %v3920, %v3501
    %v3937 = vsel %vm2803, %v3921, %v3503
    %v3938 = vsel %vm2803, %v3922, %v3505
    %v3939 = vsel %vm2803, %v3923, %v3507
    %v3940 = vsel %vm2837, %v3924, %v3541
    %v3941 = vsel %vm2837, %v3925, %v3543
    %v3942 = vsel %vm2837, %v3926, %v3545
    %v3943 = vsel %vm2837, %v3927, %v3547
    %v3944 = vsel %vm2837, %v3928, %v3549
    %v3945 = vsel %vm2837, %v3929, %v3551
    %v3946 = vsel %vm2837, %v3930, %v3553
    %v3947 = vsel %vm2837, %v3931, %v3555
    %v3948 = vsel %vm2837, %v3932, %v3557
    %v3949 = vsel %vm2837, %v3933, %v3559
    %v3950 = vsel %vm2837, %v3934, %v3561
    %v3951 = vsel %vm2837, %v3935, %v3563
    %v3952 = vsel %vm2837, %v3936, %v3565
    %v3953 = vsel %vm2837, %v3937, %v3567
    %v3954 = vsel %vm2837, %v3938, %v3569
    %v3955 = vsel %vm2837, %v3939, %v3571
    %v3956 = vsel %vm2871, %v3940, %v3605
    %v3957 = vsel %vm2871, %v3941, %v3607
    %v3958 = vsel %vm2871, %v3942, %v3609
    %v3959 = vsel %vm2871, %v3943, %v3611
    %v3960 = vsel %vm2871, %v3944, %v3613
    %v3961 = vsel %vm2871, %v3945, %v3615
    %v3962 = vsel %vm2871, %v3946, %v3617
    %v3963 = vsel %vm2871, %v3947, %v3619
    %v3964 = vsel %vm2871, %v3948, %v3621
    %v3965 = vsel %vm2871, %v3949, %v3623
    %v3966 = vsel %vm2871, %v3950, %v3625
    %v3967 = vsel %vm2871, %v3951, %v3627
    %v3968 = vsel %vm2871, %v3952, %v3629
    %v3969 = vsel %vm2871, %v3953, %v3631
    %v3970 = vsel %vm2871, %v3954, %v3633
    %v3971 = vsel %vm2871, %v3955, %v3635
    %vm3972 = vcmask 326656
    %v3973 = vsel %vm3972, %v3956, %v3669
    %v3974 = vsel %vm3972, %v3957, %v3671
    %v3975 = vsel %vm3972, %v3958, %v3673
    %v3976 = vsel %vm3972, %v3959, %v3675
    %v3977 = vsel %vm3972, %v3960, %v3677
    %v3978 = vsel %vm3972, %v3961, %v3679
    %v3979 = vsel %vm3972, %v3962, %v3681
    %v3980 = vsel %vm3972, %v3963, %v3683
    %v3981 = vsel %vm3972, %v3964, %v3685
    %v3982 = vsel %vm3972, %v3965, %v3687
    %v3983 = vsel %vm3972, %v3966, %v3689
    %v3984 = vsel %vm3972, %v3967, %v3691
    %v3985 = vsel %vm3972, %v3968, %v3693
    %v3986 = vsel %vm3972, %v3969, %v3695
    %v3987 = vsel %vm3972, %v3970, %v3697
    %v3988 = vsel %vm3972, %v3971, %v3699
    %vm3989 = vcmask 392192
    %v3990 = vsel %vm3989, %v3973, %v3733
    %v3991 = vsel %vm3989, %v3974, %v3735
    %v3992 = vsel %vm3989, %v3975, %v3737
    %v3993 = vsel %vm3989, %v3976, %v3739
    %v3994 = vsel %vm3989, %v3977, %v3741
    %v3995 = vsel %vm3989, %v3978, %v3743
    %v3996 = vsel %vm3989, %v3979, %v3745
    %v3997 = vsel %vm3989, %v3980, %v3747
    %v3998 = vsel %vm3989, %v3981, %v3749
    %v3999 = vsel %vm3989, %v3982, %v3751
    %v4000 = vsel %vm3989, %v3983, %v3753
    %v4001 = vsel %vm3989, %v3984, %v3755
    %v4002 = vsel %vm3989, %v3985, %v3757
    %v4003 = vsel %vm3989, %v3986, %v3759
    %v4004 = vsel %vm3989, %v3987, %v3761
    %v4005 = vsel %vm3989, %v3988, %v3763
    %vm4006 = vcmask 457728
    %v4007 = vsel %vm4006, %v3990, %v3797
    %v4008 = vsel %vm4006, %v3991, %v3799
    %v4009 = vsel %vm4006, %v3992, %v3801
    %v4010 = vsel %vm4006, %v3993, %v3803
    %v4011 = vsel %vm4006, %v3994, %v3805
    %v4012 = vsel %vm4006, %v3995, %v3807
    %v4013 = vsel %vm4006, %v3996, %v3809
    %v4014 = vsel %vm4006, %v3997, %v3811
    %v4015 = vsel %vm4006, %v3998, %v3813
    %v4016 = vsel %vm4006, %v3999, %v3815
    %v4017 = vsel %vm4006, %v4000, %v3817
    %v4018 = vsel %vm4006, %v4001, %v3819
    %v4019 = vsel %vm4006, %v4002, %v3821
    %v4020 = vsel %vm4006, %v4003, %v3823
    %v4021 = vsel %vm4006, %v4004, %v3825
    %v4022 = vsel %vm4006, %v4005, %v3827
    %vm4023 = vcmask 523264
    %v4024 = vsel %vm4023, %v4007, %v3861
    %v4025 = vsel %vm4023, %v4008, %v3863
    %v4026 = vsel %vm4023, %v4009, %v3865
    %v4027 = vsel %vm4023, %v4010, %v3867
    %v4028 = vsel %vm4023, %v4011, %v3869
    %v4029 = vsel %vm4023, %v4012, %v3871
    %v4030 = vsel %vm4023, %v4013, %v3873
    %v4031 = vsel %vm4023, %v4014, %v3875
    %v4032 = vsel %vm4023, %v4015, %v3877
    %v4033 = vsel %vm4023, %v4016, %v3879
    %v4034 = vsel %vm4023, %v4017, %v3881
    %v4035 = vsel %vm4023, %v4018, %v3883
    %v4036 = vsel %vm4023, %v4019, %v3885
    %v4037 = vsel %vm4023, %v4020, %v3887
    %v4038 = vsel %vm4023, %v4021, %v3889
    %v4039 = vsel %vm4023, %v4022, %v3891
    %vm4040 = vcmask 588800
    %v4041 = vsel %vm4040, %v4024, 0.0
    %v4042 = vsel %vm4040, %v4025, 0.0
    %v4043 = vsel %vm4040, %v4026, 0.0
    %v4044 = vsel %vm4040, %v4027, 0.0
    %v4045 = vsel %vm4040, %v4028, 0.0
    %v4046 = vsel %vm4040, %v4029, 0.0
    %v4047 = vsel %vm4040, %v4030, 0.0
    %v4048 = vsel %vm4040, %v4031, 0.0
    %v4049 = vsel %vm4040, %v4032, 0.0
    %v4050 = vsel %vm4040, %v4033, 0.0
    %v4051 = vsel %vm4040, %v4034, 0.0
    %v4052 = vsel %vm4040, %v4035, 0.0
    %v4053 = vsel %vm4040, %v4036, 0.0
    %v4054 = vsel %vm4040, %v4037, 0.0
    %v4055 = vsel %vm4040, %v4038, 0.0
    %v4056 = vsel %vm4040, %v4039, 0.0
    %v4057 = vpack.c.bf16 %v4042, %v4041
    %v4058 = vpack.c.bf16 %v4044, %v4043
    %v4059 = vpack.c.bf16 %v4046, %v4045
    %v4060 = vpack.c.bf16 %v4048, %v4047
    %v4061 = vpack.c.bf16 %v4050, %v4049
    %v4062 = vpack.c.bf16 %v4052, %v4051
    %v4063 = vpack.c.bf16 %v4054, %v4053
    %v4064 = vpack.c.bf16 %v4056, %v4055
    %v4065 = vld [vmem:[#allocation8] sm:$0xf]
    %v4066 = vld [vmem:[#allocation8 + $0x4] sm:$0xf]
    %v4067 = vld [vmem:[#allocation8 + $0x8] sm:$0xf]
    %v4068 = vld [vmem:[#allocation8 + $0xc] sm:$0xf]
    %v4069 = vld [vmem:[#allocation8 + $0x10] sm:$0xf]
    %v4070 = vld [vmem:[#allocation8 + $0x14] sm:$0xf]
    %v4071 = vld [vmem:[#allocation8 + $0x18] sm:$0xf]
    %v4072 = vld [vmem:[#allocation8 + $0x1c] sm:$0xf]
    %v4073 = vld [vmem:[#allocation8 + $0x20] sm:$0xf]
    %v4074 = vld [vmem:[#allocation8 + $0x24] sm:$0xf]
    %v4075 = vld [vmem:[#allocation8 + $0x28] sm:$0xf]
    %v4076 = vld [vmem:[#allocation8 + $0x2c] sm:$0xf]
    %v4077 = vld [vmem:[#allocation8 + $0x30] sm:$0xf]
    %v4078 = vld [vmem:[#allocation8 + $0x34] sm:$0xf]
    %v4079 = vld [vmem:[#allocation8 + $0x38] sm:$0xf]
    %v4080 = vld [vmem:[#allocation8 + $0x3c] sm:$0xf]
    %v4097 = vunpack.c.l.b16 %v4065
    %v4098 = vunpack.c.l.b16 %v4066
    %v4099 = vunpack.c.l.b16 %v4067
    %v4100 = vunpack.c.l.b16 %v4068
    %v4101 = vunpack.c.l.b16 %v4069
    %v4102 = vunpack.c.l.b16 %v4070
    %v4103 = vunpack.c.l.b16 %v4071
    %v4104 = vunpack.c.l.b16 %v4072
    %v4105 = vunpack.c.l.b16 %v4073
    %v4106 = vunpack.c.l.b16 %v4074
    %v4107 = vunpack.c.l.b16 %v4075
    %v4108 = vunpack.c.l.b16 %v4076
    %v4109 = vunpack.c.l.b16 %v4077
    %v4110 = vunpack.c.l.b16 %v4078
    %v4111 = vunpack.c.l.b16 %v4079
    %v4112 = vunpack.c.l.b16 %v4080
    %v4113 = vpack.c.b16 %v4098, %v4097
    %v4114 = vpack.c.b16 %v4100, %v4099
    %v4115 = vpack.c.b16 %v4102, %v4101
    %v4116 = vpack.c.b16 %v4104, %v4103
    %v4117 = vpack.c.b16 %v4106, %v4105
    %v4118 = vpack.c.b16 %v4108, %v4107
    %v4119 = vpack.c.b16 %v4110, %v4109
    %v4120 = vpack.c.b16 %v4112, %v4111
    %4129 = vmatprep.subr.bf16.mxu0 0
    %4130 = vmatpush1.bf16.msra.mxu0 %v4120
    %4131 = vmatprep.subr.bf16.mxu0 0
    %4132 = vmatpush1.bf16.msra.mxu0 %v4119
    %4133 = vmatprep.subr.bf16.mxu0 0
    %4134 = vmatpush1.bf16.msra.mxu0 %v4118
    %4135 = vmatprep.subr.bf16.mxu0 0
    %4136 = vmatpush1.bf16.msra.mxu0 %v4117
    %4137 = vmatprep.subr.bf16.mxu0 0
    %4138 = vmatpush1.bf16.msra.mxu0 %v4116
    %4139 = vmatprep.subr.bf16.mxu0 0
    %4140 = vmatpush1.bf16.msra.mxu0 %v4115
    %4141 = vmatprep.subr.bf16.mxu0 0
    %4142 = vmatpush1.bf16.msra.mxu0 %v4114
    %4143 = vmatprep.subr.bf16.mxu0 0
    %4144 = vmatpush1.bf16.msra.mxu0 %v4113
    %4145 = vmatprep.subr.bf16.mxu0 0
    %4146 = vmatpush2.bf16.msra.mxu0 0
    %4147 = vmatprep.subr.bf16.mxu0 0
    %4148 = vmatpush2.bf16.msra.mxu0 0
    %4149 = vmatprep.subr.bf16.mxu0 0
    %4150 = vmatpush2.bf16.msra.mxu0 0
    %4151 = vmatprep.subr.bf16.mxu0 0
    %4152 = vmatpush2.bf16.msra.mxu0 0
    %4153 = vmatprep.subr.bf16.mxu0 0
    %4154 = vmatpush2.bf16.msra.mxu0 0
    %4155 = vmatprep.subr.bf16.mxu0 0
    %4156 = vmatpush2.bf16.msra.mxu0 0
    %4157 = vmatprep.subr.bf16.mxu0 0
    %4158 = vmatpush2.bf16.msra.mxu0 0
    %4159 = vmatprep.subr.bf16.mxu0 0
    %4160 = vmatpush2.bf16.msra.mxu0 0
    %4161 = vmatprep.mubr.bf16.mxu0 0
    %4162 = vmatmul.mubr.bf16.gmra.mxu0 %v4057
    %v4163 = vpop.f32.mrf.mxu0
    %v4164 = vadd.f32 0.0, %v4163
    %v4165 = vpop.f32.mrf.mxu0
    %v4166 = vpop.f32.mrf.mxu0
    %v4167 = vadd.f32 0.0, %v4166
    %v4168 = vpop.f32.mrf.mxu0
    %4169 = vmatprep.mubr.bf16.mxu0 0
    %4170 = vmatmul.mubr.bf16.gmra.mxu0 %v4058
    %v4171 = vpop.f32.mrf.mxu0
    %v4172 = vadd.f32 0.0, %v4171
    %v4173 = vpop.f32.mrf.mxu0
    %v4174 = vpop.f32.mrf.mxu0
    %v4175 = vadd.f32 0.0, %v4174
    %v4176 = vpop.f32.mrf.mxu0
    %4177 = vmatprep.mubr.bf16.mxu0 0
    %4178 = vmatmul.mubr.bf16.gmra.mxu0 %v4059
    %v4179 = vpop.f32.mrf.mxu0
    %v4180 = vadd.f32 0.0, %v4179
    %v4181 = vpop.f32.mrf.mxu0
    %v4182 = vpop.f32.mrf.mxu0
    %v4183 = vadd.f32 0.0, %v4182
    %v4184 = vpop.f32.mrf.mxu0
    %4185 = vmatprep.mubr.bf16.mxu0 0
    %4186 = vmatmul.mubr.bf16.gmra.mxu0 %v4060
    %v4187 = vpop.f32.mrf.mxu0
    %v4188 = vadd.f32 0.0, %v4187
    %v4189 = vpop.f32.mrf.mxu0
    %v4190 = vpop.f32.mrf.mxu0
    %v4191 = vadd.f32 0.0, %v4190
    %v4192 = vpop.f32.mrf.mxu0
    %4193 = vmatprep.mubr.bf16.mxu0 0
    %4194 = vmatmul.mubr.bf16.gmra.mxu0 %v4061
    %v4195 = vpop.f32.mrf.mxu0
    %v4196 = vadd.f32 0.0, %v4195
    %v4197 = vpop.f32.mrf.mxu0
    %v4198 = vpop.f32.mrf.mxu0
    %v4199 = vadd.f32 0.0, %v4198
    %v4200 = vpop.f32.mrf.mxu0
    %4201 = vmatprep.mubr.bf16.mxu0 0
    %4202 = vmatmul.mubr.bf16.gmra.mxu0 %v4062
    %v4203 = vpop.f32.mrf.mxu0
    %v4204 = vadd.f32 0.0, %v4203
    %v4205 = vpop.f32.mrf.mxu0
    %v4206 = vpop.f32.mrf.mxu0
    %v4207 = vadd.f32 0.0, %v4206
    %v4208 = vpop.f32.mrf.mxu0
    %4209 = vmatprep.mubr.bf16.mxu0 0
    %4210 = vmatmul.mubr.bf16.gmra.mxu0 %v4063
    %v4211 = vpop.f32.mrf.mxu0
    %v4212 = vadd.f32 0.0, %v4211
    %v4213 = vpop.f32.mrf.mxu0
    %v4214 = vpop.f32.mrf.mxu0
    %v4215 = vadd.f32 0.0, %v4214
    %v4216 = vpop.f32.mrf.mxu0
    %4217 = vmatprep.mubr.bf16.mxu0 0
    %4218 = vmatmul.mubr.bf16.gmra.mxu0 %v4064
    %v4219 = vpop.f32.mrf.mxu0
    %v4220 = vadd.f32 0.0, %v4219
    %v4221 = vpop.f32.mrf.mxu0
    %v4222 = vpop.f32.mrf.mxu0
    %v4223 = vadd.f32 0.0, %v4222
    %v4224 = vpop.f32.mrf.mxu0
    %4225 = vdwg.mxu0
    %v4226 = vadd.f32 %v4164, %v4167
    %v4227 = vadd.f32 %v4226, %v4172
    %v4228 = vadd.f32 %v4227, %v4175
    %v4229 = vadd.f32 %v4228, %v4180
    %v4230 = vadd.f32 %v4229, %v4183
    %v4231 = vadd.f32 %v4230, %v4188
    %v4232 = vadd.f32 %v4231, %v4191
    %v4233 = vadd.f32 %v4232, %v4196
    %v4234 = vadd.f32 %v4233, %v4199
    %v4235 = vadd.f32 %v4234, %v4204
    %v4236 = vadd.f32 %v4235, %v4207
    %v4237 = vadd.f32 %v4236, %v4212
    %v4238 = vadd.f32 %v4237, %v4215
    %v4239 = vadd.f32 %v4238, %v4220
    %v4240 = vadd.f32 %v4239, %v4223
    %v4241 = vrot.slane %v4240, 4
    %v4242 = vadd.f32 %v4240, %v4241
    %v4243 = vrot.slane %v4242, 2
    %v4244 = vadd.f32 %v4242, %v4243
    %v4245 = vrot.slane %v4244, 1
    %v4246 = vadd.f32 %v4244, %v4245
    %v4247 = vmul.f32 %v4246, 0.0078125
    %v4248 = vmul.f32 %v4164, %v4164
    %v4249 = vmul.f32 %v4167, %v4167
    %v4250 = vmul.f32 %v4172, %v4172
    %v4251 = vmul.f32 %v4175, %v4175
    %v4252 = vmul.f32 %v4180, %v4180
    %v4253 = vmul.f32 %v4183, %v4183
    %v4254 = vmul.f32 %v4188, %v4188
    %v4255 = vmul.f32 %v4191, %v4191
    %v4256 = vmul.f32 %v4196, %v4196
    %v4257 = vmul.f32 %v4199, %v4199
    %v4258 = vmul.f32 %v4204, %v4204
    %v4259 = vmul.f32 %v4207, %v4207
    %v4260 = vmul.f32 %v4212, %v4212
    %v4261 = vmul.f32 %v4215, %v4215
    %v4262 = vmul.f32 %v4220, %v4220
    %v4263 = vmul.f32 %v4223, %v4223
    %v4264 = vadd.f32 %v4248, %v4249
    %v4265 = vadd.f32 %v4264, %v4250
    %v4266 = vadd.f32 %v4265, %v4251
    %v4267 = vadd.f32 %v4266, %v4252
    %v4268 = vadd.f32 %v4267, %v4253
    %v4269 = vadd.f32 %v4268, %v4254
    %v4270 = vadd.f32 %v4269, %v4255
    %v4271 = vadd.f32 %v4270, %v4256
    %v4272 = vadd.f32 %v4271, %v4257
    %v4273 = vadd.f32 %v4272, %v4258
    %v4274 = vadd.f32 %v4273, %v4259
    %v4275 = vadd.f32 %v4274, %v4260
    %v4276 = vadd.f32 %v4275, %v4261
    %v4277 = vadd.f32 %v4276, %v4262
    %v4278 = vadd.f32 %v4277, %v4263
    %v4279 = vrot.slane %v4278, 4
    %v4280 = vadd.f32 %v4278, %v4279
    %v4281 = vrot.slane %v4280, 2
    %v4282 = vadd.f32 %v4280, %v4281
    %v4283 = vrot.slane %v4282, 1
    %v4284 = vadd.f32 %v4282, %v4283
    %v4285 = vmul.f32 %v4284, 0.0078125
    %v4286 = vmul.f32 %v4247, %v4247
    %v4287 = vsub.f32 %v4285, %v4286
    %v4288 = vmax.f32 %v4287, 0.0
    %v4289 = vld [vmem:[%s5] sm:$0x1]
    %v4290 = vadd.f32 %v4288, 1e-05
    %v4291 = vrsqrt.pop %v4290
    %v4292 = vmul.f32 %v4289, %v4291
    %v4293 = vld [vmem:[%s6] sm:$0x1]
    %v4294 = vmul.f32 %v4247, %v4292
    %v4295 = vsub.f32 %v4293, %v4294
    %v4297 = vlaneseq
    %v4298 = vshrl.u32 %v4297, 7
    %v4299 = vsub.s32 0, %v4298
    %v4300 = vrot.slane %v4292, %v4299
    %v4302 = vmul.f32 %v4164, %v4300
    %v4303 = vmul.f32 %v4167, %v4300
    %v4304 = vmul.f32 %v4172, %v4300
    %v4305 = vmul.f32 %v4175, %v4300
    %v4306 = vmul.f32 %v4180, %v4300
    %v4307 = vmul.f32 %v4183, %v4300
    %v4308 = vmul.f32 %v4188, %v4300
    %v4309 = vmul.f32 %v4191, %v4300
    %v4310 = vmul.f32 %v4196, %v4300
    %v4311 = vmul.f32 %v4199, %v4300
    %v4312 = vmul.f32 %v4204, %v4300
    %v4313 = vmul.f32 %v4207, %v4300
    %v4314 = vmul.f32 %v4212, %v4300
    %v4315 = vmul.f32 %v4215, %v4300
    %v4316 = vmul.f32 %v4220, %v4300
    %v4317 = vmul.f32 %v4223, %v4300
    %v4319 = vlaneseq
    %v4320 = vshrl.u32 %v4319, 7
    %v4321 = vsub.s32 0, %v4320
    %v4322 = vrot.slane %v4295, %v4321
    %v4324 = vadd.f32 %v4302, %v4322
    %v4325 = vadd.f32 %v4303, %v4322
    %v4326 = vadd.f32 %v4304, %v4322
    %v4327 = vadd.f32 %v4305, %v4322
    %v4328 = vadd.f32 %v4306, %v4322
    %v4329 = vadd.f32 %v4307, %v4322
    %v4330 = vadd.f32 %v4308, %v4322
    %v4331 = vadd.f32 %v4309, %v4322
    %v4332 = vadd.f32 %v4310, %v4322
    %v4333 = vadd.f32 %v4311, %v4322
    %v4334 = vadd.f32 %v4312, %v4322
    %v4335 = vadd.f32 %v4313, %v4322
    %v4336 = vadd.f32 %v4314, %v4322
    %v4337 = vadd.f32 %v4315, %v4322
    %v4338 = vadd.f32 %v4316, %v4322
    %v4339 = vadd.f32 %v4317, %v4322
    %vm4340 = vcmp.gt.f32.partialorder %v4324, 0.0
    %vm4341 = vcmp.gt.f32.partialorder %v4325, 0.0
    %vm4342 = vcmp.gt.f32.partialorder %v4326, 0.0
    %vm4343 = vcmp.gt.f32.partialorder %v4327, 0.0
    %vm4344 = vcmp.gt.f32.partialorder %v4328, 0.0
    %vm4345 = vcmp.gt.f32.partialorder %v4329, 0.0
    %vm4346 = vcmp.gt.f32.partialorder %v4330, 0.0
    %vm4347 = vcmp.gt.f32.partialorder %v4331, 0.0
    %vm4348 = vcmp.gt.f32.partialorder %v4332, 0.0
    %vm4349 = vcmp.gt.f32.partialorder %v4333, 0.0
    %vm4350 = vcmp.gt.f32.partialorder %v4334, 0.0
    %vm4351 = vcmp.gt.f32.partialorder %v4335, 0.0
    %vm4352 = vcmp.gt.f32.partialorder %v4336, 0.0
    %vm4353 = vcmp.gt.f32.partialorder %v4337, 0.0
    %vm4354 = vcmp.gt.f32.partialorder %v4338, 0.0
    %vm4355 = vcmp.gt.f32.partialorder %v4339, 0.0
    %v4356 = vmul.f32 %v4324, 0.2
    %v4357 = vmul.f32 %v4325, 0.2
    %v4358 = vmul.f32 %v4326, 0.2
    %v4359 = vmul.f32 %v4327, 0.2
    %v4360 = vmul.f32 %v4328, 0.2
    %v4361 = vmul.f32 %v4329, 0.2
    %v4362 = vmul.f32 %v4330, 0.2
    %v4363 = vmul.f32 %v4331, 0.2
    %v4364 = vmul.f32 %v4332, 0.2
    %v4365 = vmul.f32 %v4333, 0.2
    %v4366 = vmul.f32 %v4334, 0.2
    %v4367 = vmul.f32 %v4335, 0.2
    %v4368 = vmul.f32 %v4336, 0.2
    %v4369 = vmul.f32 %v4337, 0.2
    %v4370 = vmul.f32 %v4338, 0.2
    %v4371 = vmul.f32 %v4339, 0.2
    %v4372 = vsel %vm4340, %v4324, %v4356
    %v4373 = vsel %vm4341, %v4325, %v4357
    %v4374 = vsel %vm4342, %v4326, %v4358
    %v4375 = vsel %vm4343, %v4327, %v4359
    %v4376 = vsel %vm4344, %v4328, %v4360
    %v4377 = vsel %vm4345, %v4329, %v4361
    %v4378 = vsel %vm4346, %v4330, %v4362
    %v4379 = vsel %vm4347, %v4331, %v4363
    %v4380 = vsel %vm4348, %v4332, %v4364
    %v4381 = vsel %vm4349, %v4333, %v4365
    %v4382 = vsel %vm4350, %v4334, %v4366
    %v4383 = vsel %vm4351, %v4335, %v4367
    %v4384 = vsel %vm4352, %v4336, %v4368
    %v4385 = vsel %vm4353, %v4337, %v4369
    %v4386 = vsel %vm4354, %v4338, %v4370
    %v4387 = vsel %vm4355, %v4339, %v4371
    %4388 = vst [vmem:[#allocation9] sm:$0xff] %v4372
    %4389 = vst [vmem:[#allocation9 + $0x8] sm:$0xff] %v4373
    %4390 = vst [vmem:[#allocation9 + $0x10] sm:$0xff] %v4374
    %4391 = vst [vmem:[#allocation9 + $0x18] sm:$0xff] %v4375
    %4392 = vst [vmem:[#allocation9 + $0x20] sm:$0xff] %v4376
    %4393 = vst [vmem:[#allocation9 + $0x28] sm:$0xff] %v4377
    %4394 = vst [vmem:[#allocation9 + $0x30] sm:$0xff] %v4378
    %4395 = vst [vmem:[#allocation9 + $0x38] sm:$0xff] %v4379
    %4396 = vst [vmem:[#allocation9 + $0x40] sm:$0xff] %v4380
    %4397 = vst [vmem:[#allocation9 + $0x48] sm:$0xff] %v4381
    %4398 = vst [vmem:[#allocation9 + $0x50] sm:$0xff] %v4382
    %4399 = vst [vmem:[#allocation9 + $0x58] sm:$0xff] %v4383
    %4400 = vst [vmem:[#allocation9 + $0x60] sm:$0xff] %v4384
    %4401 = vst [vmem:[#allocation9 + $0x68] sm:$0xff] %v4385
    %4402 = vst [vmem:[#allocation9 + $0x70] sm:$0xff] %v4386
    %4403 = vst [vmem:[#allocation9 + $0x78] sm:$0xff] %v4387
    // Predicated region
    $region42: #{tpu_custom_call.1} parent=1 // pred_check
      _
    $region43: #{tpu_custom_call.1} parent=1 // pred_check_branch
      %4405 = sbr.rel (0) target = $region45
    $region44: #{tpu_custom_call.1} parent=1 // pred_region
      %s4407 = ssub.s32 2048, 2048
      %4408 = vsyncadd [#allocation5], %s4407
      %s4409 = sshll.u32 [#allocation9], 4
      %s4410 = int_to_ptr.vmem [resolvable:$true] %s4409
      %4415 = dma.vmem_to_hbm [thread:$0]  %s4410, 2048, %s7, [#allocation5], 128, 128, 8
    $region45: #{tpu_custom_call.1} parent=1 // pred_fallthru
      _
    // Predicated region
    $region46: #{tpu_custom_call.1} parent=1 // pred_check
      _
    $region47: #{tpu_custom_call.1} parent=1 // pred_check_branch
      %4417 = sbr.rel (0) target = $region49
    $region48: #{tpu_custom_call.1} parent=1 // pred_region
      %4418 = dma.done [#allocation5], 2048
    $region49: #{tpu_custom_call.1} parent=1 // pred_fallthru
      _
    %4419 = vsyncpa [#allocation4], 1
    %4420 = vsyncpa [#allocation7], 1
    %4421 = vsyncpa [#allocation5], 1

</llo_original>
